<compile_context>
chip_gen: v7x
topology: tpu7x:2x2x1
jax: 0.10.0
libtpu: 0.0.40
codegen_flags: <defaults>
</compile_context>

<pallas_src>
import jax
import jax.numpy as jnp
from jax.experimental import pallas as pl
from jax.experimental.pallas import tpu as pltpu


# ----------------------------------------------------------------------------
# posmlp relative-position bias: depends only on window_size + posmlp weights,
# so it is evaluated once in plain JAX (tiny) and fed to the kernel as an
# additive (nW_or_1, nH, N, N) bias instead of being recomputed per grid step.
# ----------------------------------------------------------------------------
def _pos_bias(params, window_size, num_heads):
    ws = window_size
    N = ws * ws
    p = jnp.arange(N)
    pos = jnp.stack([p // ws, p % ws]).astype(jnp.float32)        # (2, N)
    d = pos[:, None, :] - pos[:, :, None]                         # (2, N, N)
    d = jnp.sign(d) * jnp.log1p(jnp.abs(d))                       # log-scaled
    w1 = params["posmlp_w1"].reshape(params["posmlp_w1"].shape[0], 2)
    w2 = params["posmlp_w2"].reshape(num_heads, -1)
    h = jnp.maximum(
        jnp.einsum("pc,cij->pij", w1, d) + params["posmlp_b1"][:, None, None],
        0.0)
    return jnp.einsum("hp,pij->hij", w2, h) + params["posmlp_b2"][:, None, None]


# ----------------------------------------------------------------------------
# Fused attention kernel: one grid step = `TB` windows.
# ----------------------------------------------------------------------------
def _window_attn_kernel(x_ref, wq_ref, wk_ref, wv_ref, bq_ref, bk_ref, bv_ref,
                        ab_ref, wp_ref, bp_ref, o_ref):
    TB, N, C = x_ref.shape
    nH, _, D = wq_ref.shape
    nWm = ab_ref.shape[0]          # number of distinct masks folded into bias
    rep = TB // nWm                # windows per mask period inside the block

    x = x_ref[...].astype(jnp.float32).reshape(TB * N, C)
    ab = ab_ref[...].astype(jnp.float32)                  # (nWm, nH, N, N)
    wq = wq_ref[...].astype(jnp.float32)                  # (nH, C, D), scale folded
    wk = wk_ref[...].astype(jnp.float32)
    wv = wv_ref[...].astype(jnp.float32)
    bq = bq_ref[...].astype(jnp.float32)                  # (nH, 1, D)
    bk = bk_ref[...].astype(jnp.float32)
    bv = bv_ref[...].astype(jnp.float32)
    wp = wp_ref[...].astype(jnp.float32)                  # (nH, D, C)

    acc = jnp.zeros((TB * N, C), dtype=jnp.float32)
    for h in range(nH):                                   # static unroll (nH small)
        qh = (jnp.dot(x, wq[h], preferred_element_type=jnp.float32)
              + bq[h]).reshape(TB, N, D)
        kh = (jnp.dot(x, wk[h], preferred_element_type=jnp.float32)
              + bk[h]).reshape(TB, N, D)
        vh = (jnp.dot(x, wv[h], preferred_element_type=jnp.float32)
              + bv[h]).reshape(TB, N, D)

        # scores + (positional bias [+ mask]) + softmax, all in VMEM.
        s = jnp.einsum("bqd,bkd->bqk", qh, kh,
                       preferred_element_type=jnp.float32)        # (TB, N, N)
        s = s.reshape(rep, nWm, N, N) + ab[:, h][None]            # broadcast add
        s = s - jnp.max(s, axis=-1, keepdims=True)
        p = jnp.exp(s)
        p = p / jnp.sum(p, axis=-1, keepdims=True)
        p = p.reshape(TB, N, N)

        oh = jnp.einsum("bqk,bkd->bqd", p, vh,
                        preferred_element_type=jnp.float32)       # (TB, N, D)
        # per-head slice of the output projection -> no in-kernel concatenate
        acc = acc + jnp.dot(oh.reshape(TB * N, D), wp[h],
                            preferred_element_type=jnp.float32)

    y = acc + bp_ref[...].astype(jnp.float32)
    o_ref[...] = y.reshape(TB, N, C).astype(o_ref.dtype)


# ----------------------------------------------------------------------------
# Wrapper: weight packing / fold, bias+mask fold, tiling, pallas_call.
# ----------------------------------------------------------------------------
def window_attention_forward(x, params, window_size, num_heads, mask=None,
                             qk_scale=None, tb=128):
    B_, N, C = x.shape
    ws = window_size
    assert N == ws * ws
    nH = num_heads
    D = C // nH
    scale = qk_scale if qk_scale is not None else D ** (-0.5)

    # ---- per-head weight packing (one-off, plain JAX) -----------------------
    wqkv_t = params["qkv_w"].T                                   # (C, 3C)

    def split_heads(w2d):                                        # (C, C)->(nH,C,D)
        return w2d.reshape(C, nH, D).transpose(1, 0, 2)

    wq = split_heads(wqkv_t[:, 0:C]) * scale                     # fold q scale
    wk = split_heads(wqkv_t[:, C:2 * C])
    wv = split_heads(wqkv_t[:, 2 * C:3 * C])
    bqkv = params["qkv_b"]
    bq = bqkv[0:C].reshape(nH, 1, D) * scale                     # fold q scale
    bk = bqkv[C:2 * C].reshape(nH, 1, D)
    bv = bqkv[2 * C:3 * C].reshape(nH, 1, D)
    wp = params["proj_w"].T.reshape(nH, D, C)                    # per-head rows
    bp = params["proj_b"].reshape(1, C)

    # ---- additive attention bias: posmlp positional bias (+ window mask) ----
    bias = _pos_bias(params, ws, nH)                             # (nH, N, N)
    if mask is not None:
        nW = mask.shape[0]
        assert B_ % nW == 0, "B_ must be a multiple of the number of masks"
        ab = bias[None] + mask[:, None].astype(bias.dtype)       # (nW, nH, N, N)
    else:
        ab = bias[None]                                          # (1, nH, N, N)
    nWm = ab.shape[0]

    # ---- tiling: tb windows / grid step, tb % nWm == 0, cdiv + padding ------
    tb = max(nWm, (min(tb, B_) // nWm) * nWm)
    B_pad = ((B_ + tb - 1) // tb) * tb
    x_in = x if B_pad == B_ else jnp.pad(x, ((0, B_pad - B_), (0, 0), (0, 0)))
    grid = (B_pad // tb,)

    flops = B_pad * (2 * N * C * 3 * C + 4 * nH * N * N * D + 2 * N * C * C)
    bytes_accessed = 4 * (2 * B_pad * N * C + 4 * C * C + nWm * nH * N * N)
    cost = pl.CostEstimate(flops=flops,
                           transcendentals=B_pad * nH * N * N,
                           bytes_accessed=bytes_accessed)

    out = pl.pallas_call(
        _window_attn_kernel,
        out_shape=jax.ShapeDtypeStruct((B_pad, N, C), x.dtype),
        grid_spec=pltpu.PrefetchScalarGridSpec(
            num_scalar_prefetch=0,
            grid=grid,
            in_specs=[
                pl.BlockSpec((tb, N, C), lambda i: (i, 0, 0)),          # x block
                pl.BlockSpec((nH, C, D), lambda i: (0, 0, 0)),          # Wq*scale
                pl.BlockSpec((nH, C, D), lambda i: (0, 0, 0)),          # Wk
                pl.BlockSpec((nH, C, D), lambda i: (0, 0, 0)),          # Wv
                pl.BlockSpec((nH, 1, D), lambda i: (0, 0, 0)),          # bq*scale
                pl.BlockSpec((nH, 1, D), lambda i: (0, 0, 0)),          # bk
                pl.BlockSpec((nH, 1, D), lambda i: (0, 0, 0)),          # bv
                pl.BlockSpec((nWm, nH, N, N), lambda i: (0, 0, 0, 0)),  # bias+mask
                pl.BlockSpec((nH, D, C), lambda i: (0, 0, 0)),          # Wproj
                pl.BlockSpec((1, C), lambda i: (0, 0)),                 # bproj
            ],
            out_specs=pl.BlockSpec((tb, N, C), lambda i: (i, 0, 0)),
        ),
        compiler_params=pltpu.CompilerParams(
            dimension_semantics=("parallel",)),
        cost_estimate=cost,
    )(x_in, wq, wk, wv, bq, bk, bv, ab, wp, bp)

    return out[:B_]


# ----------------------------------------------------------------------------
# Pure-JAX reference matching the PyTorch module exactly.
# ----------------------------------------------------------------------------
def window_attention_reference(x, params, window_size, num_heads, mask=None,
                               qk_scale=None):
    B_, N, C = x.shape
    nH = num_heads
    D = C // nH
    scale = qk_scale if qk_scale is not None else D ** (-0.5)
    qkv = x @ params["qkv_w"].T + params["qkv_b"]
    qkv = qkv.reshape(B_, N, 3, nH, D).transpose(2, 0, 3, 1, 4)
    q, k, v = qkv[0] * scale, qkv[1], qkv[2]
    attn = jnp.einsum("bhqd,bhkd->bhqk", q, k)
    attn = attn + _pos_bias(params, window_size, nH)[None]
    if mask is not None:
        nW = mask.shape[0]
        attn = attn.reshape(B_ // nW, nW, nH, N, N) + mask[None, :, None, :, :]
        attn = attn.reshape(B_, nH, N, N)
    attn = jax.nn.softmax(attn, axis=-1)
    out = jnp.einsum("bhqk,bhkd->bhqd", attn, v)
    out = out.transpose(0, 2, 1, 3).reshape(B_, N, C)
    return out @ params["proj_w"].T + params["proj_b"]


if __name__ == "__main__":
    # Small shapes consistent with the module: dim=32, window 4x4 (N=16),
    # num_heads=4, posmlp_dim=32, B_ = 2 images * 4 windows = 8.
    B, nW = 2, 4
    ws, C, nH, P = 4, 32, 4, 32
    N = ws * ws
    B_ = B * nW

    key = jax.random.PRNGKey(0)
    ks = jax.random.split(key, 10)
    x = jax.random.normal(ks[0], (B_, N, C), dtype=jnp.float32)
    params = {
        "qkv_w": 0.1 * jax.random.normal(ks[1], (3 * C, C), dtype=jnp.float32),
        "qkv_b": 0.1 * jax.random.normal(ks[2], (3 * C,), dtype=jnp.float32),
        "proj_w": 0.1 * jax.random.normal(ks[3], (C, C), dtype=jnp.float32),
        "proj_b": 0.1 * jax.random.normal(ks[4], (C,), dtype=jnp.float32),
        "posmlp_w1": 0.5 * jax.random.normal(ks[5], (P, 2, 1, 1), dtype=jnp.float32),
        "posmlp_b1": 0.1 * jax.random.normal(ks[6], (P,), dtype=jnp.float32),
        "posmlp_w2": 0.2 * jax.random.normal(ks[7], (nH, P, 1, 1), dtype=jnp.float32),
        "posmlp_b2": 0.1 * jax.random.normal(ks[8], (nH,), dtype=jnp.float32),
    }
    # Shifted-window style 0 / -100 mask (each row has at least one valid slot).
    seg = jax.random.randint(ks[9], (nW, N), 0, 2)
    mask = jnp.where(seg[:, :, None] == seg[:, None, :], 0.0, -100.0
                     ).astype(jnp.float32)

    # Masked path (tb=4 -> 2 grid steps, both TCs busy on v7x).
    y = window_attention_forward(x, params, ws, nH, mask=mask, tb=4)
    y = jax.block_until_ready(y)
    y_ref = window_attention_reference(x, params, ws, nH, mask=mask)
    assert y.shape == (B_, N, C)
    assert jnp.allclose(y, y_ref, atol=1e-4, rtol=1e-4), "mask path mismatch"

    # No-mask path.
    y2 = jax.block_until_ready(
        window_attention_forward(x, params, ws, nH, mask=None, tb=8))
    y2_ref = window_attention_reference(x, params, ws, nH, mask=None)
    assert jnp.allclose(y2, y2_ref, atol=1e-4, rtol=1e-4), "no-mask mismatch"

    # No-mask path with a tile size that does not divide B_ (exercises padding).
    y3 = jax.block_until_ready(
        window_attention_forward(x, params, ws, nH, mask=None, tb=5))
    assert jnp.allclose(y3, y2_ref, atol=1e-4, rtol=1e-4), "padded path mismatch"

    print("KERNEL_OK")
</pallas_src>

<mosaic_0001>
module attributes {stable_mosaic.version = 11 : i64} {
  func.func @_window_attn_kernel(%arg0: i32, %arg1: memref<4x16x32xf32, #tpu.memory_space<vmem>>, %arg2: memref<4x32x8xf32, #tpu.memory_space<vmem>>, %arg3: memref<4x32x8xf32, #tpu.memory_space<vmem>>, %arg4: memref<4x32x8xf32, #tpu.memory_space<vmem>>, %arg5: memref<4x1x8xf32, #tpu.memory_space<vmem>>, %arg6: memref<4x1x8xf32, #tpu.memory_space<vmem>>, %arg7: memref<4x1x8xf32, #tpu.memory_space<vmem>>, %arg8: memref<4x4x16x16xf32, #tpu.memory_space<vmem>>, %arg9: memref<4x8x32xf32, #tpu.memory_space<vmem>>, %arg10: memref<1x32xf32, #tpu.memory_space<vmem>>, %arg11: memref<4x16x32xf32, #tpu.memory_space<vmem>>) attributes {dimension_semantics = [#tpu.dimension_semantics<parallel>], iteration_bounds = array<i64: 2>, scalar_prefetch = 0 : i64, scratch_operands = 0 : i64, tpu.core_type = #tpu.core_type<tc>, window_params = [{transform_indices = @transform_0, window_bounds = array<i64: 4, 16, 32>}, {pipeline_mode = #tpu.pipeline_mode<synchronous>, transform_indices = @transform_1, window_bounds = array<i64: 4, 32, 8>}, {pipeline_mode = #tpu.pipeline_mode<synchronous>, transform_indices = @transform_2, window_bounds = array<i64: 4, 32, 8>}, {pipeline_mode = #tpu.pipeline_mode<synchronous>, transform_indices = @transform_3, window_bounds = array<i64: 4, 32, 8>}, {pipeline_mode = #tpu.pipeline_mode<synchronous>, transform_indices = @transform_4, window_bounds = array<i64: 4, 1, 8>}, {pipeline_mode = #tpu.pipeline_mode<synchronous>, transform_indices = @transform_5, window_bounds = array<i64: 4, 1, 8>}, {pipeline_mode = #tpu.pipeline_mode<synchronous>, transform_indices = @transform_6, window_bounds = array<i64: 4, 1, 8>}, {pipeline_mode = #tpu.pipeline_mode<synchronous>, transform_indices = @transform_7, window_bounds = array<i64: 4, 4, 16, 16>}, {pipeline_mode = #tpu.pipeline_mode<synchronous>, transform_indices = @transform_8, window_bounds = array<i64: 4, 8, 32>}, {pipeline_mode = #tpu.pipeline_mode<synchronous>, transform_indices = @transform_9, window_bounds = array<i64: 1, 32>}, {transform_indices = @transform_10, window_bounds = array<i64: 4, 16, 32>}]} {
    %c0 = arith.constant 0 : index
    %c0_0 = arith.constant 0 : index
    %c0_1 = arith.constant 0 : index
    %0 = vector.load %arg1[%c0, %c0_0, %c0_1] : memref<4x16x32xf32, #tpu.memory_space<vmem>>, vector<4x16x32xf32>
    %1 = vector.shape_cast %0 : vector<4x16x32xf32> to vector<64x32xf32>
    %c0_2 = arith.constant 0 : index
    %c0_3 = arith.constant 0 : index
    %c0_4 = arith.constant 0 : index
    %c0_5 = arith.constant 0 : index
    %2 = vector.load %arg8[%c0_2, %c0_3, %c0_4, %c0_5] : memref<4x4x16x16xf32, #tpu.memory_space<vmem>>, vector<4x4x16x16xf32>
    %c0_6 = arith.constant 0 : index
    %c0_7 = arith.constant 0 : index
    %c0_8 = arith.constant 0 : index
    %3 = vector.load %arg2[%c0_6, %c0_7, %c0_8] : memref<4x32x8xf32, #tpu.memory_space<vmem>>, vector<4x32x8xf32>
    %c0_9 = arith.constant 0 : index
    %c0_10 = arith.constant 0 : index
    %c0_11 = arith.constant 0 : index
    %4 = vector.load %arg3[%c0_9, %c0_10, %c0_11] : memref<4x32x8xf32, #tpu.memory_space<vmem>>, vector<4x32x8xf32>
    %c0_12 = arith.constant 0 : index
    %c0_13 = arith.constant 0 : index
    %c0_14 = arith.constant 0 : index
    %5 = vector.load %arg4[%c0_12, %c0_13, %c0_14] : memref<4x32x8xf32, #tpu.memory_space<vmem>>, vector<4x32x8xf32>
    %c0_15 = arith.constant 0 : index
    %c0_16 = arith.constant 0 : index
    %c0_17 = arith.constant 0 : index
    %6 = vector.load %arg5[%c0_15, %c0_16, %c0_17] : memref<4x1x8xf32, #tpu.memory_space<vmem>>, vector<4x1x8xf32>
    %c0_18 = arith.constant 0 : index
    %c0_19 = arith.constant 0 : index
    %c0_20 = arith.constant 0 : index
    %7 = vector.load %arg6[%c0_18, %c0_19, %c0_20] : memref<4x1x8xf32, #tpu.memory_space<vmem>>, vector<4x1x8xf32>
    %c0_21 = arith.constant 0 : index
    %c0_22 = arith.constant 0 : index
    %c0_23 = arith.constant 0 : index
    %8 = vector.load %arg7[%c0_21, %c0_22, %c0_23] : memref<4x1x8xf32, #tpu.memory_space<vmem>>, vector<4x1x8xf32>
    %c0_24 = arith.constant 0 : index
    %c0_25 = arith.constant 0 : index
    %c0_26 = arith.constant 0 : index
    %9 = vector.load %arg9[%c0_24, %c0_25, %c0_26] : memref<4x8x32xf32, #tpu.memory_space<vmem>>, vector<4x8x32xf32>
    %cst = arith.constant 0.000000e+00 : f32
    %10 = vector.broadcast %cst : f32 to vector<64x32xf32>
    %11 = vector.extract_strided_slice %3 {offsets = [0, 0, 0], sizes = [1, 32, 8], strides = [1, 1, 1]} : vector<4x32x8xf32> to vector<1x32x8xf32>
    %12 = vector.shape_cast %11 : vector<1x32x8xf32> to vector<32x8xf32>
    %cst_27 = arith.constant dense<0.000000e+00> : vector<64x8xf32>
    %13 = tpu.matmul %1, %12, %cst_27 {dimension_numbers = #tpu.dot_dimension_numbers<[1], [0], [0], [1], [0, 0, 1, 1], [], []>} : vector<64x32xf32>, vector<32x8xf32>, vector<64x8xf32> -> vector<64x8xf32>
    %14 = vector.extract_strided_slice %6 {offsets = [0, 0, 0], sizes = [1, 1, 8], strides = [1, 1, 1]} : vector<4x1x8xf32> to vector<1x1x8xf32>
    %15 = vector.shape_cast %14 : vector<1x1x8xf32> to vector<1x8xf32>
    %16 = vector.broadcast %15 : vector<1x8xf32> to vector<64x8xf32>
    %17 = arith.addf %13, %16 : vector<64x8xf32>
    %18 = vector.shape_cast %17 : vector<64x8xf32> to vector<4x16x8xf32>
    %19 = vector.extract_strided_slice %4 {offsets = [0, 0, 0], sizes = [1, 32, 8], strides = [1, 1, 1]} : vector<4x32x8xf32> to vector<1x32x8xf32>
    %20 = vector.shape_cast %19 : vector<1x32x8xf32> to vector<32x8xf32>
    %cst_28 = arith.constant dense<0.000000e+00> : vector<64x8xf32>
    %21 = tpu.matmul %1, %20, %cst_28 {dimension_numbers = #tpu.dot_dimension_numbers<[1], [0], [0], [1], [0, 0, 1, 1], [], []>} : vector<64x32xf32>, vector<32x8xf32>, vector<64x8xf32> -> vector<64x8xf32>
    %22 = vector.extract_strided_slice %7 {offsets = [0, 0, 0], sizes = [1, 1, 8], strides = [1, 1, 1]} : vector<4x1x8xf32> to vector<1x1x8xf32>
    %23 = vector.shape_cast %22 : vector<1x1x8xf32> to vector<1x8xf32>
    %24 = vector.broadcast %23 : vector<1x8xf32> to vector<64x8xf32>
    %25 = arith.addf %21, %24 : vector<64x8xf32>
    %26 = vector.shape_cast %25 : vector<64x8xf32> to vector<4x16x8xf32>
    %27 = vector.extract_strided_slice %5 {offsets = [0, 0, 0], sizes = [1, 32, 8], strides = [1, 1, 1]} : vector<4x32x8xf32> to vector<1x32x8xf32>
    %28 = vector.shape_cast %27 : vector<1x32x8xf32> to vector<32x8xf32>
    %cst_29 = arith.constant dense<0.000000e+00> : vector<64x8xf32>
    %29 = tpu.matmul %1, %28, %cst_29 {dimension_numbers = #tpu.dot_dimension_numbers<[1], [0], [0], [1], [0, 0, 1, 1], [], []>} : vector<64x32xf32>, vector<32x8xf32>, vector<64x8xf32> -> vector<64x8xf32>
    %30 = vector.extract_strided_slice %8 {offsets = [0, 0, 0], sizes = [1, 1, 8], strides = [1, 1, 1]} : vector<4x1x8xf32> to vector<1x1x8xf32>
    %31 = vector.shape_cast %30 : vector<1x1x8xf32> to vector<1x8xf32>
    %32 = vector.broadcast %31 : vector<1x8xf32> to vector<64x8xf32>
    %33 = arith.addf %29, %32 : vector<64x8xf32>
    %34 = vector.shape_cast %33 : vector<64x8xf32> to vector<4x16x8xf32>
    "tpu.trace_start"() <{level = 10 : i32, message = "bqd,bkd->bqk"}> : () -> ()
    %cst_30 = arith.constant dense<0.000000e+00> : vector<4x16x16xf32>
    %35 = tpu.matmul %18, %26, %cst_30 {dimension_numbers = #tpu.dot_dimension_numbers<[2], [2], [1], [1], [0, 0, 0, 1, 1, 1], [0], [0]>} : vector<4x16x8xf32>, vector<4x16x8xf32>, vector<4x16x16xf32> -> vector<4x16x16xf32>
    "tpu.trace_stop"() : () -> ()
    %36 = vector.shape_cast %35 : vector<4x16x16xf32> to vector<1x4x16x16xf32>
    %37 = vector.extract_strided_slice %2 {offsets = [0, 0, 0, 0], sizes = [4, 1, 16, 16], strides = [1, 1, 1, 1]} : vector<4x4x16x16xf32> to vector<4x1x16x16xf32>
    %38 = vector.shape_cast %37 : vector<4x1x16x16xf32> to vector<4x16x16xf32>
    %39 = vector.shape_cast %38 : vector<4x16x16xf32> to vector<1x4x16x16xf32>
    %40 = arith.addf %36, %39 : vector<1x4x16x16xf32>
    %cst_31 = arith.constant dense<0xFF800000> : vector<1x4x16xf32>
    %41 = vector.multi_reduction <maximumf>, %40, %cst_31 [3] : vector<1x4x16x16xf32> to vector<1x4x16xf32>
    %42 = vector.shape_cast %41 : vector<1x4x16xf32> to vector<1x4x16x1xf32>
    %43 = vector.broadcast %42 : vector<1x4x16x1xf32> to vector<1x4x16x16xf32>
    %44 = arith.subf %40, %43 : vector<1x4x16x16xf32>
    %45 = math.exp %44 : vector<1x4x16x16xf32>
    %cst_32 = arith.constant dense<0.000000e+00> : vector<1x4x16xf32>
    %46 = vector.multi_reduction <add>, %45, %cst_32 [3] : vector<1x4x16x16xf32> to vector<1x4x16xf32>
    %47 = vector.shape_cast %46 : vector<1x4x16xf32> to vector<1x4x16x1xf32>
    %48 = vector.broadcast %47 : vector<1x4x16x1xf32> to vector<1x4x16x16xf32>
    %49 = arith.divf %45, %48 : vector<1x4x16x16xf32>
    %50 = vector.shape_cast %49 : vector<1x4x16x16xf32> to vector<4x16x16xf32>
    "tpu.trace_start"() <{level = 10 : i32, message = "bqk,bkd->bqd"}> : () -> ()
    %cst_33 = arith.constant dense<0.000000e+00> : vector<4x16x8xf32>
    %51 = tpu.matmul %50, %34, %cst_33 {dimension_numbers = #tpu.dot_dimension_numbers<[2], [1], [1], [2], [0, 0, 0, 1, 1, 2], [0], [0]>} : vector<4x16x16xf32>, vector<4x16x8xf32>, vector<4x16x8xf32> -> vector<4x16x8xf32>
    "tpu.trace_stop"() : () -> ()
    %52 = vector.shape_cast %51 : vector<4x16x8xf32> to vector<64x8xf32>
    %53 = vector.extract_strided_slice %9 {offsets = [0, 0, 0], sizes = [1, 8, 32], strides = [1, 1, 1]} : vector<4x8x32xf32> to vector<1x8x32xf32>
    %54 = vector.shape_cast %53 : vector<1x8x32xf32> to vector<8x32xf32>
    %cst_34 = arith.constant dense<0.000000e+00> : vector<64x32xf32>
    %55 = tpu.matmul %52, %54, %cst_34 {dimension_numbers = #tpu.dot_dimension_numbers<[1], [0], [0], [1], [0, 0, 1, 1], [], []>} : vector<64x8xf32>, vector<8x32xf32>, vector<64x32xf32> -> vector<64x32xf32>
    %56 = arith.addf %10, %55 : vector<64x32xf32>
    %57 = vector.extract_strided_slice %3 {offsets = [1, 0, 0], sizes = [1, 32, 8], strides = [1, 1, 1]} : vector<4x32x8xf32> to vector<1x32x8xf32>
    %58 = vector.shape_cast %57 : vector<1x32x8xf32> to vector<32x8xf32>
    %cst_35 = arith.constant dense<0.000000e+00> : vector<64x8xf32>
    %59 = tpu.matmul %1, %58, %cst_35 {dimension_numbers = #tpu.dot_dimension_numbers<[1], [0], [0], [1], [0, 0, 1, 1], [], []>} : vector<64x32xf32>, vector<32x8xf32>, vector<64x8xf32> -> vector<64x8xf32>
    %60 = vector.extract_strided_slice %6 {offsets = [1, 0, 0], sizes = [1, 1, 8], strides = [1, 1, 1]} : vector<4x1x8xf32> to vector<1x1x8xf32>
    %61 = vector.shape_cast %60 : vector<1x1x8xf32> to vector<1x8xf32>
    %62 = vector.broadcast %61 : vector<1x8xf32> to vector<64x8xf32>
    %63 = arith.addf %59, %62 : vector<64x8xf32>
    %64 = vector.shape_cast %63 : vector<64x8xf32> to vector<4x16x8xf32>
    %65 = vector.extract_strided_slice %4 {offsets = [1, 0, 0], sizes = [1, 32, 8], strides = [1, 1, 1]} : vector<4x32x8xf32> to vector<1x32x8xf32>
    %66 = vector.shape_cast %65 : vector<1x32x8xf32> to vector<32x8xf32>
    %cst_36 = arith.constant dense<0.000000e+00> : vector<64x8xf32>
    %67 = tpu.matmul %1, %66, %cst_36 {dimension_numbers = #tpu.dot_dimension_numbers<[1], [0], [0], [1], [0, 0, 1, 1], [], []>} : vector<64x32xf32>, vector<32x8xf32>, vector<64x8xf32> -> vector<64x8xf32>
    %68 = vector.extract_strided_slice %7 {offsets = [1, 0, 0], sizes = [1, 1, 8], strides = [1, 1, 1]} : vector<4x1x8xf32> to vector<1x1x8xf32>
    %69 = vector.shape_cast %68 : vector<1x1x8xf32> to vector<1x8xf32>
    %70 = vector.broadcast %69 : vector<1x8xf32> to vector<64x8xf32>
    %71 = arith.addf %67, %70 : vector<64x8xf32>
    %72 = vector.shape_cast %71 : vector<64x8xf32> to vector<4x16x8xf32>
    %73 = vector.extract_strided_slice %5 {offsets = [1, 0, 0], sizes = [1, 32, 8], strides = [1, 1, 1]} : vector<4x32x8xf32> to vector<1x32x8xf32>
    %74 = vector.shape_cast %73 : vector<1x32x8xf32> to vector<32x8xf32>
    %cst_37 = arith.constant dense<0.000000e+00> : vector<64x8xf32>
    %75 = tpu.matmul %1, %74, %cst_37 {dimension_numbers = #tpu.dot_dimension_numbers<[1], [0], [0], [1], [0, 0, 1, 1], [], []>} : vector<64x32xf32>, vector<32x8xf32>, vector<64x8xf32> -> vector<64x8xf32>
    %76 = vector.extract_strided_slice %8 {offsets = [1, 0, 0], sizes = [1, 1, 8], strides = [1, 1, 1]} : vector<4x1x8xf32> to vector<1x1x8xf32>
    %77 = vector.shape_cast %76 : vector<1x1x8xf32> to vector<1x8xf32>
    %78 = vector.broadcast %77 : vector<1x8xf32> to vector<64x8xf32>
    %79 = arith.addf %75, %78 : vector<64x8xf32>
    %80 = vector.shape_cast %79 : vector<64x8xf32> to vector<4x16x8xf32>
    "tpu.trace_start"() <{level = 10 : i32, message = "bqd,bkd->bqk"}> : () -> ()
    %cst_38 = arith.constant dense<0.000000e+00> : vector<4x16x16xf32>
    %81 = tpu.matmul %64, %72, %cst_38 {dimension_numbers = #tpu.dot_dimension_numbers<[2], [2], [1], [1], [0, 0, 0, 1, 1, 1], [0], [0]>} : vector<4x16x8xf32>, vector<4x16x8xf32>, vector<4x16x16xf32> -> vector<4x16x16xf32>
    "tpu.trace_stop"() : () -> ()
    %82 = vector.shape_cast %81 : vector<4x16x16xf32> to vector<1x4x16x16xf32>
    %83 = vector.extract_strided_slice %2 {offsets = [0, 1, 0, 0], sizes = [4, 1, 16, 16], strides = [1, 1, 1, 1]} : vector<4x4x16x16xf32> to vector<4x1x16x16xf32>
    %84 = vector.shape_cast %83 : vector<4x1x16x16xf32> to vector<4x16x16xf32>
    %85 = vector.shape_cast %84 : vector<4x16x16xf32> to vector<1x4x16x16xf32>
    %86 = arith.addf %82, %85 : vector<1x4x16x16xf32>
    %cst_39 = arith.constant dense<0xFF800000> : vector<1x4x16xf32>
    %87 = vector.multi_reduction <maximumf>, %86, %cst_39 [3] : vector<1x4x16x16xf32> to vector<1x4x16xf32>
    %88 = vector.shape_cast %87 : vector<1x4x16xf32> to vector<1x4x16x1xf32>
    %89 = vector.broadcast %88 : vector<1x4x16x1xf32> to vector<1x4x16x16xf32>
    %90 = arith.subf %86, %89 : vector<1x4x16x16xf32>
    %91 = math.exp %90 : vector<1x4x16x16xf32>
    %cst_40 = arith.constant dense<0.000000e+00> : vector<1x4x16xf32>
    %92 = vector.multi_reduction <add>, %91, %cst_40 [3] : vector<1x4x16x16xf32> to vector<1x4x16xf32>
    %93 = vector.shape_cast %92 : vector<1x4x16xf32> to vector<1x4x16x1xf32>
    %94 = vector.broadcast %93 : vector<1x4x16x1xf32> to vector<1x4x16x16xf32>
    %95 = arith.divf %91, %94 : vector<1x4x16x16xf32>
    %96 = vector.shape_cast %95 : vector<1x4x16x16xf32> to vector<4x16x16xf32>
    "tpu.trace_start"() <{level = 10 : i32, message = "bqk,bkd->bqd"}> : () -> ()
    %cst_41 = arith.constant dense<0.000000e+00> : vector<4x16x8xf32>
    %97 = tpu.matmul %96, %80, %cst_41 {dimension_numbers = #tpu.dot_dimension_numbers<[2], [1], [1], [2], [0, 0, 0, 1, 1, 2], [0], [0]>} : vector<4x16x16xf32>, vector<4x16x8xf32>, vector<4x16x8xf32> -> vector<4x16x8xf32>
    "tpu.trace_stop"() : () -> ()
    %98 = vector.shape_cast %97 : vector<4x16x8xf32> to vector<64x8xf32>
    %99 = vector.extract_strided_slice %9 {offsets = [1, 0, 0], sizes = [1, 8, 32], strides = [1, 1, 1]} : vector<4x8x32xf32> to vector<1x8x32xf32>
    %100 = vector.shape_cast %99 : vector<1x8x32xf32> to vector<8x32xf32>
    %cst_42 = arith.constant dense<0.000000e+00> : vector<64x32xf32>
    %101 = tpu.matmul %98, %100, %cst_42 {dimension_numbers = #tpu.dot_dimension_numbers<[1], [0], [0], [1], [0, 0, 1, 1], [], []>} : vector<64x8xf32>, vector<8x32xf32>, vector<64x32xf32> -> vector<64x32xf32>
    %102 = arith.addf %56, %101 : vector<64x32xf32>
    %103 = vector.extract_strided_slice %3 {offsets = [2, 0, 0], sizes = [1, 32, 8], strides = [1, 1, 1]} : vector<4x32x8xf32> to vector<1x32x8xf32>
    %104 = vector.shape_cast %103 : vector<1x32x8xf32> to vector<32x8xf32>
    %cst_43 = arith.constant dense<0.000000e+00> : vector<64x8xf32>
    %105 = tpu.matmul %1, %104, %cst_43 {dimension_numbers = #tpu.dot_dimension_numbers<[1], [0], [0], [1], [0, 0, 1, 1], [], []>} : vector<64x32xf32>, vector<32x8xf32>, vector<64x8xf32> -> vector<64x8xf32>
    %106 = vector.extract_strided_slice %6 {offsets = [2, 0, 0], sizes = [1, 1, 8], strides = [1, 1, 1]} : vector<4x1x8xf32> to vector<1x1x8xf32>
    %107 = vector.shape_cast %106 : vector<1x1x8xf32> to vector<1x8xf32>
    %108 = vector.broadcast %107 : vector<1x8xf32> to vector<64x8xf32>
    %109 = arith.addf %105, %108 : vector<64x8xf32>
    %110 = vector.shape_cast %109 : vector<64x8xf32> to vector<4x16x8xf32>
    %111 = vector.extract_strided_slice %4 {offsets = [2, 0, 0], sizes = [1, 32, 8], strides = [1, 1, 1]} : vector<4x32x8xf32> to vector<1x32x8xf32>
    %112 = vector.shape_cast %111 : vector<1x32x8xf32> to vector<32x8xf32>
    %cst_44 = arith.constant dense<0.000000e+00> : vector<64x8xf32>
    %113 = tpu.matmul %1, %112, %cst_44 {dimension_numbers = #tpu.dot_dimension_numbers<[1], [0], [0], [1], [0, 0, 1, 1], [], []>} : vector<64x32xf32>, vector<32x8xf32>, vector<64x8xf32> -> vector<64x8xf32>
    %114 = vector.extract_strided_slice %7 {offsets = [2, 0, 0], sizes = [1, 1, 8], strides = [1, 1, 1]} : vector<4x1x8xf32> to vector<1x1x8xf32>
    %115 = vector.shape_cast %114 : vector<1x1x8xf32> to vector<1x8xf32>
    %116 = vector.broadcast %115 : vector<1x8xf32> to vector<64x8xf32>
    %117 = arith.addf %113, %116 : vector<64x8xf32>
    %118 = vector.shape_cast %117 : vector<64x8xf32> to vector<4x16x8xf32>
    %119 = vector.extract_strided_slice %5 {offsets = [2, 0, 0], sizes = [1, 32, 8], strides = [1, 1, 1]} : vector<4x32x8xf32> to vector<1x32x8xf32>
    %120 = vector.shape_cast %119 : vector<1x32x8xf32> to vector<32x8xf32>
    %cst_45 = arith.constant dense<0.000000e+00> : vector<64x8xf32>
    %121 = tpu.matmul %1, %120, %cst_45 {dimension_numbers = #tpu.dot_dimension_numbers<[1], [0], [0], [1], [0, 0, 1, 1], [], []>} : vector<64x32xf32>, vector<32x8xf32>, vector<64x8xf32> -> vector<64x8xf32>
    %122 = vector.extract_strided_slice %8 {offsets = [2, 0, 0], sizes = [1, 1, 8], strides = [1, 1, 1]} : vector<4x1x8xf32> to vector<1x1x8xf32>
    %123 = vector.shape_cast %122 : vector<1x1x8xf32> to vector<1x8xf32>
    %124 = vector.broadcast %123 : vector<1x8xf32> to vector<64x8xf32>
    %125 = arith.addf %121, %124 : vector<64x8xf32>
    %126 = vector.shape_cast %125 : vector<64x8xf32> to vector<4x16x8xf32>
    "tpu.trace_start"() <{level = 10 : i32, message = "bqd,bkd->bqk"}> : () -> ()
    %cst_46 = arith.constant dense<0.000000e+00> : vector<4x16x16xf32>
    %127 = tpu.matmul %110, %118, %cst_46 {dimension_numbers = #tpu.dot_dimension_numbers<[2], [2], [1], [1], [0, 0, 0, 1, 1, 1], [0], [0]>} : vector<4x16x8xf32>, vector<4x16x8xf32>, vector<4x16x16xf32> -> vector<4x16x16xf32>
    "tpu.trace_stop"() : () -> ()
    %128 = vector.shape_cast %127 : vector<4x16x16xf32> to vector<1x4x16x16xf32>
    %129 = vector.extract_strided_slice %2 {offsets = [0, 2, 0, 0], sizes = [4, 1, 16, 16], strides = [1, 1, 1, 1]} : vector<4x4x16x16xf32> to vector<4x1x16x16xf32>
    %130 = vector.shape_cast %129 : vector<4x1x16x16xf32> to vector<4x16x16xf32>
    %131 = vector.shape_cast %130 : vector<4x16x16xf32> to vector<1x4x16x16xf32>
    %132 = arith.addf %128, %131 : vector<1x4x16x16xf32>
    %cst_47 = arith.constant dense<0xFF800000> : vector<1x4x16xf32>
    %133 = vector.multi_reduction <maximumf>, %132, %cst_47 [3] : vector<1x4x16x16xf32> to vector<1x4x16xf32>
    %134 = vector.shape_cast %133 : vector<1x4x16xf32> to vector<1x4x16x1xf32>
    %135 = vector.broadcast %134 : vector<1x4x16x1xf32> to vector<1x4x16x16xf32>
    %136 = arith.subf %132, %135 : vector<1x4x16x16xf32>
    %137 = math.exp %136 : vector<1x4x16x16xf32>
    %cst_48 = arith.constant dense<0.000000e+00> : vector<1x4x16xf32>
    %138 = vector.multi_reduction <add>, %137, %cst_48 [3] : vector<1x4x16x16xf32> to vector<1x4x16xf32>
    %139 = vector.shape_cast %138 : vector<1x4x16xf32> to vector<1x4x16x1xf32>
    %140 = vector.broadcast %139 : vector<1x4x16x1xf32> to vector<1x4x16x16xf32>
    %141 = arith.divf %137, %140 : vector<1x4x16x16xf32>
    %142 = vector.shape_cast %141 : vector<1x4x16x16xf32> to vector<4x16x16xf32>
    "tpu.trace_start"() <{level = 10 : i32, message = "bqk,bkd->bqd"}> : () -> ()
    %cst_49 = arith.constant dense<0.000000e+00> : vector<4x16x8xf32>
    %143 = tpu.matmul %142, %126, %cst_49 {dimension_numbers = #tpu.dot_dimension_numbers<[2], [1], [1], [2], [0, 0, 0, 1, 1, 2], [0], [0]>} : vector<4x16x16xf32>, vector<4x16x8xf32>, vector<4x16x8xf32> -> vector<4x16x8xf32>
    "tpu.trace_stop"() : () -> ()
    %144 = vector.shape_cast %143 : vector<4x16x8xf32> to vector<64x8xf32>
    %145 = vector.extract_strided_slice %9 {offsets = [2, 0, 0], sizes = [1, 8, 32], strides = [1, 1, 1]} : vector<4x8x32xf32> to vector<1x8x32xf32>
    %146 = vector.shape_cast %145 : vector<1x8x32xf32> to vector<8x32xf32>
    %cst_50 = arith.constant dense<0.000000e+00> : vector<64x32xf32>
    %147 = tpu.matmul %144, %146, %cst_50 {dimension_numbers = #tpu.dot_dimension_numbers<[1], [0], [0], [1], [0, 0, 1, 1], [], []>} : vector<64x8xf32>, vector<8x32xf32>, vector<64x32xf32> -> vector<64x32xf32>
    %148 = arith.addf %102, %147 : vector<64x32xf32>
    %149 = vector.extract_strided_slice %3 {offsets = [3, 0, 0], sizes = [1, 32, 8], strides = [1, 1, 1]} : vector<4x32x8xf32> to vector<1x32x8xf32>
    %150 = vector.shape_cast %149 : vector<1x32x8xf32> to vector<32x8xf32>
    %cst_51 = arith.constant dense<0.000000e+00> : vector<64x8xf32>
    %151 = tpu.matmul %1, %150, %cst_51 {dimension_numbers = #tpu.dot_dimension_numbers<[1], [0], [0], [1], [0, 0, 1, 1], [], []>} : vector<64x32xf32>, vector<32x8xf32>, vector<64x8xf32> -> vector<64x8xf32>
    %152 = vector.extract_strided_slice %6 {offsets = [3, 0, 0], sizes = [1, 1, 8], strides = [1, 1, 1]} : vector<4x1x8xf32> to vector<1x1x8xf32>
    %153 = vector.shape_cast %152 : vector<1x1x8xf32> to vector<1x8xf32>
    %154 = vector.broadcast %153 : vector<1x8xf32> to vector<64x8xf32>
    %155 = arith.addf %151, %154 : vector<64x8xf32>
    %156 = vector.shape_cast %155 : vector<64x8xf32> to vector<4x16x8xf32>
    %157 = vector.extract_strided_slice %4 {offsets = [3, 0, 0], sizes = [1, 32, 8], strides = [1, 1, 1]} : vector<4x32x8xf32> to vector<1x32x8xf32>
    %158 = vector.shape_cast %157 : vector<1x32x8xf32> to vector<32x8xf32>
    %cst_52 = arith.constant dense<0.000000e+00> : vector<64x8xf32>
    %159 = tpu.matmul %1, %158, %cst_52 {dimension_numbers = #tpu.dot_dimension_numbers<[1], [0], [0], [1], [0, 0, 1, 1], [], []>} : vector<64x32xf32>, vector<32x8xf32>, vector<64x8xf32> -> vector<64x8xf32>
    %160 = vector.extract_strided_slice %7 {offsets = [3, 0, 0], sizes = [1, 1, 8], strides = [1, 1, 1]} : vector<4x1x8xf32> to vector<1x1x8xf32>
    %161 = vector.shape_cast %160 : vector<1x1x8xf32> to vector<1x8xf32>
    %162 = vector.broadcast %161 : vector<1x8xf32> to vector<64x8xf32>
    %163 = arith.addf %159, %162 : vector<64x8xf32>
    %164 = vector.shape_cast %163 : vector<64x8xf32> to vector<4x16x8xf32>
    %165 = vector.extract_strided_slice %5 {offsets = [3, 0, 0], sizes = [1, 32, 8], strides = [1, 1, 1]} : vector<4x32x8xf32> to vector<1x32x8xf32>
    %166 = vector.shape_cast %165 : vector<1x32x8xf32> to vector<32x8xf32>
    %cst_53 = arith.constant dense<0.000000e+00> : vector<64x8xf32>
    %167 = tpu.matmul %1, %166, %cst_53 {dimension_numbers = #tpu.dot_dimension_numbers<[1], [0], [0], [1], [0, 0, 1, 1], [], []>} : vector<64x32xf32>, vector<32x8xf32>, vector<64x8xf32> -> vector<64x8xf32>
    %168 = vector.extract_strided_slice %8 {offsets = [3, 0, 0], sizes = [1, 1, 8], strides = [1, 1, 1]} : vector<4x1x8xf32> to vector<1x1x8xf32>
    %169 = vector.shape_cast %168 : vector<1x1x8xf32> to vector<1x8xf32>
    %170 = vector.broadcast %169 : vector<1x8xf32> to vector<64x8xf32>
    %171 = arith.addf %167, %170 : vector<64x8xf32>
    %172 = vector.shape_cast %171 : vector<64x8xf32> to vector<4x16x8xf32>
    "tpu.trace_start"() <{level = 10 : i32, message = "bqd,bkd->bqk"}> : () -> ()
    %cst_54 = arith.constant dense<0.000000e+00> : vector<4x16x16xf32>
    %173 = tpu.matmul %156, %164, %cst_54 {dimension_numbers = #tpu.dot_dimension_numbers<[2], [2], [1], [1], [0, 0, 0, 1, 1, 1], [0], [0]>} : vector<4x16x8xf32>, vector<4x16x8xf32>, vector<4x16x16xf32> -> vector<4x16x16xf32>
    "tpu.trace_stop"() : () -> ()
    %174 = vector.shape_cast %173 : vector<4x16x16xf32> to vector<1x4x16x16xf32>
    %175 = vector.extract_strided_slice %2 {offsets = [0, 3, 0, 0], sizes = [4, 1, 16, 16], strides = [1, 1, 1, 1]} : vector<4x4x16x16xf32> to vector<4x1x16x16xf32>
    %176 = vector.shape_cast %175 : vector<4x1x16x16xf32> to vector<4x16x16xf32>
    %177 = vector.shape_cast %176 : vector<4x16x16xf32> to vector<1x4x16x16xf32>
    %178 = arith.addf %174, %177 : vector<1x4x16x16xf32>
    %cst_55 = arith.constant dense<0xFF800000> : vector<1x4x16xf32>
    %179 = vector.multi_reduction <maximumf>, %178, %cst_55 [3] : vector<1x4x16x16xf32> to vector<1x4x16xf32>
    %180 = vector.shape_cast %179 : vector<1x4x16xf32> to vector<1x4x16x1xf32>
    %181 = vector.broadcast %180 : vector<1x4x16x1xf32> to vector<1x4x16x16xf32>
    %182 = arith.subf %178, %181 : vector<1x4x16x16xf32>
    %183 = math.exp %182 : vector<1x4x16x16xf32>
    %cst_56 = arith.constant dense<0.000000e+00> : vector<1x4x16xf32>
    %184 = vector.multi_reduction <add>, %183, %cst_56 [3] : vector<1x4x16x16xf32> to vector<1x4x16xf32>
    %185 = vector.shape_cast %184 : vector<1x4x16xf32> to vector<1x4x16x1xf32>
    %186 = vector.broadcast %185 : vector<1x4x16x1xf32> to vector<1x4x16x16xf32>
    %187 = arith.divf %183, %186 : vector<1x4x16x16xf32>
    %188 = vector.shape_cast %187 : vector<1x4x16x16xf32> to vector<4x16x16xf32>
    "tpu.trace_start"() <{level = 10 : i32, message = "bqk,bkd->bqd"}> : () -> ()
    %cst_57 = arith.constant dense<0.000000e+00> : vector<4x16x8xf32>
    %189 = tpu.matmul %188, %172, %cst_57 {dimension_numbers = #tpu.dot_dimension_numbers<[2], [1], [1], [2], [0, 0, 0, 1, 1, 2], [0], [0]>} : vector<4x16x16xf32>, vector<4x16x8xf32>, vector<4x16x8xf32> -> vector<4x16x8xf32>
    "tpu.trace_stop"() : () -> ()
    %190 = vector.shape_cast %189 : vector<4x16x8xf32> to vector<64x8xf32>
    %191 = vector.extract_strided_slice %9 {offsets = [3, 0, 0], sizes = [1, 8, 32], strides = [1, 1, 1]} : vector<4x8x32xf32> to vector<1x8x32xf32>
    %192 = vector.shape_cast %191 : vector<1x8x32xf32> to vector<8x32xf32>
    %cst_58 = arith.constant dense<0.000000e+00> : vector<64x32xf32>
    %193 = tpu.matmul %190, %192, %cst_58 {dimension_numbers = #tpu.dot_dimension_numbers<[1], [0], [0], [1], [0, 0, 1, 1], [], []>} : vector<64x8xf32>, vector<8x32xf32>, vector<64x32xf32> -> vector<64x32xf32>
    %194 = arith.addf %148, %193 : vector<64x32xf32>
    %c0_59 = arith.constant 0 : index
    %c0_60 = arith.constant 0 : index
    %195 = vector.load %arg10[%c0_59, %c0_60] : memref<1x32xf32, #tpu.memory_space<vmem>>, vector<1x32xf32>
    %196 = vector.broadcast %195 : vector<1x32xf32> to vector<64x32xf32>
    %197 = arith.addf %194, %196 : vector<64x32xf32>
    %198 = vector.shape_cast %197 : vector<64x32xf32> to vector<4x16x32xf32>
    %c0_61 = arith.constant 0 : index
    %c0_62 = arith.constant 0 : index
    %c0_63 = arith.constant 0 : index
    %199 = vector.load %arg11[%c0_61, %c0_62, %c0_63] : memref<4x16x32xf32, #tpu.memory_space<vmem>>, vector<4x16x32xf32>
    tpu.vector_store %arg11[%c0_61, %c0_62, %c0_63], %198 {strides = array<i32>} : memref<4x16x32xf32, #tpu.memory_space<vmem>>, vector<4x16x32xf32>,
    return
  }
  func.func @transform_0(%arg0: i32) -> (i32, i32, i32) {
    %c0_i32 = arith.constant 0 : i32
    %c0_i32_0 = arith.constant 0 : i32
    %c0_i32_1 = arith.constant 0 : i32
    return %arg0, %c0_i32, %c0_i32_0 : i32, i32, i32
  }
  func.func @transform_1(%arg0: i32) -> (i32, i32, i32) {
    %c0_i32 = arith.constant 0 : i32
    %c0_i32_0 = arith.constant 0 : i32
    %c0_i32_1 = arith.constant 0 : i32
    %c0_i32_2 = arith.constant 0 : i32
    return %c0_i32, %c0_i32_0, %c0_i32_1 : i32, i32, i32
  }
  func.func @transform_2(%arg0: i32) -> (i32, i32, i32) {
    %c0_i32 = arith.constant 0 : i32
    %c0_i32_0 = arith.constant 0 : i32
    %c0_i32_1 = arith.constant 0 : i32
    %c0_i32_2 = arith.constant 0 : i32
    return %c0_i32, %c0_i32_0, %c0_i32_1 : i32, i32, i32
  }
  func.func @transform_3(%arg0: i32) -> (i32, i32, i32) {
    %c0_i32 = arith.constant 0 : i32
    %c0_i32_0 = arith.constant 0 : i32
    %c0_i32_1 = arith.constant 0 : i32
    %c0_i32_2 = arith.constant 0 : i32
    return %c0_i32, %c0_i32_0, %c0_i32_1 : i32, i32, i32
  }
  func.func @transform_4(%arg0: i32) -> (i32, i32, i32) {
    %c0_i32 = arith.constant 0 : i32
    %c0_i32_0 = arith.constant 0 : i32
    %c0_i32_1 = arith.constant 0 : i32
    %c0_i32_2 = arith.constant 0 : i32
    return %c0_i32, %c0_i32_0, %c0_i32_1 : i32, i32, i32
  }
  func.func @transform_5(%arg0: i32) -> (i32, i32, i32) {
    %c0_i32 = arith.constant 0 : i32
    %c0_i32_0 = arith.constant 0 : i32
    %c0_i32_1 = arith.constant 0 : i32
    %c0_i32_2 = arith.constant 0 : i32
    return %c0_i32, %c0_i32_0, %c0_i32_1 : i32, i32, i32
  }
  func.func @transform_6(%arg0: i32) -> (i32, i32, i32) {
    %c0_i32 = arith.constant 0 : i32
    %c0_i32_0 = arith.constant 0 : i32
    %c0_i32_1 = arith.constant 0 : i32
    %c0_i32_2 = arith.constant 0 : i32
    return %c0_i32, %c0_i32_0, %c0_i32_1 : i32, i32, i32
  }
  func.func @transform_7(%arg0: i32) -> (i32, i32, i32, i32) {
    %c0_i32 = arith.constant 0 : i32
    %c0_i32_0 = arith.constant 0 : i32
    %c0_i32_1 = arith.constant 0 : i32
    %c0_i32_2 = arith.constant 0 : i32
    %c0_i32_3 = arith.constant 0 : i32
    return %c0_i32, %c0_i32_0, %c0_i32_1, %c0_i32_2 : i32, i32, i32, i32
  }
  func.func @transform_8(%arg0: i32) -> (i32, i32, i32) {
    %c0_i32 = arith.constant 0 : i32
    %c0_i32_0 = arith.constant 0 : i32
    %c0_i32_1 = arith.constant 0 : i32
    %c0_i32_2 = arith.constant 0 : i32
    return %c0_i32, %c0_i32_0, %c0_i32_1 : i32, i32, i32
  }
  func.func @transform_9(%arg0: i32) -> (i32, i32) {
    %c0_i32 = arith.constant 0 : i32
    %c0_i32_0 = arith.constant 0 : i32
    %c0_i32_1 = arith.constant 0 : i32
    return %c0_i32, %c0_i32_0 : i32, i32
  }
  func.func @transform_10(%arg0: i32) -> (i32, i32, i32) {
    %c0_i32 = arith.constant 0 : i32
    %c0_i32_0 = arith.constant 0 : i32
    %c0_i32_1 = arith.constant 0 : i32
    return %arg0, %c0_i32, %c0_i32_0 : i32, i32, i32
  }
}

</mosaic_0001>

<llo_original>
// kernel: tpu_custom_call.1
$region0: #{tpu_custom_call.1}
  #allocation0 [shape = 'u32[]', space=smem, size = 0x4, offset = 0x4, fixed_abs, tag = 'smem constant byte address 0x4 - core index']
  #allocation1 [shape = 'u32[144,128]{1,0:T(1,128)}', space=vmem, size = 0x12000, scoped, tag = 'internal scratch']
  %s0 = inlined_call_operand.vmem [shape: f32[8,16,32], index: 0, kind: input, shape index: {}]
  %s1 = inlined_call_operand.vmem [shape: f32[4,32,8], index: 1, kind: input, shape index: {}]
  %s2 = inlined_call_operand.vmem [shape: f32[4,32,8], index: 2, kind: input, shape index: {}]
  %s3 = inlined_call_operand.vmem [shape: f32[4,32,8], index: 3, kind: input, shape index: {}]
  %s4 = inlined_call_operand.vmem [shape: f32[4,1,8], index: 4, kind: input, shape index: {}]
  %s5 = inlined_call_operand.vmem [shape: f32[4,1,8], index: 5, kind: input, shape index: {}]
  %s6 = inlined_call_operand.vmem [shape: f32[4,1,8], index: 6, kind: input, shape index: {}]
  %s7 = inlined_call_operand.vmem [shape: f32[4,4,16,16], index: 7, kind: input, shape index: {}]
  %s8 = inlined_call_operand.vmem [shape: f32[4,8,32], index: 8, kind: input, shape index: {}]
  %s9 = inlined_call_operand.vmem [shape: f32[1,32], index: 9, kind: input, shape index: {}]
  %s10 = inlined_call_operand.hbm [shape: f32[8,16,32], index: 10, kind: output, shape index: {}]
  %s11 = sld [smem:[#allocation0]]
  $region73: #{tpu_custom_call.1} parent=0
    _
  %s13 = ssub.s32 1, %s11
  %s14 = scalar_select 0, %s13, %s11
  $region1: #{tpu_custom_call.1} parent=0
    #allocation2 [shape = 'u8[65536]{0}', space=vmem, size = 0x10000, scoped, tag = 'output window, operand 0']
    #allocation3 [shape = 's32[2]{0}', space=sflag, size = 0x8, scoped, tag = 'scoped memory for tpu_custom_call.1']
    %15 = vsyncpa [#allocation3], 0
    %s16 = scalar_lea.sflag [#allocation3], 1
    %17 = vsyncpa %s16, 0
    loop: start=0, step=1, limit=4
    $region2: #{tpu_custom_call.1} parent=1 // loop_pre_header
      _
    $region3: #{tpu_custom_call.1} parent=1 // loop_header
      %s19 = sphi 0, %s23
      %p20 = scmp.ge.s32.totalorder %s19, 4
      %s29 = sphi 0, %s31
      %s32 = sphi 0, %s29
      %s33 = sphi 0, %s32
      %s49 = sphi 0, %s33
      %s53 = sphi 0, %s53
      %s55 = sphi 0, %s53
      %s56 = sphi 0, %s55
      %s70 = sphi 0, %s56
      %s74 = sphi 0, %s74
      %s76 = sphi 0, %s74
      %s77 = sphi 0, %s76
      %s91 = sphi 0, %s77
      %s95 = sphi 0, %s95
      %s97 = sphi 0, %s95
      %s98 = sphi 0, %s97
      %s112 = sphi 0, %s98
      %s116 = sphi 0, %s116
      %s118 = sphi 0, %s116
      %s119 = sphi 0, %s118
      %s133 = sphi 0, %s119
      %s137 = sphi 0, %s137
      %s139 = sphi 0, %s137
      %s140 = sphi 0, %s139
      %s154 = sphi 0, %s140
      %s158 = sphi 0, %s158
      %s160 = sphi 0, %s158
      %s161 = sphi 0, %s160
      %s175 = sphi 0, %s161
      %s179 = sphi 0, %s179
      %s181 = sphi 0, %s179
      %s182 = sphi 0, %s181
      %s196 = sphi 0, %s182
      %s200 = sphi 0, %s200
      %s202 = sphi 0, %s200
      %s203 = sphi 0, %s202
      %s217 = sphi 0, %s203
      %s221 = sphi 0, %s221
      %s223 = sphi 0, %s221
      %s224 = sphi 0, %s223
      %s238 = sphi 0, %s224
      %s244 = sphi 0, %s246
      %s247 = sphi 0, %s244
      %s248 = sphi 0, %s247
      %s264 = sphi 0, %s248
    $region4: #{tpu_custom_call.1} parent=1 // loop_header_branch
      %22 = sbr.rel (%p20) target = $region8
    $region5: #{tpu_custom_call.1} parent=1 // loop_body
      %s24 = ssub.s32 %s19, 1
      %s25 = ssub.s32 %s19, 2
      %s26 = sadd.s32 %s19, 1
      %s27 = ssub.s32 %s19, %s26
      %p28 = scmp.eq.s32.totalorder %s27, 0
      %s30 = sadd.s32 %s29, 1
      %s31 = scalar_select %p28, %s29, %s30
      %p34 = pneg %p28
      %p35 = scmp.eq.s32.totalorder %s19, 1
      %p36 = por %p34, %p35
      %p37 = scmp.ne.s32.totalorder %s29, %s32
      %p38 = scmp.eq.s32.totalorder %s19, 0
      %p39 = por %p37, %p38
      %p40 = scmp.ne.s32.totalorder %s29, %s32
      %p41 = scmp.eq.s32.totalorder %s24, 1
      %p42 = por %p40, %p41
      %p43 = scmp.ne.s32.totalorder %s32, %s33
      %p44 = scmp.eq.s32.totalorder %s24, 0
      %p45 = por %p43, %p44
      %p46 = scmp.ne.s32.totalorder %s32, %s33
      %p47 = scmp.eq.s32.totalorder %s25, 1
      %p48 = por %p46, %p47
      %p50 = scmp.ne.s32.totalorder %s33, %s49
      %p51 = scmp.eq.s32.totalorder %s25, 0
      %p52 = por %p50, %p51
      %s54 = sadd.s32 %s53, 1
      %p57 = scmp.eq.s32.totalorder %s19, 1
      %p58 = scmp.ne.s32.totalorder %s53, %s55
      %p59 = scmp.eq.s32.totalorder %s19, 0
      %p60 = por %p58, %p59
      %p61 = scmp.ne.s32.totalorder %s53, %s55
      %p62 = scmp.eq.s32.totalorder %s24, 1
      %p63 = por %p61, %p62
      %p64 = scmp.ne.s32.totalorder %s55, %s56
      %p65 = scmp.eq.s32.totalorder %s24, 0
      %p66 = por %p64, %p65
      %p67 = scmp.ne.s32.totalorder %s55, %s56
      %p68 = scmp.eq.s32.totalorder %s25, 1
      %p69 = por %p67, %p68
      %p71 = scmp.ne.s32.totalorder %s56, %s70
      %p72 = scmp.eq.s32.totalorder %s25, 0
      %p73 = por %p71, %p72
      %s75 = sadd.s32 %s74, 1
      %p78 = scmp.eq.s32.totalorder %s19, 1
      %p79 = scmp.ne.s32.totalorder %s74, %s76
      %p80 = scmp.eq.s32.totalorder %s19, 0
      %p81 = por %p79, %p80
      %p82 = scmp.ne.s32.totalorder %s74, %s76
      %p83 = scmp.eq.s32.totalorder %s24, 1
      %p84 = por %p82, %p83
      %p85 = scmp.ne.s32.totalorder %s76, %s77
      %p86 = scmp.eq.s32.totalorder %s24, 0
      %p87 = por %p85, %p86
      %p88 = scmp.ne.s32.totalorder %s76, %s77
      %p89 = scmp.eq.s32.totalorder %s25, 1
      %p90 = por %p88, %p89
      %p92 = scmp.ne.s32.totalorder %s77, %s91
      %p93 = scmp.eq.s32.totalorder %s25, 0
      %p94 = por %p92, %p93
      %s96 = sadd.s32 %s95, 1
      %p99 = scmp.eq.s32.totalorder %s19, 1
      %p100 = scmp.ne.s32.totalorder %s95, %s97
      %p101 = scmp.eq.s32.totalorder %s19, 0
      %p102 = por %p100, %p101
      %p103 = scmp.ne.s32.totalorder %s95, %s97
      %p104 = scmp.eq.s32.totalorder %s24, 1
      %p105 = por %p103, %p104
      %p106 = scmp.ne.s32.totalorder %s97, %s98
      %p107 = scmp.eq.s32.totalorder %s24, 0
      %p108 = por %p106, %p107
      %p109 = scmp.ne.s32.totalorder %s97, %s98
      %p110 = scmp.eq.s32.totalorder %s25, 1
      %p111 = por %p109, %p110
      %p113 = scmp.ne.s32.totalorder %s98, %s112
      %p114 = scmp.eq.s32.totalorder %s25, 0
      %p115 = por %p113, %p114
      %s117 = sadd.s32 %s116, 1
      %p120 = scmp.eq.s32.totalorder %s19, 1
      %p121 = scmp.ne.s32.totalorder %s116, %s118
      %p122 = scmp.eq.s32.totalorder %s19, 0
      %p123 = por %p121, %p122
      %p124 = scmp.ne.s32.totalorder %s116, %s118
      %p125 = scmp.eq.s32.totalorder %s24, 1
      %p126 = por %p124, %p125
      %p127 = scmp.ne.s32.totalorder %s118, %s119
      %p128 = scmp.eq.s32.totalorder %s24, 0
      %p129 = por %p127, %p128
      %p130 = scmp.ne.s32.totalorder %s118, %s119
      %p131 = scmp.eq.s32.totalorder %s25, 1
      %p132 = por %p130, %p131
      %p134 = scmp.ne.s32.totalorder %s119, %s133
      %p135 = scmp.eq.s32.totalorder %s25, 0
      %p136 = por %p134, %p135
      %s138 = sadd.s32 %s137, 1
      %p141 = scmp.eq.s32.totalorder %s19, 1
      %p142 = scmp.ne.s32.totalorder %s137, %s139
      %p143 = scmp.eq.s32.totalorder %s19, 0
      %p144 = por %p142, %p143
      %p145 = scmp.ne.s32.totalorder %s137, %s139
      %p146 = scmp.eq.s32.totalorder %s24, 1
      %p147 = por %p145, %p146
      %p148 = scmp.ne.s32.totalorder %s139, %s140
      %p149 = scmp.eq.s32.totalorder %s24, 0
      %p150 = por %p148, %p149
      %p151 = scmp.ne.s32.totalorder %s139, %s140
      %p152 = scmp.eq.s32.totalorder %s25, 1
      %p153 = por %p151, %p152
      %p155 = scmp.ne.s32.totalorder %s140, %s154
      %p156 = scmp.eq.s32.totalorder %s25, 0
      %p157 = por %p155, %p156
      %s159 = sadd.s32 %s158, 1
      %p162 = scmp.eq.s32.totalorder %s19, 1
      %p163 = scmp.ne.s32.totalorder %s158, %s160
      %p164 = scmp.eq.s32.totalorder %s19, 0
      %p165 = por %p163, %p164
      %p166 = scmp.ne.s32.totalorder %s158, %s160
      %p167 = scmp.eq.s32.totalorder %s24, 1
      %p168 = por %p166, %p167
      %p169 = scmp.ne.s32.totalorder %s160, %s161
      %p170 = scmp.eq.s32.totalorder %s24, 0
      %p171 = por %p169, %p170
      %p172 = scmp.ne.s32.totalorder %s160, %s161
      %p173 = scmp.eq.s32.totalorder %s25, 1
      %p174 = por %p172, %p173
      %p176 = scmp.ne.s32.totalorder %s161, %s175
      %p177 = scmp.eq.s32.totalorder %s25, 0
      %p178 = por %p176, %p177
      %s180 = sadd.s32 %s179, 1
      %p183 = scmp.eq.s32.totalorder %s19, 1
      %p184 = scmp.ne.s32.totalorder %s179, %s181
      %p185 = scmp.eq.s32.totalorder %s19, 0
      %p186 = por %p184, %p185
      %p187 = scmp.ne.s32.totalorder %s179, %s181
      %p188 = scmp.eq.s32.totalorder %s24, 1
      %p189 = por %p187, %p188
      %p190 = scmp.ne.s32.totalorder %s181, %s182
      %p191 = scmp.eq.s32.totalorder %s24, 0
      %p192 = por %p190, %p191
      %p193 = scmp.ne.s32.totalorder %s181, %s182
      %p194 = scmp.eq.s32.totalorder %s25, 1
      %p195 = por %p193, %p194
      %p197 = scmp.ne.s32.totalorder %s182, %s196
      %p198 = scmp.eq.s32.totalorder %s25, 0
      %p199 = por %p197, %p198
      %s201 = sadd.s32 %s200, 1
      %p204 = scmp.eq.s32.totalorder %s19, 1
      %p205 = scmp.ne.s32.totalorder %s200, %s202
      %p206 = scmp.eq.s32.totalorder %s19, 0
      %p207 = por %p205, %p206
      %p208 = scmp.ne.s32.totalorder %s200, %s202
      %p209 = scmp.eq.s32.totalorder %s24, 1
      %p210 = por %p208, %p209
      %p211 = scmp.ne.s32.totalorder %s202, %s203
      %p212 = scmp.eq.s32.totalorder %s24, 0
      %p213 = por %p211, %p212
      %p214 = scmp.ne.s32.totalorder %s202, %s203
      %p215 = scmp.eq.s32.totalorder %s25, 1
      %p216 = por %p214, %p215
      %p218 = scmp.ne.s32.totalorder %s203, %s217
      %p219 = scmp.eq.s32.totalorder %s25, 0
      %p220 = por %p218, %p219
      %s222 = sadd.s32 %s221, 1
      %p225 = scmp.eq.s32.totalorder %s19, 1
      %p226 = scmp.ne.s32.totalorder %s221, %s223
      %p227 = scmp.eq.s32.totalorder %s19, 0
      %p228 = por %p226, %p227
      %p229 = scmp.ne.s32.totalorder %s221, %s223
      %p230 = scmp.eq.s32.totalorder %s24, 1
      %p231 = por %p229, %p230
      %p232 = scmp.ne.s32.totalorder %s223, %s224
      %p233 = scmp.eq.s32.totalorder %s24, 0
      %p234 = por %p232, %p233
      %p235 = scmp.ne.s32.totalorder %s223, %s224
      %p236 = scmp.eq.s32.totalorder %s25, 1
      %p237 = por %p235, %p236
      %p239 = scmp.ne.s32.totalorder %s224, %s238
      %p240 = scmp.eq.s32.totalorder %s25, 0
      %p241 = por %p239, %p240
      %s242 = ssub.s32 %s19, %s26
      %p243 = scmp.eq.s32.totalorder %s242, 0
      %s245 = sadd.s32 %s244, 1
      %s246 = scalar_select %p243, %s244, %s245
      %p249 = pneg %p243
      %p250 = scmp.eq.s32.totalorder %s19, 1
      %p251 = por %p249, %p250
      %p252 = scmp.ne.s32.totalorder %s244, %s247
      %p253 = scmp.eq.s32.totalorder %s19, 0
      %p254 = por %p252, %p253
      %p255 = scmp.ne.s32.totalorder %s244, %s247
      %p256 = scmp.eq.s32.totalorder %s24, 1
      %p257 = por %p255, %p256
      %p258 = scmp.ne.s32.totalorder %s247, %s248
      %p259 = scmp.eq.s32.totalorder %s24, 0
      %p260 = por %p258, %p259
      %p261 = scmp.ne.s32.totalorder %s247, %s248
      %p262 = scmp.eq.s32.totalorder %s25, 1
      %p263 = por %p261, %p262
      %p265 = scmp.ne.s32.totalorder %s248, %s264
      %p266 = scmp.eq.s32.totalorder %s25, 0
      %p267 = por %p265, %p266
      %p268 = scmp.le.s32.totalorder 1, %s19
      %p269 = scmp.lt.s32.totalorder %s19, 3
      %p270 = pnand %p268, %p269
      %p271 = pneg %p270
      // Predicated region
      $region9: #{tpu_custom_call.1} parent=5 // pred_check
        _
      $region10: #{tpu_custom_call.1} parent=5 // pred_check_branch
        %273 = sbr.rel (%p270) target = $region12
      $region11: #{tpu_custom_call.1} parent=5 // pred_region
        %s274 = ssub.s32 %s19, 1
        // Predicated region
        $region13: #{tpu_custom_call.1} parent=11 // pred_check
          %p275 = pneg %p66
        $region14: #{tpu_custom_call.1} parent=11 // pred_check_branch
          %277 = sbr.rel (%p275) target = $region16
        $region15: #{tpu_custom_call.1} parent=11 // pred_region
          _
        $region16: #{tpu_custom_call.1} parent=11 // pred_fallthru
          _
        // Predicated region
        $region17: #{tpu_custom_call.1} parent=11 // pred_check
          %p278 = pneg %p87
        $region18: #{tpu_custom_call.1} parent=11 // pred_check_branch
          %280 = sbr.rel (%p278) target = $region20
        $region19: #{tpu_custom_call.1} parent=11 // pred_region
          _
        $region20: #{tpu_custom_call.1} parent=11 // pred_fallthru
          _
        // Predicated region
        $region21: #{tpu_custom_call.1} parent=11 // pred_check
          %p281 = pneg %p108
        $region22: #{tpu_custom_call.1} parent=11 // pred_check_branch
          %283 = sbr.rel (%p281) target = $region24
        $region23: #{tpu_custom_call.1} parent=11 // pred_region
          _
        $region24: #{tpu_custom_call.1} parent=11 // pred_fallthru
          _
        // Predicated region
        $region25: #{tpu_custom_call.1} parent=11 // pred_check
          %p284 = pneg %p129
        $region26: #{tpu_custom_call.1} parent=11 // pred_check_branch
          %286 = sbr.rel (%p284) target = $region28
        $region27: #{tpu_custom_call.1} parent=11 // pred_region
          _
        $region28: #{tpu_custom_call.1} parent=11 // pred_fallthru
          _
        // Predicated region
        $region29: #{tpu_custom_call.1} parent=11 // pred_check
          %p287 = pneg %p150
        $region30: #{tpu_custom_call.1} parent=11 // pred_check_branch
          %289 = sbr.rel (%p287) target = $region32
        $region31: #{tpu_custom_call.1} parent=11 // pred_region
          _
        $region32: #{tpu_custom_call.1} parent=11 // pred_fallthru
          _
        // Predicated region
        $region33: #{tpu_custom_call.1} parent=11 // pred_check
          %p290 = pneg %p171
        $region34: #{tpu_custom_call.1} parent=11 // pred_check_branch
          %292 = sbr.rel (%p290) target = $region36
        $region35: #{tpu_custom_call.1} parent=11 // pred_region
          _
        $region36: #{tpu_custom_call.1} parent=11 // pred_fallthru
          _
        // Predicated region
        $region37: #{tpu_custom_call.1} parent=11 // pred_check
          %p293 = pneg %p192
        $region38: #{tpu_custom_call.1} parent=11 // pred_check_branch
          %295 = sbr.rel (%p293) target = $region40
        $region39: #{tpu_custom_call.1} parent=11 // pred_region
          _
        $region40: #{tpu_custom_call.1} parent=11 // pred_fallthru
          _
        // Predicated region
        $region41: #{tpu_custom_call.1} parent=11 // pred_check
          %p296 = pneg %p213
        $region42: #{tpu_custom_call.1} parent=11 // pred_check_branch
          %298 = sbr.rel (%p296) target = $region44
        $region43: #{tpu_custom_call.1} parent=11 // pred_region
          _
        $region44: #{tpu_custom_call.1} parent=11 // pred_fallthru
          _
        // Predicated region
        $region45: #{tpu_custom_call.1} parent=11 // pred_check
          %p299 = pneg %p234
        $region46: #{tpu_custom_call.1} parent=11 // pred_check_branch
          %301 = sbr.rel (%p299) target = $region48
        $region47: #{tpu_custom_call.1} parent=11 // pred_region
          _
        $region48: #{tpu_custom_call.1} parent=11 // pred_fallthru
          _
      $region12: #{tpu_custom_call.1} parent=5 // pred_fallthru
        _
      %p302 = scmp.lt.s32.totalorder %s19, 2
      // Predicated region
      $region49: #{tpu_custom_call.1} parent=5 // pred_check
        %p303 = pneg %p302
      $region50: #{tpu_custom_call.1} parent=5 // pred_check_branch
        %305 = sbr.rel (%p303) target = $region52
      $region51: #{tpu_custom_call.1} parent=5 // pred_region
        // Predicated region
        $region53: #{tpu_custom_call.1} parent=51 // pred_check
          %p306 = pneg %p39
        $region54: #{tpu_custom_call.1} parent=51 // pred_check_branch
          %308 = sbr.rel (%p306) target = $region56
        $region55: #{tpu_custom_call.1} parent=51 // pred_region
          %s309 = smul.u32 4, %s19
          %p310 = scmp.lt.s32.totalorder %s309, 7
          %s311 = scalar_select %p310, %s309, 7
          %s312 = smul.addr %s311, 2
          %s313 = smul.addr %s312, 8
          %s314 = scalar_lea.vmem %s0, %s313
          %s315 = smul.u32 4, %s19
        $region56: #{tpu_custom_call.1} parent=51 // pred_fallthru
          _
      $region52: #{tpu_custom_call.1} parent=5 // pred_fallthru
        _
      %p316 = scmp.le.s32.totalorder 1, %s19
      %p317 = scmp.lt.s32.totalorder %s19, 3
      %p318 = pnand %p316, %p317
      %p319 = pneg %p318
      // Predicated region
      $region57: #{tpu_custom_call.1} parent=5 // pred_check
        _
      $region58: #{tpu_custom_call.1} parent=5 // pred_check_branch
        %321 = sbr.rel (%p318) target = $region60
      $region59: #{tpu_custom_call.1} parent=5 // pred_region
        %s322 = ssub.s32 %s19, 1
        %s323 = smul.u32 4, %s24
        %p324 = scmp.lt.s32.totalorder %s323, 7
        %s325 = scalar_select %p324, %s323, 7
        %s326 = smul.addr %s325, 2
        %s327 = smul.addr %s326, 8
        %s328 = scalar_lea.vmem %s0, %s327
        %p329 = pneg %p45
        %p330 = pneg %p42
        %p331 = pneg %p66
        %p332 = pneg %p63
        %p333 = pneg %p87
        %p334 = pneg %p84
        %p335 = pneg %p108
        %p336 = pneg %p105
        %p337 = pneg %p129
        %p338 = pneg %p126
        %p339 = pneg %p150
        %p340 = pneg %p147
        %p341 = pneg %p171
        %p342 = pneg %p168
        %p343 = pneg %p192
        %p344 = pneg %p189
        %p345 = pneg %p213
        %p346 = pneg %p210
        %p347 = pneg %p234
        %p348 = pneg %p231
        %p349 = pneg %p260
        %p350 = pneg %p257
        %s351 = sand.u32 %s247, 1
        %s352 = scalar_lea.sflag [#allocation3], %s351
        %s353 = sand.u32 %s247, 1
        %s354 = smul.addr %s353, 64
        %s355 = scalar_lea.vmem [#allocation2], %s354
        %s356 = smul.u32 4, %s24
        %p357 = scmp.lt.s32.totalorder %s356, 7
        %s358 = scalar_select %p357, %s356, 7
        %s359 = smul.addr %s358, 2
        %s360 = smul.addr %s359, 8
        %s361 = scalar_lea.vmem %s0, %s360
        %s362 = smul.u32 4, %s24
        %s363 = smul.u32 4, %s24
        %v364 = vld [vmem:[%s361] sm:$0xff]
        %v365 = vld [vmem:[%s361 + $0x8] sm:$0xff]
        %v366 = vld [vmem:[%s361 + $0x10] sm:$0xff]
        %v367 = vld [vmem:[%s361 + $0x18] sm:$0xff]
        %v368 = vld [vmem:[%s361 + $0x20] sm:$0xff]
        %v369 = vld [vmem:[%s361 + $0x28] sm:$0xff]
        %v370 = vld [vmem:[%s361 + $0x30] sm:$0xff]
        %v371 = vld [vmem:[%s361 + $0x38] sm:$0xff]
        %v372 = vld [vmem:[%s7] sm:$0xff]
        %v373 = vld [vmem:[%s7 + $0x8] sm:$0xff]
        %v374 = vld [vmem:[%s7 + $0x10] sm:$0xff]
        %v375 = vld [vmem:[%s7 + $0x18] sm:$0xff]
        %v376 = vld [vmem:[%s7 + $0x20] sm:$0xff]
        %v377 = vld [vmem:[%s7 + $0x28] sm:$0xff]
        %v378 = vld [vmem:[%s7 + $0x30] sm:$0xff]
        %v379 = vld [vmem:[%s7 + $0x38] sm:$0xff]
        %v380 = vld [vmem:[%s7 + $0x40] sm:$0xff]
        %v381 = vld [vmem:[%s7 + $0x48] sm:$0xff]
        %v382 = vld [vmem:[%s7 + $0x50] sm:$0xff]
        %v383 = vld [vmem:[%s7 + $0x58] sm:$0xff]
        %v384 = vld [vmem:[%s7 + $0x60] sm:$0xff]
        %v385 = vld [vmem:[%s7 + $0x68] sm:$0xff]
        %v386 = vld [vmem:[%s7 + $0x70] sm:$0xff]
        %v387 = vld [vmem:[%s7 + $0x78] sm:$0xff]
        %v388 = vld [vmem:[%s7 + $0x80] sm:$0xff]
        %v389 = vld [vmem:[%s7 + $0x88] sm:$0xff]
        %v390 = vld [vmem:[%s7 + $0x90] sm:$0xff]
        %v391 = vld [vmem:[%s7 + $0x98] sm:$0xff]
        %v392 = vld [vmem:[%s7 + $0xa0] sm:$0xff]
        %v393 = vld [vmem:[%s7 + $0xa8] sm:$0xff]
        %v394 = vld [vmem:[%s7 + $0xb0] sm:$0xff]
        %v395 = vld [vmem:[%s7 + $0xb8] sm:$0xff]
        %v396 = vld [vmem:[%s7 + $0xc0] sm:$0xff]
        %v397 = vld [vmem:[%s7 + $0xc8] sm:$0xff]
        %v398 = vld [vmem:[%s7 + $0xd0] sm:$0xff]
        %v399 = vld [vmem:[%s7 + $0xd8] sm:$0xff]
        %v400 = vld [vmem:[%s7 + $0xe0] sm:$0xff]
        %v401 = vld [vmem:[%s7 + $0xe8] sm:$0xff]
        %v402 = vld [vmem:[%s7 + $0xf0] sm:$0xff]
        %v403 = vld [vmem:[%s7 + $0xf8] sm:$0xff]
        %v404 = vld [vmem:[%s1] sm:$0xff]
        %v405 = vld [vmem:[%s1 + $0x8] sm:$0xff]
        %v406 = vld [vmem:[%s1 + $0x10] sm:$0xff]
        %v407 = vld [vmem:[%s1 + $0x18] sm:$0xff]
        %v408 = vld [vmem:[%s1 + $0x20] sm:$0xff]
        %v409 = vld [vmem:[%s1 + $0x28] sm:$0xff]
        %v410 = vld [vmem:[%s1 + $0x30] sm:$0xff]
        %v411 = vld [vmem:[%s1 + $0x38] sm:$0xff]
        %v412 = vld [vmem:[%s1 + $0x40] sm:$0xff]
        %v413 = vld [vmem:[%s1 + $0x48] sm:$0xff]
        %v414 = vld [vmem:[%s1 + $0x50] sm:$0xff]
        %v415 = vld [vmem:[%s1 + $0x58] sm:$0xff]
        %v416 = vld [vmem:[%s1 + $0x60] sm:$0xff]
        %v417 = vld [vmem:[%s1 + $0x68] sm:$0xff]
        %v418 = vld [vmem:[%s1 + $0x70] sm:$0xff]
        %v419 = vld [vmem:[%s1 + $0x78] sm:$0xff]
        %v420 = vld [vmem:[%s2] sm:$0xff]
        %v421 = vld [vmem:[%s2 + $0x8] sm:$0xff]
        %v422 = vld [vmem:[%s2 + $0x10] sm:$0xff]
        %v423 = vld [vmem:[%s2 + $0x18] sm:$0xff]
        %v424 = vld [vmem:[%s2 + $0x20] sm:$0xff]
        %v425 = vld [vmem:[%s2 + $0x28] sm:$0xff]
        %v426 = vld [vmem:[%s2 + $0x30] sm:$0xff]
        %v427 = vld [vmem:[%s2 + $0x38] sm:$0xff]
        %v428 = vld [vmem:[%s2 + $0x40] sm:$0xff]
        %v429 = vld [vmem:[%s2 + $0x48] sm:$0xff]
        %v430 = vld [vmem:[%s2 + $0x50] sm:$0xff]
        %v431 = vld [vmem:[%s2 + $0x58] sm:$0xff]
        %v432 = vld [vmem:[%s2 + $0x60] sm:$0xff]
        %v433 = vld [vmem:[%s2 + $0x68] sm:$0xff]
        %v434 = vld [vmem:[%s2 + $0x70] sm:$0xff]
        %v435 = vld [vmem:[%s2 + $0x78] sm:$0xff]
        %v436 = vld [vmem:[%s3] sm:$0xff]
        %v437 = vld [vmem:[%s3 + $0x8] sm:$0xff]
        %v438 = vld [vmem:[%s3 + $0x10] sm:$0xff]
        %v439 = vld [vmem:[%s3 + $0x18] sm:$0xff]
        %v440 = vld [vmem:[%s3 + $0x20] sm:$0xff]
        %v441 = vld [vmem:[%s3 + $0x28] sm:$0xff]
        %v442 = vld [vmem:[%s3 + $0x30] sm:$0xff]
        %v443 = vld [vmem:[%s3 + $0x38] sm:$0xff]
        %v444 = vld [vmem:[%s3 + $0x40] sm:$0xff]
        %v445 = vld [vmem:[%s3 + $0x48] sm:$0xff]
        %v446 = vld [vmem:[%s3 + $0x50] sm:$0xff]
        %v447 = vld [vmem:[%s3 + $0x58] sm:$0xff]
        %v448 = vld [vmem:[%s3 + $0x60] sm:$0xff]
        %v449 = vld [vmem:[%s3 + $0x68] sm:$0xff]
        %v450 = vld [vmem:[%s3 + $0x70] sm:$0xff]
        %v451 = vld [vmem:[%s3 + $0x78] sm:$0xff]
        %v452 = vld [vmem:[%s4] sm:$0x1]
        %v453 = vld [vmem:[%s4 + $0x1] sm:$0x1]
        %v454 = vld [vmem:[%s4 + $0x2] sm:$0x1]
        %v455 = vld [vmem:[%s4 + $0x3] sm:$0x1]
        %v456 = vld [vmem:[%s5] sm:$0x1]
        %v457 = vld [vmem:[%s5 + $0x1] sm:$0x1]
        %v458 = vld [vmem:[%s5 + $0x2] sm:$0x1]
        %v459 = vld [vmem:[%s5 + $0x3] sm:$0x1]
        %v460 = vld [vmem:[%s6] sm:$0x1]
        %v461 = vld [vmem:[%s6 + $0x1] sm:$0x1]
        %v462 = vld [vmem:[%s6 + $0x2] sm:$0x1]
        %v463 = vld [vmem:[%s6 + $0x3] sm:$0x1]
        %v464 = vld [vmem:[%s8] sm:$0xff]
        %v465 = vld [vmem:[%s8 + $0x8] sm:$0xff]
        %v466 = vld [vmem:[%s8 + $0x10] sm:$0xff]
        %v467 = vld [vmem:[%s8 + $0x18] sm:$0xff]
        %v469 = vlaneseq
        %v470 = vshrl.u32 %v469, 7
        %v471 = vsub.s32 0, %v470
        %v472 = vrot.slane %v452, %v471
        %vm474 = vcmask 261120
        %v476 = vsel %vm474, %v364, 0
        %v479 = vsel %vm474, %v365, 0
        %v482 = vsel %vm474, %v366, 0
        %v485 = vsel %vm474, %v367, 0
        %v488 = vsel %vm474, %v368, 0
        %v491 = vsel %vm474, %v369, 0
        %v494 = vsel %vm474, %v370, 0
        %v497 = vsel %vm474, %v371, 0
        %499 = vmatprep.subr.mxu0 0.0
        %500 = vmatpush1.msra.mxu0 %v404
        %501 = vmatprep.subr.mxu0 0.0
        %502 = vmatpush1.msra.mxu0 %v405
        %503 = vmatprep.subr.mxu0 0.0
        %504 = vmatpush1.msra.mxu0 %v406
        %505 = vmatprep.subr.mxu0 0.0
        %506 = vmatpush1.msra.mxu0 %v407
        %507 = vmatprep.subr.mxu0 0.0
        %508 = vmatpush1.msra.mxu0 0.0
        %509 = vmatprep.subr.mxu0 0.0
        %510 = vmatpush1.msra.mxu0 0.0
        %511 = vmatprep.subr.mxu0 0.0
        %512 = vmatpush1.msra.mxu0 0.0
        %513 = vmatprep.subr.mxu0 0.0
        %514 = vmatpush1.msra.mxu0 0.0
        %515 = vmatprep.subr.mxu0 0.0
        %516 = vmatpush1.msra.mxu0 0.0
        %517 = vmatprep.subr.mxu0 0.0
        %518 = vmatpush1.msra.mxu0 0.0
        %519 = vmatprep.subr.mxu0 0.0
        %520 = vmatpush1.msra.mxu0 0.0
        %521 = vmatprep.subr.mxu0 0.0
        %522 = vmatpush1.msra.mxu0 0.0
        %523 = vmatprep.subr.mxu0 0.0
        %524 = vmatpush1.msra.mxu0 0.0
        %525 = vmatprep.subr.mxu0 0.0
        %526 = vmatpush1.msra.mxu0 0.0
        %527 = vmatprep.subr.mxu0 0.0
        %528 = vmatpush1.msra.mxu0 0.0
        %529 = vmatprep.subr.mxu0 0.0
        %530 = vmatpush1.msra.mxu0 0.0
        %531 = vmatprep.subr.mxu0 0.0
        %532 = vmatpush1.msra.mxu0 0.0
        %533 = vmatprep.subr.mxu0 0.0
        %534 = vmatpush1.msra.mxu0 0.0
        %535 = vmatprep.subr.mxu0 0.0
        %536 = vmatpush1.msra.mxu0 0.0
        %537 = vmatprep.subr.mxu0 0.0
        %538 = vmatpush1.msra.mxu0 0.0
        %539 = vmatprep.subr.mxu0 0.0
        %540 = vmatpush1.msra.mxu0 0.0
        %541 = vmatprep.subr.mxu0 0.0
        %542 = vmatpush1.msra.mxu0 0.0
        %543 = vmatprep.subr.mxu0 0.0
        %544 = vmatpush1.msra.mxu0 0.0
        %545 = vmatprep.subr.mxu0 0.0
        %546 = vmatpush1.msra.mxu0 0.0
        %547 = vmatprep.subr.mxu0 0.0
        %548 = vmatpush1.msra.mxu0 0.0
        %549 = vmatprep.subr.mxu0 0.0
        %550 = vmatpush1.msra.mxu0 0.0
        %551 = vmatprep.subr.mxu0 0.0
        %552 = vmatpush1.msra.mxu0 0.0
        %553 = vmatprep.subr.mxu0 0.0
        %554 = vmatpush1.msra.mxu0 0.0
        %555 = vmatprep.subr.mxu0 0.0
        %556 = vmatpush1.msra.mxu0 0.0
        %557 = vmatprep.subr.mxu0 0.0
        %558 = vmatpush1.msra.mxu0 0.0
        %559 = vmatprep.subr.mxu0 0.0
        %560 = vmatpush1.msra.mxu0 0.0
        %561 = vmatprep.subr.mxu0 0.0
        %562 = vmatpush1.msra.mxu0 0.0
        %563 = vmatprep.mubr.f32.mxu0 0.0
        %564 = vmatmul.mubr.f32.gmra.mrb[0].mxu0 %v476
        %v565 = vpop.f32.mrb[0].mxu0
        %v566 = vadd.f32 %v472, %v565
        %v567 = vpop.f32.mrb[0].mxu0
        %568 = vmatprep.mubr.f32.mxu0 0.0
        %569 = vmatmul.mubr.f32.gmra.mrb[0].mxu0 %v479
        %v570 = vpop.f32.mrb[0].mxu0
        %v571 = vadd.f32 %v472, %v570
        %v572 = vpop.f32.mrb[0].mxu0
        %573 = vmatprep.mubr.f32.mxu0 0.0
        %574 = vmatmul.mubr.f32.gmra.mrb[0].mxu0 %v482
        %v575 = vpop.f32.mrb[0].mxu0
        %v576 = vadd.f32 %v472, %v575
        %v577 = vpop.f32.mrb[0].mxu0
        %578 = vmatprep.mubr.f32.mxu0 0.0
        %579 = vmatmul.mubr.f32.gmra.mrb[0].mxu0 %v485
        %v580 = vpop.f32.mrb[0].mxu0
        %v581 = vadd.f32 %v472, %v580
        %v582 = vpop.f32.mrb[0].mxu0
        %583 = vmatprep.mubr.f32.mxu0 0.0
        %584 = vmatmul.mubr.f32.gmra.mrb[0].mxu0 %v488
        %v585 = vpop.f32.mrb[0].mxu0
        %v586 = vadd.f32 %v472, %v585
        %v587 = vpop.f32.mrb[0].mxu0
        %588 = vmatprep.mubr.f32.mxu0 0.0
        %589 = vmatmul.mubr.f32.gmra.mrb[0].mxu0 %v491
        %v590 = vpop.f32.mrb[0].mxu0
        %v591 = vadd.f32 %v472, %v590
        %v592 = vpop.f32.mrb[0].mxu0
        %593 = vmatprep.mubr.f32.mxu0 0.0
        %594 = vmatmul.mubr.f32.gmra.mrb[0].mxu0 %v494
        %v595 = vpop.f32.mrb[0].mxu0
        %v596 = vadd.f32 %v472, %v595
        %v597 = vpop.f32.mrb[0].mxu0
        %598 = vmatprep.mubr.f32.mxu0 0.0
        %599 = vmatmul.mubr.f32.gmra.mrb[0].mxu0 %v497
        %v600 = vpop.f32.mrb[0].mxu0
        %v601 = vadd.f32 %v472, %v600
        %v602 = vpop.f32.mrb[0].mxu0
        %603 = vdwg.mxu0
        %v605 = vlaneseq
        %v606 = vshrl.u32 %v605, 7
        %v607 = vsub.s32 0, %v606
        %v608 = vrot.slane %v456, %v607
        %610 = vmatprep.subr.mxu0 0.0
        %611 = vmatpush1.msra.mxu0 %v420
        %612 = vmatprep.subr.mxu0 0.0
        %613 = vmatpush1.msra.mxu0 %v421
        %614 = vmatprep.subr.mxu0 0.0
        %615 = vmatpush1.msra.mxu0 %v422
        %616 = vmatprep.subr.mxu0 0.0
        %617 = vmatpush1.msra.mxu0 %v423
        %618 = vmatprep.subr.mxu0 0.0
        %619 = vmatpush1.msra.mxu0 0.0
        %620 = vmatprep.subr.mxu0 0.0
        %621 = vmatpush1.msra.mxu0 0.0
        %622 = vmatprep.subr.mxu0 0.0
        %623 = vmatpush1.msra.mxu0 0.0
        %624 = vmatprep.subr.mxu0 0.0
        %625 = vmatpush1.msra.mxu0 0.0
        %626 = vmatprep.subr.mxu0 0.0
        %627 = vmatpush1.msra.mxu0 0.0
        %628 = vmatprep.subr.mxu0 0.0
        %629 = vmatpush1.msra.mxu0 0.0
        %630 = vmatprep.subr.mxu0 0.0
        %631 = vmatpush1.msra.mxu0 0.0
        %632 = vmatprep.subr.mxu0 0.0
        %633 = vmatpush1.msra.mxu0 0.0
        %634 = vmatprep.subr.mxu0 0.0
        %635 = vmatpush1.msra.mxu0 0.0
        %636 = vmatprep.subr.mxu0 0.0
        %637 = vmatpush1.msra.mxu0 0.0
        %638 = vmatprep.subr.mxu0 0.0
        %639 = vmatpush1.msra.mxu0 0.0
        %640 = vmatprep.subr.mxu0 0.0
        %641 = vmatpush1.msra.mxu0 0.0
        %642 = vmatprep.subr.mxu0 0.0
        %643 = vmatpush1.msra.mxu0 0.0
        %644 = vmatprep.subr.mxu0 0.0
        %645 = vmatpush1.msra.mxu0 0.0
        %646 = vmatprep.subr.mxu0 0.0
        %647 = vmatpush1.msra.mxu0 0.0
        %648 = vmatprep.subr.mxu0 0.0
        %649 = vmatpush1.msra.mxu0 0.0
        %650 = vmatprep.subr.mxu0 0.0
        %651 = vmatpush1.msra.mxu0 0.0
        %652 = vmatprep.subr.mxu0 0.0
        %653 = vmatpush1.msra.mxu0 0.0
        %654 = vmatprep.subr.mxu0 0.0
        %655 = vmatpush1.msra.mxu0 0.0
        %656 = vmatprep.subr.mxu0 0.0
        %657 = vmatpush1.msra.mxu0 0.0
        %658 = vmatprep.subr.mxu0 0.0
        %659 = vmatpush1.msra.mxu0 0.0
        %660 = vmatprep.subr.mxu0 0.0
        %661 = vmatpush1.msra.mxu0 0.0
        %662 = vmatprep.subr.mxu0 0.0
        %663 = vmatpush1.msra.mxu0 0.0
        %664 = vmatprep.subr.mxu0 0.0
        %665 = vmatpush1.msra.mxu0 0.0
        %666 = vmatprep.subr.mxu0 0.0
        %667 = vmatpush1.msra.mxu0 0.0
        %668 = vmatprep.subr.mxu0 0.0
        %669 = vmatpush1.msra.mxu0 0.0
        %670 = vmatprep.subr.mxu0 0.0
        %671 = vmatpush1.msra.mxu0 0.0
        %672 = vmatprep.subr.mxu0 0.0
        %673 = vmatpush1.msra.mxu0 0.0
        %674 = vmatprep.mubr.f32.mxu0 0.0
        %675 = vmatmul.mubr.f32.gmra.mrb[0].mxu0 %v476
        %v676 = vpop.f32.mrb[0].mxu0
        %v677 = vadd.f32 %v608, %v676
        %v678 = vpop.f32.mrb[0].mxu0
        %679 = vmatprep.mubr.f32.mxu0 0.0
        %680 = vmatmul.mubr.f32.gmra.mrb[0].mxu0 %v479
        %v681 = vpop.f32.mrb[0].mxu0
        %v682 = vadd.f32 %v608, %v681
        %v683 = vpop.f32.mrb[0].mxu0
        %684 = vmatprep.mubr.f32.mxu0 0.0
        %685 = vmatmul.mubr.f32.gmra.mrb[0].mxu0 %v482
        %v686 = vpop.f32.mrb[0].mxu0
        %v687 = vadd.f32 %v608, %v686
        %v688 = vpop.f32.mrb[0].mxu0
        %689 = vmatprep.mubr.f32.mxu0 0.0
        %690 = vmatmul.mubr.f32.gmra.mrb[0].mxu0 %v485
        %v691 = vpop.f32.mrb[0].mxu0
        %v692 = vadd.f32 %v608, %v691
        %v693 = vpop.f32.mrb[0].mxu0
        %694 = vmatprep.mubr.f32.mxu0 0.0
        %695 = vmatmul.mubr.f32.gmra.mrb[0].mxu0 %v488
        %v696 = vpop.f32.mrb[0].mxu0
        %v697 = vadd.f32 %v608, %v696
        %v698 = vpop.f32.mrb[0].mxu0
        %699 = vmatprep.mubr.f32.mxu0 0.0
        %700 = vmatmul.mubr.f32.gmra.mrb[0].mxu0 %v491
        %v701 = vpop.f32.mrb[0].mxu0
        %v702 = vadd.f32 %v608, %v701
        %v703 = vpop.f32.mrb[0].mxu0
        %704 = vmatprep.mubr.f32.mxu0 0.0
        %705 = vmatmul.mubr.f32.gmra.mrb[0].mxu0 %v494
        %v706 = vpop.f32.mrb[0].mxu0
        %v707 = vadd.f32 %v608, %v706
        %v708 = vpop.f32.mrb[0].mxu0
        %709 = vmatprep.mubr.f32.mxu0 0.0
        %710 = vmatmul.mubr.f32.gmra.mrb[0].mxu0 %v497
        %v711 = vpop.f32.mrb[0].mxu0
        %v712 = vadd.f32 %v608, %v711
        %v713 = vpop.f32.mrb[0].mxu0
        %714 = vdwg.mxu0
        %v716 = vlaneseq
        %v717 = vshrl.u32 %v716, 7
        %v718 = vsub.s32 0, %v717
        %v719 = vrot.slane %v460, %v718
        %721 = vmatprep.subr.mxu0 0.0
        %722 = vmatpush1.msra.mxu0 %v436
        %723 = vmatprep.subr.mxu0 0.0
        %724 = vmatpush1.msra.mxu0 %v437
        %725 = vmatprep.subr.mxu0 0.0
        %726 = vmatpush1.msra.mxu0 %v438
        %727 = vmatprep.subr.mxu0 0.0
        %728 = vmatpush1.msra.mxu0 %v439
        %729 = vmatprep.subr.mxu0 0.0
        %730 = vmatpush1.msra.mxu0 0.0
        %731 = vmatprep.subr.mxu0 0.0
        %732 = vmatpush1.msra.mxu0 0.0
        %733 = vmatprep.subr.mxu0 0.0
        %734 = vmatpush1.msra.mxu0 0.0
        %735 = vmatprep.subr.mxu0 0.0
        %736 = vmatpush1.msra.mxu0 0.0
        %737 = vmatprep.subr.mxu0 0.0
        %738 = vmatpush1.msra.mxu0 0.0
        %739 = vmatprep.subr.mxu0 0.0
        %740 = vmatpush1.msra.mxu0 0.0
        %741 = vmatprep.subr.mxu0 0.0
        %742 = vmatpush1.msra.mxu0 0.0
        %743 = vmatprep.subr.mxu0 0.0
        %744 = vmatpush1.msra.mxu0 0.0
        %745 = vmatprep.subr.mxu0 0.0
        %746 = vmatpush1.msra.mxu0 0.0
        %747 = vmatprep.subr.mxu0 0.0
        %748 = vmatpush1.msra.mxu0 0.0
        %749 = vmatprep.subr.mxu0 0.0
        %750 = vmatpush1.msra.mxu0 0.0
        %751 = vmatprep.subr.mxu0 0.0
        %752 = vmatpush1.msra.mxu0 0.0
        %753 = vmatprep.subr.mxu0 0.0
        %754 = vmatpush1.msra.mxu0 0.0
        %755 = vmatprep.subr.mxu0 0.0
        %756 = vmatpush1.msra.mxu0 0.0
        %757 = vmatprep.subr.mxu0 0.0
        %758 = vmatpush1.msra.mxu0 0.0
        %759 = vmatprep.subr.mxu0 0.0
        %760 = vmatpush1.msra.mxu0 0.0
        %761 = vmatprep.subr.mxu0 0.0
        %762 = vmatpush1.msra.mxu0 0.0
        %763 = vmatprep.subr.mxu0 0.0
        %764 = vmatpush1.msra.mxu0 0.0
        %765 = vmatprep.subr.mxu0 0.0
        %766 = vmatpush1.msra.mxu0 0.0
        %767 = vmatprep.subr.mxu0 0.0
        %768 = vmatpush1.msra.mxu0 0.0
        %769 = vmatprep.subr.mxu0 0.0
        %770 = vmatpush1.msra.mxu0 0.0
        %771 = vmatprep.subr.mxu0 0.0
        %772 = vmatpush1.msra.mxu0 0.0
        %773 = vmatprep.subr.mxu0 0.0
        %774 = vmatpush1.msra.mxu0 0.0
        %775 = vmatprep.subr.mxu0 0.0
        %776 = vmatpush1.msra.mxu0 0.0
        %777 = vmatprep.subr.mxu0 0.0
        %778 = vmatpush1.msra.mxu0 0.0
        %779 = vmatprep.subr.mxu0 0.0
        %780 = vmatpush1.msra.mxu0 0.0
        %781 = vmatprep.subr.mxu0 0.0
        %782 = vmatpush1.msra.mxu0 0.0
        %783 = vmatprep.subr.mxu0 0.0
        %784 = vmatpush1.msra.mxu0 0.0
        %785 = vmatprep.mubr.f32.mxu0 0.0
        %786 = vmatmul.mubr.f32.gmra.mrb[0].mxu0 %v476
        %v787 = vpop.f32.mrb[0].mxu0
        %v788 = vadd.f32 %v719, %v787
        %v789 = vpop.f32.mrb[0].mxu0
        %790 = vmatprep.mubr.f32.mxu0 0.0
        %791 = vmatmul.mubr.f32.gmra.mrb[0].mxu0 %v479
        %v792 = vpop.f32.mrb[0].mxu0
        %v793 = vadd.f32 %v719, %v792
        %v794 = vpop.f32.mrb[0].mxu0
        %795 = vmatprep.mubr.f32.mxu0 0.0
        %796 = vmatmul.mubr.f32.gmra.mrb[0].mxu0 %v482
        %v797 = vpop.f32.mrb[0].mxu0
        %v798 = vadd.f32 %v719, %v797
        %v799 = vpop.f32.mrb[0].mxu0
        %800 = vmatprep.mubr.f32.mxu0 0.0
        %801 = vmatmul.mubr.f32.gmra.mrb[0].mxu0 %v485
        %v802 = vpop.f32.mrb[0].mxu0
        %v803 = vadd.f32 %v719, %v802
        %v804 = vpop.f32.mrb[0].mxu0
        %805 = vmatprep.mubr.f32.mxu0 0.0
        %806 = vmatmul.mubr.f32.gmra.mrb[0].mxu0 %v488
        %v807 = vpop.f32.mrb[0].mxu0
        %v808 = vadd.f32 %v719, %v807
        %v809 = vpop.f32.mrb[0].mxu0
        %810 = vmatprep.mubr.f32.mxu0 0.0
        %811 = vmatmul.mubr.f32.gmra.mrb[0].mxu0 %v491
        %v812 = vpop.f32.mrb[0].mxu0
        %v813 = vadd.f32 %v719, %v812
        %v814 = vpop.f32.mrb[0].mxu0
        %815 = vmatprep.mubr.f32.mxu0 0.0
        %816 = vmatmul.mubr.f32.gmra.mrb[0].mxu0 %v494
        %v817 = vpop.f32.mrb[0].mxu0
        %v818 = vadd.f32 %v719, %v817
        %v819 = vpop.f32.mrb[0].mxu0
        %820 = vmatprep.mubr.f32.mxu0 0.0
        %821 = vmatmul.mubr.f32.gmra.mrb[0].mxu0 %v497
        %v822 = vpop.f32.mrb[0].mxu0
        %v823 = vadd.f32 %v719, %v822
        %v824 = vpop.f32.mrb[0].mxu0
        %825 = vdwg.mxu0
        %vm826 = vcmask 64512
        %v828 = vsel %vm826, %v566, 0
        %v831 = vsel %vm826, %v571, 0
        %v834 = vsel %vm826, %v677, 0
        %v837 = vsel %vm826, %v682, 0
        %839 = vmatprep.subr.mxu0 0.0
        %840 = vmatpush1.xpose.msra.mxu0 %v834
        %841 = vmatprep.subr.mxu0 0.0
        %842 = vmatpush1.xpose.msra.mxu0 %v837
        %843 = vmatprep.subr.mxu0 0.0
        %844 = vmatpush1.xpose.msra.mxu0 0.0
        %845 = vmatprep.subr.mxu0 0.0
        %846 = vmatpush1.xpose.msra.mxu0 0.0
        %847 = vmatprep.subr.mxu0 0.0
        %848 = vmatpush1.xpose.msra.mxu0 0.0
        %849 = vmatprep.subr.mxu0 0.0
        %850 = vmatpush1.xpose.msra.mxu0 0.0
        %851 = vmatprep.subr.mxu0 0.0
        %852 = vmatpush1.xpose.msra.mxu0 0.0
        %853 = vmatprep.subr.mxu0 0.0
        %854 = vmatpush1.xpose.msra.mxu0 0.0
        %855 = vmatprep.subr.mxu0 0.0
        %856 = vmatpush1.xpose.msra.mxu0 0.0
        %857 = vmatprep.subr.mxu0 0.0
        %858 = vmatpush1.xpose.msra.mxu0 0.0
        %859 = vmatprep.subr.mxu0 0.0
        %860 = vmatpush1.xpose.msra.mxu0 0.0
        %861 = vmatprep.subr.mxu0 0.0
        %862 = vmatpush1.xpose.msra.mxu0 0.0
        %863 = vmatprep.subr.mxu0 0.0
        %864 = vmatpush1.xpose.msra.mxu0 0.0
        %865 = vmatprep.subr.mxu0 0.0
        %866 = vmatpush1.xpose.msra.mxu0 0.0
        %867 = vmatprep.subr.mxu0 0.0
        %868 = vmatpush1.xpose.msra.mxu0 0.0
        %869 = vmatprep.subr.mxu0 0.0
        %870 = vmatpush1.xpose.msra.mxu0 0.0
        %871 = vmatprep.subr.mxu0 0.0
        %872 = vmatpush1.xpose.msra.mxu0 0.0
        %873 = vmatprep.subr.mxu0 0.0
        %874 = vmatpush1.xpose.msra.mxu0 0.0
        %875 = vmatprep.subr.mxu0 0.0
        %876 = vmatpush1.xpose.msra.mxu0 0.0
        %877 = vmatprep.subr.mxu0 0.0
        %878 = vmatpush1.xpose.msra.mxu0 0.0
        %879 = vmatprep.subr.mxu0 0.0
        %880 = vmatpush1.xpose.msra.mxu0 0.0
        %881 = vmatprep.subr.mxu0 0.0
        %882 = vmatpush1.xpose.msra.mxu0 0.0
        %883 = vmatprep.subr.mxu0 0.0
        %884 = vmatpush1.xpose.msra.mxu0 0.0
        %885 = vmatprep.subr.mxu0 0.0
        %886 = vmatpush1.xpose.msra.mxu0 0.0
        %887 = vmatprep.subr.mxu0 0.0
        %888 = vmatpush1.xpose.msra.mxu0 0.0
        %889 = vmatprep.subr.mxu0 0.0
        %890 = vmatpush1.xpose.msra.mxu0 0.0
        %891 = vmatprep.subr.mxu0 0.0
        %892 = vmatpush1.xpose.msra.mxu0 0.0
        %893 = vmatprep.subr.mxu0 0.0
        %894 = vmatpush1.xpose.msra.mxu0 0.0
        %895 = vmatprep.subr.mxu0 0.0
        %896 = vmatpush1.xpose.msra.mxu0 0.0
        %897 = vmatprep.subr.mxu0 0.0
        %898 = vmatpush1.xpose.msra.mxu0 0.0
        %899 = vmatprep.subr.mxu0 0.0
        %900 = vmatpush1.xpose.msra.mxu0 0.0
        %901 = vmatprep.subr.mxu0 0.0
        %902 = vmatpush1.xpose.msra.mxu0 0.0
        %903 = vmatprep.mubr.f32.mxu0 0.0
        %904 = vmatmul.mubr.f32.gmra.mrb[0].mxu0 %v828
        %v905 = vpop.f32.mrb[0].mxu0
        %v906 = vadd.f32 0.0, %v905
        %v907 = vpop.f32.mrb[0].mxu0
        %908 = vmatprep.mubr.f32.mxu0 0.0
        %909 = vmatmul.mubr.f32.gmra.mrb[0].mxu0 %v831
        %v910 = vpop.f32.mrb[0].mxu0
        %v911 = vadd.f32 0.0, %v910
        %v912 = vpop.f32.mrb[0].mxu0
        %913 = vdwg.mxu0
        %v915 = vsel %vm826, %v576, 0
        %v918 = vsel %vm826, %v581, 0
        %v921 = vsel %vm826, %v687, 0
        %v924 = vsel %vm826, %v692, 0
        %926 = vmatprep.subr.mxu0 0.0
        %927 = vmatpush1.xpose.msra.mxu0 %v921
        %928 = vmatprep.subr.mxu0 0.0
        %929 = vmatpush1.xpose.msra.mxu0 %v924
        %930 = vmatprep.subr.mxu0 0.0
        %931 = vmatpush1.xpose.msra.mxu0 0.0
        %932 = vmatprep.subr.mxu0 0.0
        %933 = vmatpush1.xpose.msra.mxu0 0.0
        %934 = vmatprep.subr.mxu0 0.0
        %935 = vmatpush1.xpose.msra.mxu0 0.0
        %936 = vmatprep.subr.mxu0 0.0
        %937 = vmatpush1.xpose.msra.mxu0 0.0
        %938 = vmatprep.subr.mxu0 0.0
        %939 = vmatpush1.xpose.msra.mxu0 0.0
        %940 = vmatprep.subr.mxu0 0.0
        %941 = vmatpush1.xpose.msra.mxu0 0.0
        %942 = vmatprep.subr.mxu0 0.0
        %943 = vmatpush1.xpose.msra.mxu0 0.0
        %944 = vmatprep.subr.mxu0 0.0
        %945 = vmatpush1.xpose.msra.mxu0 0.0
        %946 = vmatprep.subr.mxu0 0.0
        %947 = vmatpush1.xpose.msra.mxu0 0.0
        %948 = vmatprep.subr.mxu0 0.0
        %949 = vmatpush1.xpose.msra.mxu0 0.0
        %950 = vmatprep.subr.mxu0 0.0
        %951 = vmatpush1.xpose.msra.mxu0 0.0
        %952 = vmatprep.subr.mxu0 0.0
        %953 = vmatpush1.xpose.msra.mxu0 0.0
        %954 = vmatprep.subr.mxu0 0.0
        %955 = vmatpush1.xpose.msra.mxu0 0.0
        %956 = vmatprep.subr.mxu0 0.0
        %957 = vmatpush1.xpose.msra.mxu0 0.0
        %958 = vmatprep.subr.mxu0 0.0
        %959 = vmatpush1.xpose.msra.mxu0 0.0
        %960 = vmatprep.subr.mxu0 0.0
        %961 = vmatpush1.xpose.msra.mxu0 0.0
        %962 = vmatprep.subr.mxu0 0.0
        %963 = vmatpush1.xpose.msra.mxu0 0.0
        %964 = vmatprep.subr.mxu0 0.0
        %965 = vmatpush1.xpose.msra.mxu0 0.0
        %966 = vmatprep.subr.mxu0 0.0
        %967 = vmatpush1.xpose.msra.mxu0 0.0
        %968 = vmatprep.subr.mxu0 0.0
        %969 = vmatpush1.xpose.msra.mxu0 0.0
        %970 = vmatprep.subr.mxu0 0.0
        %971 = vmatpush1.xpose.msra.mxu0 0.0
        %972 = vmatprep.subr.mxu0 0.0
        %973 = vmatpush1.xpose.msra.mxu0 0.0
        %974 = vmatprep.subr.mxu0 0.0
        %975 = vmatpush1.xpose.msra.mxu0 0.0
        %976 = vmatprep.subr.mxu0 0.0
        %977 = vmatpush1.xpose.msra.mxu0 0.0
        %978 = vmatprep.subr.mxu0 0.0
        %979 = vmatpush1.xpose.msra.mxu0 0.0
        %980 = vmatprep.subr.mxu0 0.0
        %981 = vmatpush1.xpose.msra.mxu0 0.0
        %982 = vmatprep.subr.mxu0 0.0
        %983 = vmatpush1.xpose.msra.mxu0 0.0
        %984 = vmatprep.subr.mxu0 0.0
        %985 = vmatpush1.xpose.msra.mxu0 0.0
        %986 = vmatprep.subr.mxu0 0.0
        %987 = vmatpush1.xpose.msra.mxu0 0.0
        %988 = vmatprep.subr.mxu0 0.0
        %989 = vmatpush1.xpose.msra.mxu0 0.0
        %990 = vmatprep.mubr.f32.mxu0 0.0
        %991 = vmatmul.mubr.f32.gmra.mrb[0].mxu0 %v915
        %v992 = vpop.f32.mrb[0].mxu0
        %v993 = vadd.f32 0.0, %v992
        %v994 = vpop.f32.mrb[0].mxu0
        %995 = vmatprep.mubr.f32.mxu0 0.0
        %996 = vmatmul.mubr.f32.gmra.mrb[0].mxu0 %v918
        %v997 = vpop.f32.mrb[0].mxu0
        %v998 = vadd.f32 0.0, %v997
        %v999 = vpop.f32.mrb[0].mxu0
        %1000 = vdwg.mxu0
        %v1002 = vsel %vm826, %v586, 0
        %v1005 = vsel %vm826, %v591, 0
        %v1008 = vsel %vm826, %v697, 0
        %v1011 = vsel %vm826, %v702, 0
        %1013 = vmatprep.subr.mxu0 0.0
        %1014 = vmatpush1.xpose.msra.mxu0 %v1008
        %1015 = vmatprep.subr.mxu0 0.0
        %1016 = vmatpush1.xpose.msra.mxu0 %v1011
        %1017 = vmatprep.subr.mxu0 0.0
        %1018 = vmatpush1.xpose.msra.mxu0 0.0
        %1019 = vmatprep.subr.mxu0 0.0
        %1020 = vmatpush1.xpose.msra.mxu0 0.0
        %1021 = vmatprep.subr.mxu0 0.0
        %1022 = vmatpush1.xpose.msra.mxu0 0.0
        %1023 = vmatprep.subr.mxu0 0.0
        %1024 = vmatpush1.xpose.msra.mxu0 0.0
        %1025 = vmatprep.subr.mxu0 0.0
        %1026 = vmatpush1.xpose.msra.mxu0 0.0
        %1027 = vmatprep.subr.mxu0 0.0
        %1028 = vmatpush1.xpose.msra.mxu0 0.0
        %1029 = vmatprep.subr.mxu0 0.0
        %1030 = vmatpush1.xpose.msra.mxu0 0.0
        %1031 = vmatprep.subr.mxu0 0.0
        %1032 = vmatpush1.xpose.msra.mxu0 0.0
        %1033 = vmatprep.subr.mxu0 0.0
        %1034 = vmatpush1.xpose.msra.mxu0 0.0
        %1035 = vmatprep.subr.mxu0 0.0
        %1036 = vmatpush1.xpose.msra.mxu0 0.0
        %1037 = vmatprep.subr.mxu0 0.0
        %1038 = vmatpush1.xpose.msra.mxu0 0.0
        %1039 = vmatprep.subr.mxu0 0.0
        %1040 = vmatpush1.xpose.msra.mxu0 0.0
        %1041 = vmatprep.subr.mxu0 0.0
        %1042 = vmatpush1.xpose.msra.mxu0 0.0
        %1043 = vmatprep.subr.mxu0 0.0
        %1044 = vmatpush1.xpose.msra.mxu0 0.0
        %1045 = vmatprep.subr.mxu0 0.0
        %1046 = vmatpush1.xpose.msra.mxu0 0.0
        %1047 = vmatprep.subr.mxu0 0.0
        %1048 = vmatpush1.xpose.msra.mxu0 0.0
        %1049 = vmatprep.subr.mxu0 0.0
        %1050 = vmatpush1.xpose.msra.mxu0 0.0
        %1051 = vmatprep.subr.mxu0 0.0
        %1052 = vmatpush1.xpose.msra.mxu0 0.0
        %1053 = vmatprep.subr.mxu0 0.0
        %1054 = vmatpush1.xpose.msra.mxu0 0.0
        %1055 = vmatprep.subr.mxu0 0.0
        %1056 = vmatpush1.xpose.msra.mxu0 0.0
        %1057 = vmatprep.subr.mxu0 0.0
        %1058 = vmatpush1.xpose.msra.mxu0 0.0
        %1059 = vmatprep.subr.mxu0 0.0
        %1060 = vmatpush1.xpose.msra.mxu0 0.0
        %1061 = vmatprep.subr.mxu0 0.0
        %1062 = vmatpush1.xpose.msra.mxu0 0.0
        %1063 = vmatprep.subr.mxu0 0.0
        %1064 = vmatpush1.xpose.msra.mxu0 0.0
        %1065 = vmatprep.subr.mxu0 0.0
        %1066 = vmatpush1.xpose.msra.mxu0 0.0
        %1067 = vmatprep.subr.mxu0 0.0
        %1068 = vmatpush1.xpose.msra.mxu0 0.0
        %1069 = vmatprep.subr.mxu0 0.0
        %1070 = vmatpush1.xpose.msra.mxu0 0.0
        %1071 = vmatprep.subr.mxu0 0.0
        %1072 = vmatpush1.xpose.msra.mxu0 0.0
        %1073 = vmatprep.subr.mxu0 0.0
        %1074 = vmatpush1.xpose.msra.mxu0 0.0
        %1075 = vmatprep.subr.mxu0 0.0
        %1076 = vmatpush1.xpose.msra.mxu0 0.0
        %1077 = vmatprep.mubr.f32.mxu0 0.0
        %1078 = vmatmul.mubr.f32.gmra.mrb[0].mxu0 %v1002
        %v1079 = vpop.f32.mrb[0].mxu0
        %v1080 = vadd.f32 0.0, %v1079
        %v1081 = vpop.f32.mrb[0].mxu0
        %1082 = vmatprep.mubr.f32.mxu0 0.0
        %1083 = vmatmul.mubr.f32.gmra.mrb[0].mxu0 %v1005
        %v1084 = vpop.f32.mrb[0].mxu0
        %v1085 = vadd.f32 0.0, %v1084
        %v1086 = vpop.f32.mrb[0].mxu0
        %1087 = vdwg.mxu0
        %v1089 = vsel %vm826, %v596, 0
        %v1092 = vsel %vm826, %v601, 0
        %v1095 = vsel %vm826, %v707, 0
        %v1098 = vsel %vm826, %v712, 0
        %1100 = vmatprep.subr.mxu0 0.0
        %1101 = vmatpush1.xpose.msra.mxu0 %v1095
        %1102 = vmatprep.subr.mxu0 0.0
        %1103 = vmatpush1.xpose.msra.mxu0 %v1098
        %1104 = vmatprep.subr.mxu0 0.0
        %1105 = vmatpush1.xpose.msra.mxu0 0.0
        %1106 = vmatprep.subr.mxu0 0.0
        %1107 = vmatpush1.xpose.msra.mxu0 0.0
        %1108 = vmatprep.subr.mxu0 0.0
        %1109 = vmatpush1.xpose.msra.mxu0 0.0
        %1110 = vmatprep.subr.mxu0 0.0
        %1111 = vmatpush1.xpose.msra.mxu0 0.0
        %1112 = vmatprep.subr.mxu0 0.0
        %1113 = vmatpush1.xpose.msra.mxu0 0.0
        %1114 = vmatprep.subr.mxu0 0.0
        %1115 = vmatpush1.xpose.msra.mxu0 0.0
        %1116 = vmatprep.subr.mxu0 0.0
        %1117 = vmatpush1.xpose.msra.mxu0 0.0
        %1118 = vmatprep.subr.mxu0 0.0
        %1119 = vmatpush1.xpose.msra.mxu0 0.0
        %1120 = vmatprep.subr.mxu0 0.0
        %1121 = vmatpush1.xpose.msra.mxu0 0.0
        %1122 = vmatprep.subr.mxu0 0.0
        %1123 = vmatpush1.xpose.msra.mxu0 0.0
        %1124 = vmatprep.subr.mxu0 0.0
        %1125 = vmatpush1.xpose.msra.mxu0 0.0
        %1126 = vmatprep.subr.mxu0 0.0
        %1127 = vmatpush1.xpose.msra.mxu0 0.0
        %1128 = vmatprep.subr.mxu0 0.0
        %1129 = vmatpush1.xpose.msra.mxu0 0.0
        %1130 = vmatprep.subr.mxu0 0.0
        %1131 = vmatpush1.xpose.msra.mxu0 0.0
        %1132 = vmatprep.subr.mxu0 0.0
        %1133 = vmatpush1.xpose.msra.mxu0 0.0
        %1134 = vmatprep.subr.mxu0 0.0
        %1135 = vmatpush1.xpose.msra.mxu0 0.0
        %1136 = vmatprep.subr.mxu0 0.0
        %1137 = vmatpush1.xpose.msra.mxu0 0.0
        %1138 = vmatprep.subr.mxu0 0.0
        %1139 = vmatpush1.xpose.msra.mxu0 0.0
        %1140 = vmatprep.subr.mxu0 0.0
        %1141 = vmatpush1.xpose.msra.mxu0 0.0
        %1142 = vmatprep.subr.mxu0 0.0
        %1143 = vmatpush1.xpose.msra.mxu0 0.0
        %1144 = vmatprep.subr.mxu0 0.0
        %1145 = vmatpush1.xpose.msra.mxu0 0.0
        %1146 = vmatprep.subr.mxu0 0.0
        %1147 = vmatpush1.xpose.msra.mxu0 0.0
        %1148 = vmatprep.subr.mxu0 0.0
        %1149 = vmatpush1.xpose.msra.mxu0 0.0
        %1150 = vmatprep.subr.mxu0 0.0
        %1151 = vmatpush1.xpose.msra.mxu0 0.0
        %1152 = vmatprep.subr.mxu0 0.0
        %1153 = vmatpush1.xpose.msra.mxu0 0.0
        %1154 = vmatprep.subr.mxu0 0.0
        %1155 = vmatpush1.xpose.msra.mxu0 0.0
        %1156 = vmatprep.subr.mxu0 0.0
        %1157 = vmatpush1.xpose.msra.mxu0 0.0
        %1158 = vmatprep.subr.mxu0 0.0
        %1159 = vmatpush1.xpose.msra.mxu0 0.0
        %1160 = vmatprep.subr.mxu0 0.0
        %1161 = vmatpush1.xpose.msra.mxu0 0.0
        %1162 = vmatprep.subr.mxu0 0.0
        %1163 = vmatpush1.xpose.msra.mxu0 0.0
        %1164 = vmatprep.mubr.f32.mxu0 0.0
        %1165 = vmatmul.mubr.f32.gmra.mrb[0].mxu0 %v1089
        %v1166 = vpop.f32.mrb[0].mxu0
        %v1167 = vadd.f32 0.0, %v1166
        %v1168 = vpop.f32.mrb[0].mxu0
        %1169 = vmatprep.mubr.f32.mxu0 0.0
        %1170 = vmatmul.mubr.f32.gmra.mrb[0].mxu0 %v1092
        %v1171 = vpop.f32.mrb[0].mxu0
        %v1172 = vadd.f32 0.0, %v1171
        %v1173 = vpop.f32.mrb[0].mxu0
        %1174 = vdwg.mxu0
        %v1175 = vadd.f32 %v906, %v372
        %v1176 = vadd.f32 %v911, %v373
        %v1177 = vadd.f32 %v993, %v380
        %v1178 = vadd.f32 %v998, %v381
        %v1179 = vadd.f32 %v1080, %v388
        %v1180 = vadd.f32 %v1085, %v389
        %v1181 = vadd.f32 %v1167, %v396
        %v1182 = vadd.f32 %v1172, %v397
        %vm1183 = vcmask 130048
        %v1184 = vsel %vm1183, %v1175, -inf
        %1185 = vmax.xlane.f32.xlu0 %v1184
        %v1186 = vpop.xlane.xlu0 %1185
        %v1187 = vsel %vm1183, %v1176, -inf
        %1188 = vmax.xlane.f32.xlu0 %v1187
        %v1189 = vpop.xlane.xlu0 %1188
        %v1190 = vsel %vm1183, %v1177, -inf
        %1191 = vmax.xlane.f32.xlu0 %v1190
        %v1192 = vpop.xlane.xlu0 %1191
        %v1193 = vsel %vm1183, %v1178, -inf
        %1194 = vmax.xlane.f32.xlu0 %v1193
        %v1195 = vpop.xlane.xlu0 %1194
        %v1196 = vsel %vm1183, %v1179, -inf
        %1197 = vmax.xlane.f32.xlu0 %v1196
        %v1198 = vpop.xlane.xlu0 %1197
        %v1199 = vsel %vm1183, %v1180, -inf
        %1200 = vmax.xlane.f32.xlu0 %v1199
        %v1201 = vpop.xlane.xlu0 %1200
        %v1202 = vsel %vm1183, %v1181, -inf
        %1203 = vmax.xlane.f32.xlu0 %v1202
        %v1204 = vpop.xlane.xlu0 %1203
        %v1205 = vsel %vm1183, %v1182, -inf
        %1206 = vmax.xlane.f32.xlu0 %v1205
        %v1207 = vpop.xlane.xlu0 %1206
        %v1208 = vsub.f32 %v1175, %v1186
        %v1209 = vsub.f32 %v1176, %v1189
        %v1210 = vsub.f32 %v1177, %v1192
        %v1211 = vsub.f32 %v1178, %v1195
        %v1212 = vsub.f32 %v1179, %v1198
        %v1213 = vsub.f32 %v1180, %v1201
        %v1214 = vsub.f32 %v1181, %v1204
        %v1215 = vsub.f32 %v1182, %v1207
        %v1216 = vmul.f32 %v1208, 1.442695
        %v1217 = vpow.pop %v1216
        %v1218 = vmul.f32 %v1209, 1.442695
        %v1219 = vpow.pop %v1218
        %v1220 = vmul.f32 %v1210, 1.442695
        %v1221 = vpow.pop %v1220
        %v1222 = vmul.f32 %v1211, 1.442695
        %v1223 = vpow.pop %v1222
        %v1224 = vmul.f32 %v1212, 1.442695
        %v1225 = vpow.pop %v1224
        %v1226 = vmul.f32 %v1213, 1.442695
        %v1227 = vpow.pop %v1226
        %v1228 = vmul.f32 %v1214, 1.442695
        %v1229 = vpow.pop %v1228
        %v1230 = vmul.f32 %v1215, 1.442695
        %v1231 = vpow.pop %v1230
        %v1232 = vsel %vm1183, %v1217, 0.0
        %1233 = vadd.xlane.f32.xlu0 %v1232
        %v1234 = vpop.xlane.xlu0 %1233
        %v1235 = vsel %vm1183, %v1219, 0.0
        %1236 = vadd.xlane.f32.xlu0 %v1235
        %v1237 = vpop.xlane.xlu0 %1236
        %v1238 = vsel %vm1183, %v1221, 0.0
        %1239 = vadd.xlane.f32.xlu0 %v1238
        %v1240 = vpop.xlane.xlu0 %1239
        %v1241 = vsel %vm1183, %v1223, 0.0
        %1242 = vadd.xlane.f32.xlu0 %v1241
        %v1243 = vpop.xlane.xlu0 %1242
        %v1244 = vsel %vm1183, %v1225, 0.0
        %1245 = vadd.xlane.f32.xlu0 %v1244
        %v1246 = vpop.xlane.xlu0 %1245
        %v1247 = vsel %vm1183, %v1227, 0.0
        %1248 = vadd.xlane.f32.xlu0 %v1247
        %v1249 = vpop.xlane.xlu0 %1248
        %v1250 = vsel %vm1183, %v1229, 0.0
        %1251 = vadd.xlane.f32.xlu0 %v1250
        %v1252 = vpop.xlane.xlu0 %1251
        %v1253 = vsel %vm1183, %v1231, 0.0
        %1254 = vadd.xlane.f32.xlu0 %v1253
        %v1255 = vpop.xlane.xlu0 %1254
        %v1256 = vrcp.pop %v1234
        %v1257 = vmul.f32 %v1217, %v1256
        %v1258 = vrcp.pop %v1237
        %v1259 = vmul.f32 %v1219, %v1258
        %v1260 = vrcp.pop %v1240
        %v1261 = vmul.f32 %v1221, %v1260
        %v1262 = vrcp.pop %v1243
        %v1263 = vmul.f32 %v1223, %v1262
        %v1264 = vrcp.pop %v1246
        %v1265 = vmul.f32 %v1225, %v1264
        %v1266 = vrcp.pop %v1249
        %v1267 = vmul.f32 %v1227, %v1266
        %v1268 = vrcp.pop %v1252
        %v1269 = vmul.f32 %v1229, %v1268
        %v1270 = vrcp.pop %v1255
        %v1271 = vmul.f32 %v1231, %v1270
        %v1273 = vsel %vm1183, %v1257, 0
        %v1276 = vsel %vm1183, %v1259, 0
        %1278 = vmatprep.subr.mxu0 0.0
        %1279 = vmatpush1.msra.mxu0 %v788
        %1280 = vmatprep.subr.mxu0 0.0
        %1281 = vmatpush1.msra.mxu0 %v793
        %1282 = vmatprep.subr.mxu0 0.0
        %1283 = vmatpush1.msra.mxu0 0.0
        %1284 = vmatprep.subr.mxu0 0.0
        %1285 = vmatpush1.msra.mxu0 0.0
        %1286 = vmatprep.subr.mxu0 0.0
        %1287 = vmatpush1.msra.mxu0 0.0
        %1288 = vmatprep.subr.mxu0 0.0
        %1289 = vmatpush1.msra.mxu0 0.0
        %1290 = vmatprep.subr.mxu0 0.0
        %1291 = vmatpush1.msra.mxu0 0.0
        %1292 = vmatprep.subr.mxu0 0.0
        %1293 = vmatpush1.msra.mxu0 0.0
        %1294 = vmatprep.subr.mxu0 0.0
        %1295 = vmatpush1.msra.mxu0 0.0
        %1296 = vmatprep.subr.mxu0 0.0
        %1297 = vmatpush1.msra.mxu0 0.0
        %1298 = vmatprep.subr.mxu0 0.0
        %1299 = vmatpush1.msra.mxu0 0.0
        %1300 = vmatprep.subr.mxu0 0.0
        %1301 = vmatpush1.msra.mxu0 0.0
        %1302 = vmatprep.subr.mxu0 0.0
        %1303 = vmatpush1.msra.mxu0 0.0
        %1304 = vmatprep.subr.mxu0 0.0
        %1305 = vmatpush1.msra.mxu0 0.0
        %1306 = vmatprep.subr.mxu0 0.0
        %1307 = vmatpush1.msra.mxu0 0.0
        %1308 = vmatprep.subr.mxu0 0.0
        %1309 = vmatpush1.msra.mxu0 0.0
        %1310 = vmatprep.subr.mxu0 0.0
        %1311 = vmatpush1.msra.mxu0 0.0
        %1312 = vmatprep.subr.mxu0 0.0
        %1313 = vmatpush1.msra.mxu0 0.0
        %1314 = vmatprep.subr.mxu0 0.0
        %1315 = vmatpush1.msra.mxu0 0.0
        %1316 = vmatprep.subr.mxu0 0.0
        %1317 = vmatpush1.msra.mxu0 0.0
        %1318 = vmatprep.subr.mxu0 0.0
        %1319 = vmatpush1.msra.mxu0 0.0
        %1320 = vmatprep.subr.mxu0 0.0
        %1321 = vmatpush1.msra.mxu0 0.0
        %1322 = vmatprep.subr.mxu0 0.0
        %1323 = vmatpush1.msra.mxu0 0.0
        %1324 = vmatprep.subr.mxu0 0.0
        %1325 = vmatpush1.msra.mxu0 0.0
        %1326 = vmatprep.subr.mxu0 0.0
        %1327 = vmatpush1.msra.mxu0 0.0
        %1328 = vmatprep.subr.mxu0 0.0
        %1329 = vmatpush1.msra.mxu0 0.0
        %1330 = vmatprep.subr.mxu0 0.0
        %1331 = vmatpush1.msra.mxu0 0.0
        %1332 = vmatprep.subr.mxu0 0.0
        %1333 = vmatpush1.msra.mxu0 0.0
        %1334 = vmatprep.subr.mxu0 0.0
        %1335 = vmatpush1.msra.mxu0 0.0
        %1336 = vmatprep.subr.mxu0 0.0
        %1337 = vmatpush1.msra.mxu0 0.0
        %1338 = vmatprep.subr.mxu0 0.0
        %1339 = vmatpush1.msra.mxu0 0.0
        %1340 = vmatprep.subr.mxu0 0.0
        %1341 = vmatpush1.msra.mxu0 0.0
        %1342 = vmatprep.mubr.f32.mxu0 0.0
        %1343 = vmatmul.mubr.f32.gmra.mrb[0].mxu0 %v1273
        %v1344 = vpop.f32.mrb[0].mxu0
        %v1345 = vadd.f32 0.0, %v1344
        %v1346 = vpop.f32.mrb[0].mxu0
        %1347 = vmatprep.mubr.f32.mxu0 0.0
        %1348 = vmatmul.mubr.f32.gmra.mrb[0].mxu0 %v1276
        %v1349 = vpop.f32.mrb[0].mxu0
        %v1350 = vadd.f32 0.0, %v1349
        %v1351 = vpop.f32.mrb[0].mxu0
        %1352 = vdwg.mxu0
        %v1354 = vsel %vm1183, %v1261, 0
        %v1357 = vsel %vm1183, %v1263, 0
        %1359 = vmatprep.subr.mxu0 0.0
        %1360 = vmatpush1.msra.mxu0 %v798
        %1361 = vmatprep.subr.mxu0 0.0
        %1362 = vmatpush1.msra.mxu0 %v803
        %1363 = vmatprep.subr.mxu0 0.0
        %1364 = vmatpush1.msra.mxu0 0.0
        %1365 = vmatprep.subr.mxu0 0.0
        %1366 = vmatpush1.msra.mxu0 0.0
        %1367 = vmatprep.subr.mxu0 0.0
        %1368 = vmatpush1.msra.mxu0 0.0
        %1369 = vmatprep.subr.mxu0 0.0
        %1370 = vmatpush1.msra.mxu0 0.0
        %1371 = vmatprep.subr.mxu0 0.0
        %1372 = vmatpush1.msra.mxu0 0.0
        %1373 = vmatprep.subr.mxu0 0.0
        %1374 = vmatpush1.msra.mxu0 0.0
        %1375 = vmatprep.subr.mxu0 0.0
        %1376 = vmatpush1.msra.mxu0 0.0
        %1377 = vmatprep.subr.mxu0 0.0
        %1378 = vmatpush1.msra.mxu0 0.0
        %1379 = vmatprep.subr.mxu0 0.0
        %1380 = vmatpush1.msra.mxu0 0.0
        %1381 = vmatprep.subr.mxu0 0.0
        %1382 = vmatpush1.msra.mxu0 0.0
        %1383 = vmatprep.subr.mxu0 0.0
        %1384 = vmatpush1.msra.mxu0 0.0
        %1385 = vmatprep.subr.mxu0 0.0
        %1386 = vmatpush1.msra.mxu0 0.0
        %1387 = vmatprep.subr.mxu0 0.0
        %1388 = vmatpush1.msra.mxu0 0.0
        %1389 = vmatprep.subr.mxu0 0.0
        %1390 = vmatpush1.msra.mxu0 0.0
        %1391 = vmatprep.subr.mxu0 0.0
        %1392 = vmatpush1.msra.mxu0 0.0
        %1393 = vmatprep.subr.mxu0 0.0
        %1394 = vmatpush1.msra.mxu0 0.0
        %1395 = vmatprep.subr.mxu0 0.0
        %1396 = vmatpush1.msra.mxu0 0.0
        %1397 = vmatprep.subr.mxu0 0.0
        %1398 = vmatpush1.msra.mxu0 0.0
        %1399 = vmatprep.subr.mxu0 0.0
        %1400 = vmatpush1.msra.mxu0 0.0
        %1401 = vmatprep.subr.mxu0 0.0
        %1402 = vmatpush1.msra.mxu0 0.0
        %1403 = vmatprep.subr.mxu0 0.0
        %1404 = vmatpush1.msra.mxu0 0.0
        %1405 = vmatprep.subr.mxu0 0.0
        %1406 = vmatpush1.msra.mxu0 0.0
        %1407 = vmatprep.subr.mxu0 0.0
        %1408 = vmatpush1.msra.mxu0 0.0
        %1409 = vmatprep.subr.mxu0 0.0
        %1410 = vmatpush1.msra.mxu0 0.0
        %1411 = vmatprep.subr.mxu0 0.0
        %1412 = vmatpush1.msra.mxu0 0.0
        %1413 = vmatprep.subr.mxu0 0.0
        %1414 = vmatpush1.msra.mxu0 0.0
        %1415 = vmatprep.subr.mxu0 0.0
        %1416 = vmatpush1.msra.mxu0 0.0
        %1417 = vmatprep.subr.mxu0 0.0
        %1418 = vmatpush1.msra.mxu0 0.0
        %1419 = vmatprep.subr.mxu0 0.0
        %1420 = vmatpush1.msra.mxu0 0.0
        %1421 = vmatprep.subr.mxu0 0.0
        %1422 = vmatpush1.msra.mxu0 0.0
        %1423 = vmatprep.mubr.f32.mxu0 0.0
        %1424 = vmatmul.mubr.f32.gmra.mrb[0].mxu0 %v1354
        %v1425 = vpop.f32.mrb[0].mxu0
        %v1426 = vadd.f32 0.0, %v1425
        %v1427 = vpop.f32.mrb[0].mxu0
        %1428 = vmatprep.mubr.f32.mxu0 0.0
        %1429 = vmatmul.mubr.f32.gmra.mrb[0].mxu0 %v1357
        %v1430 = vpop.f32.mrb[0].mxu0
        %v1431 = vadd.f32 0.0, %v1430
        %v1432 = vpop.f32.mrb[0].mxu0
        %1433 = vdwg.mxu0
        %v1435 = vsel %vm1183, %v1265, 0
        %v1438 = vsel %vm1183, %v1267, 0
        %1440 = vmatprep.subr.mxu0 0.0
        %1441 = vmatpush1.msra.mxu0 %v808
        %1442 = vmatprep.subr.mxu0 0.0
        %1443 = vmatpush1.msra.mxu0 %v813
        %1444 = vmatprep.subr.mxu0 0.0
        %1445 = vmatpush1.msra.mxu0 0.0
        %1446 = vmatprep.subr.mxu0 0.0
        %1447 = vmatpush1.msra.mxu0 0.0
        %1448 = vmatprep.subr.mxu0 0.0
        %1449 = vmatpush1.msra.mxu0 0.0
        %1450 = vmatprep.subr.mxu0 0.0
        %1451 = vmatpush1.msra.mxu0 0.0
        %1452 = vmatprep.subr.mxu0 0.0
        %1453 = vmatpush1.msra.mxu0 0.0
        %1454 = vmatprep.subr.mxu0 0.0
        %1455 = vmatpush1.msra.mxu0 0.0
        %1456 = vmatprep.subr.mxu0 0.0
        %1457 = vmatpush1.msra.mxu0 0.0
        %1458 = vmatprep.subr.mxu0 0.0
        %1459 = vmatpush1.msra.mxu0 0.0
        %1460 = vmatprep.subr.mxu0 0.0
        %1461 = vmatpush1.msra.mxu0 0.0
        %1462 = vmatprep.subr.mxu0 0.0
        %1463 = vmatpush1.msra.mxu0 0.0
        %1464 = vmatprep.subr.mxu0 0.0
        %1465 = vmatpush1.msra.mxu0 0.0
        %1466 = vmatprep.subr.mxu0 0.0
        %1467 = vmatpush1.msra.mxu0 0.0
        %1468 = vmatprep.subr.mxu0 0.0
        %1469 = vmatpush1.msra.mxu0 0.0
        %1470 = vmatprep.subr.mxu0 0.0
        %1471 = vmatpush1.msra.mxu0 0.0
        %1472 = vmatprep.subr.mxu0 0.0
        %1473 = vmatpush1.msra.mxu0 0.0
        %1474 = vmatprep.subr.mxu0 0.0
        %1475 = vmatpush1.msra.mxu0 0.0
        %1476 = vmatprep.subr.mxu0 0.0
        %1477 = vmatpush1.msra.mxu0 0.0
        %1478 = vmatprep.subr.mxu0 0.0
        %1479 = vmatpush1.msra.mxu0 0.0
        %1480 = vmatprep.subr.mxu0 0.0
        %1481 = vmatpush1.msra.mxu0 0.0
        %1482 = vmatprep.subr.mxu0 0.0
        %1483 = vmatpush1.msra.mxu0 0.0
        %1484 = vmatprep.subr.mxu0 0.0
        %1485 = vmatpush1.msra.mxu0 0.0
        %1486 = vmatprep.subr.mxu0 0.0
        %1487 = vmatpush1.msra.mxu0 0.0
        %1488 = vmatprep.subr.mxu0 0.0
        %1489 = vmatpush1.msra.mxu0 0.0
        %1490 = vmatprep.subr.mxu0 0.0
        %1491 = vmatpush1.msra.mxu0 0.0
        %1492 = vmatprep.subr.mxu0 0.0
        %1493 = vmatpush1.msra.mxu0 0.0
        %1494 = vmatprep.subr.mxu0 0.0
        %1495 = vmatpush1.msra.mxu0 0.0
        %1496 = vmatprep.subr.mxu0 0.0
        %1497 = vmatpush1.msra.mxu0 0.0
        %1498 = vmatprep.subr.mxu0 0.0
        %1499 = vmatpush1.msra.mxu0 0.0
        %1500 = vmatprep.subr.mxu0 0.0
        %1501 = vmatpush1.msra.mxu0 0.0
        %1502 = vmatprep.subr.mxu0 0.0
        %1503 = vmatpush1.msra.mxu0 0.0
        %1504 = vmatprep.mubr.f32.mxu0 0.0
        %1505 = vmatmul.mubr.f32.gmra.mrb[0].mxu0 %v1435
        %v1506 = vpop.f32.mrb[0].mxu0
        %v1507 = vadd.f32 0.0, %v1506
        %v1508 = vpop.f32.mrb[0].mxu0
        %1509 = vmatprep.mubr.f32.mxu0 0.0
        %1510 = vmatmul.mubr.f32.gmra.mrb[0].mxu0 %v1438
        %v1511 = vpop.f32.mrb[0].mxu0
        %v1512 = vadd.f32 0.0, %v1511
        %v1513 = vpop.f32.mrb[0].mxu0
        %1514 = vdwg.mxu0
        %v1516 = vsel %vm1183, %v1269, 0
        %v1519 = vsel %vm1183, %v1271, 0
        %1521 = vmatprep.subr.mxu0 0.0
        %1522 = vmatpush1.msra.mxu0 %v818
        %1523 = vmatprep.subr.mxu0 0.0
        %1524 = vmatpush1.msra.mxu0 %v823
        %1525 = vmatprep.subr.mxu0 0.0
        %1526 = vmatpush1.msra.mxu0 0.0
        %1527 = vmatprep.subr.mxu0 0.0
        %1528 = vmatpush1.msra.mxu0 0.0
        %1529 = vmatprep.subr.mxu0 0.0
        %1530 = vmatpush1.msra.mxu0 0.0
        %1531 = vmatprep.subr.mxu0 0.0
        %1532 = vmatpush1.msra.mxu0 0.0
        %1533 = vmatprep.subr.mxu0 0.0
        %1534 = vmatpush1.msra.mxu0 0.0
        %1535 = vmatprep.subr.mxu0 0.0
        %1536 = vmatpush1.msra.mxu0 0.0
        %1537 = vmatprep.subr.mxu0 0.0
        %1538 = vmatpush1.msra.mxu0 0.0
        %1539 = vmatprep.subr.mxu0 0.0
        %1540 = vmatpush1.msra.mxu0 0.0
        %1541 = vmatprep.subr.mxu0 0.0
        %1542 = vmatpush1.msra.mxu0 0.0
        %1543 = vmatprep.subr.mxu0 0.0
        %1544 = vmatpush1.msra.mxu0 0.0
        %1545 = vmatprep.subr.mxu0 0.0
        %1546 = vmatpush1.msra.mxu0 0.0
        %1547 = vmatprep.subr.mxu0 0.0
        %1548 = vmatpush1.msra.mxu0 0.0
        %1549 = vmatprep.subr.mxu0 0.0
        %1550 = vmatpush1.msra.mxu0 0.0
        %1551 = vmatprep.subr.mxu0 0.0
        %1552 = vmatpush1.msra.mxu0 0.0
        %1553 = vmatprep.subr.mxu0 0.0
        %1554 = vmatpush1.msra.mxu0 0.0
        %1555 = vmatprep.subr.mxu0 0.0
        %1556 = vmatpush1.msra.mxu0 0.0
        %1557 = vmatprep.subr.mxu0 0.0
        %1558 = vmatpush1.msra.mxu0 0.0
        %1559 = vmatprep.subr.mxu0 0.0
        %1560 = vmatpush1.msra.mxu0 0.0
        %1561 = vmatprep.subr.mxu0 0.0
        %1562 = vmatpush1.msra.mxu0 0.0
        %1563 = vmatprep.subr.mxu0 0.0
        %1564 = vmatpush1.msra.mxu0 0.0
        %1565 = vmatprep.subr.mxu0 0.0
        %1566 = vmatpush1.msra.mxu0 0.0
        %1567 = vmatprep.subr.mxu0 0.0
        %1568 = vmatpush1.msra.mxu0 0.0
        %1569 = vmatprep.subr.mxu0 0.0
        %1570 = vmatpush1.msra.mxu0 0.0
        %1571 = vmatprep.subr.mxu0 0.0
        %1572 = vmatpush1.msra.mxu0 0.0
        %1573 = vmatprep.subr.mxu0 0.0
        %1574 = vmatpush1.msra.mxu0 0.0
        %1575 = vmatprep.subr.mxu0 0.0
        %1576 = vmatpush1.msra.mxu0 0.0
        %1577 = vmatprep.subr.mxu0 0.0
        %1578 = vmatpush1.msra.mxu0 0.0
        %1579 = vmatprep.subr.mxu0 0.0
        %1580 = vmatpush1.msra.mxu0 0.0
        %1581 = vmatprep.subr.mxu0 0.0
        %1582 = vmatpush1.msra.mxu0 0.0
        %1583 = vmatprep.subr.mxu0 0.0
        %1584 = vmatpush1.msra.mxu0 0.0
        %1585 = vmatprep.mubr.f32.mxu0 0.0
        %1586 = vmatmul.mubr.f32.gmra.mrb[0].mxu0 %v1516
        %v1587 = vpop.f32.mrb[0].mxu0
        %v1588 = vadd.f32 0.0, %v1587
        %v1589 = vpop.f32.mrb[0].mxu0
        %1590 = vmatprep.mubr.f32.mxu0 0.0
        %1591 = vmatmul.mubr.f32.gmra.mrb[0].mxu0 %v1519
        %v1592 = vpop.f32.mrb[0].mxu0
        %v1593 = vadd.f32 0.0, %v1592
        %v1594 = vpop.f32.mrb[0].mxu0
        %1595 = vdwg.mxu0
        %v1597 = vlaneseq
        %v1598 = vshrl.u32 %v1597, 7
        %v1599 = vsub.s32 0, %v1598
        %v1600 = vrot.slane %v453, %v1599
        %1602 = vmatprep.subr.mxu0 0.0
        %1603 = vmatpush1.msra.mxu0 %v408
        %1604 = vmatprep.subr.mxu0 0.0
        %1605 = vmatpush1.msra.mxu0 %v409
        %1606 = vmatprep.subr.mxu0 0.0
        %1607 = vmatpush1.msra.mxu0 %v410
        %1608 = vmatprep.subr.mxu0 0.0
        %1609 = vmatpush1.msra.mxu0 %v411
        %1610 = vmatprep.subr.mxu0 0.0
        %1611 = vmatpush1.msra.mxu0 0.0
        %1612 = vmatprep.subr.mxu0 0.0
        %1613 = vmatpush1.msra.mxu0 0.0
        %1614 = vmatprep.subr.mxu0 0.0
        %1615 = vmatpush1.msra.mxu0 0.0
        %1616 = vmatprep.subr.mxu0 0.0
        %1617 = vmatpush1.msra.mxu0 0.0
        %1618 = vmatprep.subr.mxu0 0.0
        %1619 = vmatpush1.msra.mxu0 0.0
        %1620 = vmatprep.subr.mxu0 0.0
        %1621 = vmatpush1.msra.mxu0 0.0
        %1622 = vmatprep.subr.mxu0 0.0
        %1623 = vmatpush1.msra.mxu0 0.0
        %1624 = vmatprep.subr.mxu0 0.0
        %1625 = vmatpush1.msra.mxu0 0.0
        %1626 = vmatprep.subr.mxu0 0.0
        %1627 = vmatpush1.msra.mxu0 0.0
        %1628 = vmatprep.subr.mxu0 0.0
        %1629 = vmatpush1.msra.mxu0 0.0
        %1630 = vmatprep.subr.mxu0 0.0
        %1631 = vmatpush1.msra.mxu0 0.0
        %1632 = vmatprep.subr.mxu0 0.0
        %1633 = vmatpush1.msra.mxu0 0.0
        %1634 = vmatprep.subr.mxu0 0.0
        %1635 = vmatpush1.msra.mxu0 0.0
        %1636 = vmatprep.subr.mxu0 0.0
        %1637 = vmatpush1.msra.mxu0 0.0
        %1638 = vmatprep.subr.mxu0 0.0
        %1639 = vmatpush1.msra.mxu0 0.0
        %1640 = vmatprep.subr.mxu0 0.0
        %1641 = vmatpush1.msra.mxu0 0.0
        %1642 = vmatprep.subr.mxu0 0.0
        %1643 = vmatpush1.msra.mxu0 0.0
        %1644 = vmatprep.subr.mxu0 0.0
        %1645 = vmatpush1.msra.mxu0 0.0
        %1646 = vmatprep.subr.mxu0 0.0
        %1647 = vmatpush1.msra.mxu0 0.0
        %1648 = vmatprep.subr.mxu0 0.0
        %1649 = vmatpush1.msra.mxu0 0.0
        %1650 = vmatprep.subr.mxu0 0.0
        %1651 = vmatpush1.msra.mxu0 0.0
        %1652 = vmatprep.subr.mxu0 0.0
        %1653 = vmatpush1.msra.mxu0 0.0
        %1654 = vmatprep.subr.mxu0 0.0
        %1655 = vmatpush1.msra.mxu0 0.0
        %1656 = vmatprep.subr.mxu0 0.0
        %1657 = vmatpush1.msra.mxu0 0.0
        %1658 = vmatprep.subr.mxu0 0.0
        %1659 = vmatpush1.msra.mxu0 0.0
        %1660 = vmatprep.subr.mxu0 0.0
        %1661 = vmatpush1.msra.mxu0 0.0
        %1662 = vmatprep.subr.mxu0 0.0
        %1663 = vmatpush1.msra.mxu0 0.0
        %1664 = vmatprep.subr.mxu0 0.0
        %1665 = vmatpush1.msra.mxu0 0.0
        %1666 = vmatprep.mubr.f32.mxu0 0.0
        %1667 = vmatmul.mubr.f32.gmra.mrb[0].mxu0 %v476
        %v1668 = vpop.f32.mrb[0].mxu0
        %v1669 = vadd.f32 %v1600, %v1668
        %v1670 = vpop.f32.mrb[0].mxu0
        %1671 = vmatprep.mubr.f32.mxu0 0.0
        %1672 = vmatmul.mubr.f32.gmra.mrb[0].mxu0 %v479
        %v1673 = vpop.f32.mrb[0].mxu0
        %v1674 = vadd.f32 %v1600, %v1673
        %v1675 = vpop.f32.mrb[0].mxu0
        %1676 = vmatprep.mubr.f32.mxu0 0.0
        %1677 = vmatmul.mubr.f32.gmra.mrb[0].mxu0 %v482
        %v1678 = vpop.f32.mrb[0].mxu0
        %v1679 = vadd.f32 %v1600, %v1678
        %v1680 = vpop.f32.mrb[0].mxu0
        %1681 = vmatprep.mubr.f32.mxu0 0.0
        %1682 = vmatmul.mubr.f32.gmra.mrb[0].mxu0 %v485
        %v1683 = vpop.f32.mrb[0].mxu0
        %v1684 = vadd.f32 %v1600, %v1683
        %v1685 = vpop.f32.mrb[0].mxu0
        %1686 = vmatprep.mubr.f32.mxu0 0.0
        %1687 = vmatmul.mubr.f32.gmra.mrb[0].mxu0 %v488
        %v1688 = vpop.f32.mrb[0].mxu0
        %v1689 = vadd.f32 %v1600, %v1688
        %v1690 = vpop.f32.mrb[0].mxu0
        %1691 = vmatprep.mubr.f32.mxu0 0.0
        %1692 = vmatmul.mubr.f32.gmra.mrb[0].mxu0 %v491
        %v1693 = vpop.f32.mrb[0].mxu0
        %v1694 = vadd.f32 %v1600, %v1693
        %v1695 = vpop.f32.mrb[0].mxu0
        %1696 = vmatprep.mubr.f32.mxu0 0.0
        %1697 = vmatmul.mubr.f32.gmra.mrb[0].mxu0 %v494
        %v1698 = vpop.f32.mrb[0].mxu0
        %v1699 = vadd.f32 %v1600, %v1698
        %v1700 = vpop.f32.mrb[0].mxu0
        %1701 = vmatprep.mubr.f32.mxu0 0.0
        %1702 = vmatmul.mubr.f32.gmra.mrb[0].mxu0 %v497
        %v1703 = vpop.f32.mrb[0].mxu0
        %v1704 = vadd.f32 %v1600, %v1703
        %v1705 = vpop.f32.mrb[0].mxu0
        %1706 = vdwg.mxu0
        %v1708 = vlaneseq
        %v1709 = vshrl.u32 %v1708, 7
        %v1710 = vsub.s32 0, %v1709
        %v1711 = vrot.slane %v457, %v1710
        %1713 = vmatprep.subr.mxu0 0.0
        %1714 = vmatpush1.msra.mxu0 %v424
        %1715 = vmatprep.subr.mxu0 0.0
        %1716 = vmatpush1.msra.mxu0 %v425
        %1717 = vmatprep.subr.mxu0 0.0
        %1718 = vmatpush1.msra.mxu0 %v426
        %1719 = vmatprep.subr.mxu0 0.0
        %1720 = vmatpush1.msra.mxu0 %v427
        %1721 = vmatprep.subr.mxu0 0.0
        %1722 = vmatpush1.msra.mxu0 0.0
        %1723 = vmatprep.subr.mxu0 0.0
        %1724 = vmatpush1.msra.mxu0 0.0
        %1725 = vmatprep.subr.mxu0 0.0
        %1726 = vmatpush1.msra.mxu0 0.0
        %1727 = vmatprep.subr.mxu0 0.0
        %1728 = vmatpush1.msra.mxu0 0.0
        %1729 = vmatprep.subr.mxu0 0.0
        %1730 = vmatpush1.msra.mxu0 0.0
        %1731 = vmatprep.subr.mxu0 0.0
        %1732 = vmatpush1.msra.mxu0 0.0
        %1733 = vmatprep.subr.mxu0 0.0
        %1734 = vmatpush1.msra.mxu0 0.0
        %1735 = vmatprep.subr.mxu0 0.0
        %1736 = vmatpush1.msra.mxu0 0.0
        %1737 = vmatprep.subr.mxu0 0.0
        %1738 = vmatpush1.msra.mxu0 0.0
        %1739 = vmatprep.subr.mxu0 0.0
        %1740 = vmatpush1.msra.mxu0 0.0
        %1741 = vmatprep.subr.mxu0 0.0
        %1742 = vmatpush1.msra.mxu0 0.0
        %1743 = vmatprep.subr.mxu0 0.0
        %1744 = vmatpush1.msra.mxu0 0.0
        %1745 = vmatprep.subr.mxu0 0.0
        %1746 = vmatpush1.msra.mxu0 0.0
        %1747 = vmatprep.subr.mxu0 0.0
        %1748 = vmatpush1.msra.mxu0 0.0
        %1749 = vmatprep.subr.mxu0 0.0
        %1750 = vmatpush1.msra.mxu0 0.0
        %1751 = vmatprep.subr.mxu0 0.0
        %1752 = vmatpush1.msra.mxu0 0.0
        %1753 = vmatprep.subr.mxu0 0.0
        %1754 = vmatpush1.msra.mxu0 0.0
        %1755 = vmatprep.subr.mxu0 0.0
        %1756 = vmatpush1.msra.mxu0 0.0
        %1757 = vmatprep.subr.mxu0 0.0
        %1758 = vmatpush1.msra.mxu0 0.0
        %1759 = vmatprep.subr.mxu0 0.0
        %1760 = vmatpush1.msra.mxu0 0.0
        %1761 = vmatprep.subr.mxu0 0.0
        %1762 = vmatpush1.msra.mxu0 0.0
        %1763 = vmatprep.subr.mxu0 0.0
        %1764 = vmatpush1.msra.mxu0 0.0
        %1765 = vmatprep.subr.mxu0 0.0
        %1766 = vmatpush1.msra.mxu0 0.0
        %1767 = vmatprep.subr.mxu0 0.0
        %1768 = vmatpush1.msra.mxu0 0.0
        %1769 = vmatprep.subr.mxu0 0.0
        %1770 = vmatpush1.msra.mxu0 0.0
        %1771 = vmatprep.subr.mxu0 0.0
        %1772 = vmatpush1.msra.mxu0 0.0
        %1773 = vmatprep.subr.mxu0 0.0
        %1774 = vmatpush1.msra.mxu0 0.0
        %1775 = vmatprep.subr.mxu0 0.0
        %1776 = vmatpush1.msra.mxu0 0.0
        %1777 = vmatprep.mubr.f32.mxu0 0.0
        %1778 = vmatmul.mubr.f32.gmra.mrb[0].mxu0 %v476
        %v1779 = vpop.f32.mrb[0].mxu0
        %v1780 = vadd.f32 %v1711, %v1779
        %v1781 = vpop.f32.mrb[0].mxu0
        %1782 = vmatprep.mubr.f32.mxu0 0.0
        %1783 = vmatmul.mubr.f32.gmra.mrb[0].mxu0 %v479
        %v1784 = vpop.f32.mrb[0].mxu0
        %v1785 = vadd.f32 %v1711, %v1784
        %v1786 = vpop.f32.mrb[0].mxu0
        %1787 = vmatprep.mubr.f32.mxu0 0.0
        %1788 = vmatmul.mubr.f32.gmra.mrb[0].mxu0 %v482
        %v1789 = vpop.f32.mrb[0].mxu0
        %v1790 = vadd.f32 %v1711, %v1789
        %v1791 = vpop.f32.mrb[0].mxu0
        %1792 = vmatprep.mubr.f32.mxu0 0.0
        %1793 = vmatmul.mubr.f32.gmra.mrb[0].mxu0 %v485
        %v1794 = vpop.f32.mrb[0].mxu0
        %v1795 = vadd.f32 %v1711, %v1794
        %v1796 = vpop.f32.mrb[0].mxu0
        %1797 = vmatprep.mubr.f32.mxu0 0.0
        %1798 = vmatmul.mubr.f32.gmra.mrb[0].mxu0 %v488
        %v1799 = vpop.f32.mrb[0].mxu0
        %v1800 = vadd.f32 %v1711, %v1799
        %v1801 = vpop.f32.mrb[0].mxu0
        %1802 = vmatprep.mubr.f32.mxu0 0.0
        %1803 = vmatmul.mubr.f32.gmra.mrb[0].mxu0 %v491
        %v1804 = vpop.f32.mrb[0].mxu0
        %v1805 = vadd.f32 %v1711, %v1804
        %v1806 = vpop.f32.mrb[0].mxu0
        %1807 = vmatprep.mubr.f32.mxu0 0.0
        %1808 = vmatmul.mubr.f32.gmra.mrb[0].mxu0 %v494
        %v1809 = vpop.f32.mrb[0].mxu0
        %v1810 = vadd.f32 %v1711, %v1809
        %v1811 = vpop.f32.mrb[0].mxu0
        %1812 = vmatprep.mubr.f32.mxu0 0.0
        %1813 = vmatmul.mubr.f32.gmra.mrb[0].mxu0 %v497
        %v1814 = vpop.f32.mrb[0].mxu0
        %v1815 = vadd.f32 %v1711, %v1814
        %v1816 = vpop.f32.mrb[0].mxu0
        %1817 = vdwg.mxu0
        %v1819 = vlaneseq
        %v1820 = vshrl.u32 %v1819, 7
        %v1821 = vsub.s32 0, %v1820
        %v1822 = vrot.slane %v461, %v1821
        %1824 = vmatprep.subr.mxu0 0.0
        %1825 = vmatpush1.msra.mxu0 %v440
        %1826 = vmatprep.subr.mxu0 0.0
        %1827 = vmatpush1.msra.mxu0 %v441
        %1828 = vmatprep.subr.mxu0 0.0
        %1829 = vmatpush1.msra.mxu0 %v442
        %1830 = vmatprep.subr.mxu0 0.0
        %1831 = vmatpush1.msra.mxu0 %v443
        %1832 = vmatprep.subr.mxu0 0.0
        %1833 = vmatpush1.msra.mxu0 0.0
        %1834 = vmatprep.subr.mxu0 0.0
        %1835 = vmatpush1.msra.mxu0 0.0
        %1836 = vmatprep.subr.mxu0 0.0
        %1837 = vmatpush1.msra.mxu0 0.0
        %1838 = vmatprep.subr.mxu0 0.0
        %1839 = vmatpush1.msra.mxu0 0.0
        %1840 = vmatprep.subr.mxu0 0.0
        %1841 = vmatpush1.msra.mxu0 0.0
        %1842 = vmatprep.subr.mxu0 0.0
        %1843 = vmatpush1.msra.mxu0 0.0
        %1844 = vmatprep.subr.mxu0 0.0
        %1845 = vmatpush1.msra.mxu0 0.0
        %1846 = vmatprep.subr.mxu0 0.0
        %1847 = vmatpush1.msra.mxu0 0.0
        %1848 = vmatprep.subr.mxu0 0.0
        %1849 = vmatpush1.msra.mxu0 0.0
        %1850 = vmatprep.subr.mxu0 0.0
        %1851 = vmatpush1.msra.mxu0 0.0
        %1852 = vmatprep.subr.mxu0 0.0
        %1853 = vmatpush1.msra.mxu0 0.0
        %1854 = vmatprep.subr.mxu0 0.0
        %1855 = vmatpush1.msra.mxu0 0.0
        %1856 = vmatprep.subr.mxu0 0.0
        %1857 = vmatpush1.msra.mxu0 0.0
        %1858 = vmatprep.subr.mxu0 0.0
        %1859 = vmatpush1.msra.mxu0 0.0
        %1860 = vmatprep.subr.mxu0 0.0
        %1861 = vmatpush1.msra.mxu0 0.0
        %1862 = vmatprep.subr.mxu0 0.0
        %1863 = vmatpush1.msra.mxu0 0.0
        %1864 = vmatprep.subr.mxu0 0.0
        %1865 = vmatpush1.msra.mxu0 0.0
        %1866 = vmatprep.subr.mxu0 0.0
        %1867 = vmatpush1.msra.mxu0 0.0
        %1868 = vmatprep.subr.mxu0 0.0
        %1869 = vmatpush1.msra.mxu0 0.0
        %1870 = vmatprep.subr.mxu0 0.0
        %1871 = vmatpush1.msra.mxu0 0.0
        %1872 = vmatprep.subr.mxu0 0.0
        %1873 = vmatpush1.msra.mxu0 0.0
        %1874 = vmatprep.subr.mxu0 0.0
        %1875 = vmatpush1.msra.mxu0 0.0
        %1876 = vmatprep.subr.mxu0 0.0
        %1877 = vmatpush1.msra.mxu0 0.0
        %1878 = vmatprep.subr.mxu0 0.0
        %1879 = vmatpush1.msra.mxu0 0.0
        %1880 = vmatprep.subr.mxu0 0.0
        %1881 = vmatpush1.msra.mxu0 0.0
        %1882 = vmatprep.subr.mxu0 0.0
        %1883 = vmatpush1.msra.mxu0 0.0
        %1884 = vmatprep.subr.mxu0 0.0
        %1885 = vmatpush1.msra.mxu0 0.0
        %1886 = vmatprep.subr.mxu0 0.0
        %1887 = vmatpush1.msra.mxu0 0.0
        %1888 = vmatprep.mubr.f32.mxu0 0.0
        %1889 = vmatmul.mubr.f32.gmra.mrb[0].mxu0 %v476
        %v1890 = vpop.f32.mrb[0].mxu0
        %v1891 = vadd.f32 %v1822, %v1890
        %v1892 = vpop.f32.mrb[0].mxu0
        %1893 = vmatprep.mubr.f32.mxu0 0.0
        %1894 = vmatmul.mubr.f32.gmra.mrb[0].mxu0 %v479
        %v1895 = vpop.f32.mrb[0].mxu0
        %v1896 = vadd.f32 %v1822, %v1895
        %v1897 = vpop.f32.mrb[0].mxu0
        %1898 = vmatprep.mubr.f32.mxu0 0.0
        %1899 = vmatmul.mubr.f32.gmra.mrb[0].mxu0 %v482
        %v1900 = vpop.f32.mrb[0].mxu0
        %v1901 = vadd.f32 %v1822, %v1900
        %v1902 = vpop.f32.mrb[0].mxu0
        %1903 = vmatprep.mubr.f32.mxu0 0.0
        %1904 = vmatmul.mubr.f32.gmra.mrb[0].mxu0 %v485
        %v1905 = vpop.f32.mrb[0].mxu0
        %v1906 = vadd.f32 %v1822, %v1905
        %v1907 = vpop.f32.mrb[0].mxu0
        %1908 = vmatprep.mubr.f32.mxu0 0.0
        %1909 = vmatmul.mubr.f32.gmra.mrb[0].mxu0 %v488
        %v1910 = vpop.f32.mrb[0].mxu0
        %v1911 = vadd.f32 %v1822, %v1910
        %v1912 = vpop.f32.mrb[0].mxu0
        %1913 = vmatprep.mubr.f32.mxu0 0.0
        %1914 = vmatmul.mubr.f32.gmra.mrb[0].mxu0 %v491
        %v1915 = vpop.f32.mrb[0].mxu0
        %v1916 = vadd.f32 %v1822, %v1915
        %v1917 = vpop.f32.mrb[0].mxu0
        %1918 = vmatprep.mubr.f32.mxu0 0.0
        %1919 = vmatmul.mubr.f32.gmra.mrb[0].mxu0 %v494
        %v1920 = vpop.f32.mrb[0].mxu0
        %v1921 = vadd.f32 %v1822, %v1920
        %v1922 = vpop.f32.mrb[0].mxu0
        %1923 = vmatprep.mubr.f32.mxu0 0.0
        %1924 = vmatmul.mubr.f32.gmra.mrb[0].mxu0 %v497
        %v1925 = vpop.f32.mrb[0].mxu0
        %v1926 = vadd.f32 %v1822, %v1925
        %v1927 = vpop.f32.mrb[0].mxu0
        %1928 = vdwg.mxu0
        %v1930 = vsel %vm826, %v1669, 0
        %v1933 = vsel %vm826, %v1674, 0
        %v1936 = vsel %vm826, %v1780, 0
        %v1939 = vsel %vm826, %v1785, 0
        %1941 = vmatprep.subr.mxu0 0.0
        %1942 = vmatpush1.xpose.msra.mxu0 %v1936
        %1943 = vmatprep.subr.mxu0 0.0
        %1944 = vmatpush1.xpose.msra.mxu0 %v1939
        %1945 = vmatprep.subr.mxu0 0.0
        %1946 = vmatpush1.xpose.msra.mxu0 0.0
        %1947 = vmatprep.subr.mxu0 0.0
        %1948 = vmatpush1.xpose.msra.mxu0 0.0
        %1949 = vmatprep.subr.mxu0 0.0
        %1950 = vmatpush1.xpose.msra.mxu0 0.0
        %1951 = vmatprep.subr.mxu0 0.0
        %1952 = vmatpush1.xpose.msra.mxu0 0.0
        %1953 = vmatprep.subr.mxu0 0.0
        %1954 = vmatpush1.xpose.msra.mxu0 0.0
        %1955 = vmatprep.subr.mxu0 0.0
        %1956 = vmatpush1.xpose.msra.mxu0 0.0
        %1957 = vmatprep.subr.mxu0 0.0
        %1958 = vmatpush1.xpose.msra.mxu0 0.0
        %1959 = vmatprep.subr.mxu0 0.0
        %1960 = vmatpush1.xpose.msra.mxu0 0.0
        %1961 = vmatprep.subr.mxu0 0.0
        %1962 = vmatpush1.xpose.msra.mxu0 0.0
        %1963 = vmatprep.subr.mxu0 0.0
        %1964 = vmatpush1.xpose.msra.mxu0 0.0
        %1965 = vmatprep.subr.mxu0 0.0
        %1966 = vmatpush1.xpose.msra.mxu0 0.0
        %1967 = vmatprep.subr.mxu0 0.0
        %1968 = vmatpush1.xpose.msra.mxu0 0.0
        %1969 = vmatprep.subr.mxu0 0.0
        %1970 = vmatpush1.xpose.msra.mxu0 0.0
        %1971 = vmatprep.subr.mxu0 0.0
        %1972 = vmatpush1.xpose.msra.mxu0 0.0
        %1973 = vmatprep.subr.mxu0 0.0
        %1974 = vmatpush1.xpose.msra.mxu0 0.0
        %1975 = vmatprep.subr.mxu0 0.0
        %1976 = vmatpush1.xpose.msra.mxu0 0.0
        %1977 = vmatprep.subr.mxu0 0.0
        %1978 = vmatpush1.xpose.msra.mxu0 0.0
        %1979 = vmatprep.subr.mxu0 0.0
        %1980 = vmatpush1.xpose.msra.mxu0 0.0
        %1981 = vmatprep.subr.mxu0 0.0
        %1982 = vmatpush1.xpose.msra.mxu0 0.0
        %1983 = vmatprep.subr.mxu0 0.0
        %1984 = vmatpush1.xpose.msra.mxu0 0.0
        %1985 = vmatprep.subr.mxu0 0.0
        %1986 = vmatpush1.xpose.msra.mxu0 0.0
        %1987 = vmatprep.subr.mxu0 0.0
        %1988 = vmatpush1.xpose.msra.mxu0 0.0
        %1989 = vmatprep.subr.mxu0 0.0
        %1990 = vmatpush1.xpose.msra.mxu0 0.0
        %1991 = vmatprep.subr.mxu0 0.0
        %1992 = vmatpush1.xpose.msra.mxu0 0.0
        %1993 = vmatprep.subr.mxu0 0.0
        %1994 = vmatpush1.xpose.msra.mxu0 0.0
        %1995 = vmatprep.subr.mxu0 0.0
        %1996 = vmatpush1.xpose.msra.mxu0 0.0
        %1997 = vmatprep.subr.mxu0 0.0
        %1998 = vmatpush1.xpose.msra.mxu0 0.0
        %1999 = vmatprep.subr.mxu0 0.0
        %2000 = vmatpush1.xpose.msra.mxu0 0.0
        %2001 = vmatprep.subr.mxu0 0.0
        %2002 = vmatpush1.xpose.msra.mxu0 0.0
        %2003 = vmatprep.subr.mxu0 0.0
        %2004 = vmatpush1.xpose.msra.mxu0 0.0
        %2005 = vmatprep.mubr.f32.mxu0 0.0
        %2006 = vmatmul.mubr.f32.gmra.mrb[0].mxu0 %v1930
        %v2007 = vpop.f32.mrb[0].mxu0
        %v2008 = vadd.f32 0.0, %v2007
        %v2009 = vpop.f32.mrb[0].mxu0
        %2010 = vmatprep.mubr.f32.mxu0 0.0
        %2011 = vmatmul.mubr.f32.gmra.mrb[0].mxu0 %v1933
        %v2012 = vpop.f32.mrb[0].mxu0
        %v2013 = vadd.f32 0.0, %v2012
        %v2014 = vpop.f32.mrb[0].mxu0
        %2015 = vdwg.mxu0
        %v2017 = vsel %vm826, %v1679, 0
        %v2020 = vsel %vm826, %v1684, 0
        %v2023 = vsel %vm826, %v1790, 0
        %v2026 = vsel %vm826, %v1795, 0
        %2028 = vmatprep.subr.mxu0 0.0
        %2029 = vmatpush1.xpose.msra.mxu0 %v2023
        %2030 = vmatprep.subr.mxu0 0.0
        %2031 = vmatpush1.xpose.msra.mxu0 %v2026
        %2032 = vmatprep.subr.mxu0 0.0
        %2033 = vmatpush1.xpose.msra.mxu0 0.0
        %2034 = vmatprep.subr.mxu0 0.0
        %2035 = vmatpush1.xpose.msra.mxu0 0.0
        %2036 = vmatprep.subr.mxu0 0.0
        %2037 = vmatpush1.xpose.msra.mxu0 0.0
        %2038 = vmatprep.subr.mxu0 0.0
        %2039 = vmatpush1.xpose.msra.mxu0 0.0
        %2040 = vmatprep.subr.mxu0 0.0
        %2041 = vmatpush1.xpose.msra.mxu0 0.0
        %2042 = vmatprep.subr.mxu0 0.0
        %2043 = vmatpush1.xpose.msra.mxu0 0.0
        %2044 = vmatprep.subr.mxu0 0.0
        %2045 = vmatpush1.xpose.msra.mxu0 0.0
        %2046 = vmatprep.subr.mxu0 0.0
        %2047 = vmatpush1.xpose.msra.mxu0 0.0
        %2048 = vmatprep.subr.mxu0 0.0
        %2049 = vmatpush1.xpose.msra.mxu0 0.0
        %2050 = vmatprep.subr.mxu0 0.0
        %2051 = vmatpush1.xpose.msra.mxu0 0.0
        %2052 = vmatprep.subr.mxu0 0.0
        %2053 = vmatpush1.xpose.msra.mxu0 0.0
        %2054 = vmatprep.subr.mxu0 0.0
        %2055 = vmatpush1.xpose.msra.mxu0 0.0
        %2056 = vmatprep.subr.mxu0 0.0
        %2057 = vmatpush1.xpose.msra.mxu0 0.0
        %2058 = vmatprep.subr.mxu0 0.0
        %2059 = vmatpush1.xpose.msra.mxu0 0.0
        %2060 = vmatprep.subr.mxu0 0.0
        %2061 = vmatpush1.xpose.msra.mxu0 0.0
        %2062 = vmatprep.subr.mxu0 0.0
        %2063 = vmatpush1.xpose.msra.mxu0 0.0
        %2064 = vmatprep.subr.mxu0 0.0
        %2065 = vmatpush1.xpose.msra.mxu0 0.0
        %2066 = vmatprep.subr.mxu0 0.0
        %2067 = vmatpush1.xpose.msra.mxu0 0.0
        %2068 = vmatprep.subr.mxu0 0.0
        %2069 = vmatpush1.xpose.msra.mxu0 0.0
        %2070 = vmatprep.subr.mxu0 0.0
        %2071 = vmatpush1.xpose.msra.mxu0 0.0
        %2072 = vmatprep.subr.mxu0 0.0
        %2073 = vmatpush1.xpose.msra.mxu0 0.0
        %2074 = vmatprep.subr.mxu0 0.0
        %2075 = vmatpush1.xpose.msra.mxu0 0.0
        %2076 = vmatprep.subr.mxu0 0.0
        %2077 = vmatpush1.xpose.msra.mxu0 0.0
        %2078 = vmatprep.subr.mxu0 0.0
        %2079 = vmatpush1.xpose.msra.mxu0 0.0
        %2080 = vmatprep.subr.mxu0 0.0
        %2081 = vmatpush1.xpose.msra.mxu0 0.0
        %2082 = vmatprep.subr.mxu0 0.0
        %2083 = vmatpush1.xpose.msra.mxu0 0.0
        %2084 = vmatprep.subr.mxu0 0.0
        %2085 = vmatpush1.xpose.msra.mxu0 0.0
        %2086 = vmatprep.subr.mxu0 0.0
        %2087 = vmatpush1.xpose.msra.mxu0 0.0
        %2088 = vmatprep.subr.mxu0 0.0
        %2089 = vmatpush1.xpose.msra.mxu0 0.0
        %2090 = vmatprep.subr.mxu0 0.0
        %2091 = vmatpush1.xpose.msra.mxu0 0.0
        %2092 = vmatprep.mubr.f32.mxu0 0.0
        %2093 = vmatmul.mubr.f32.gmra.mrb[0].mxu0 %v2017
        %v2094 = vpop.f32.mrb[0].mxu0
        %v2095 = vadd.f32 0.0, %v2094
        %v2096 = vpop.f32.mrb[0].mxu0
        %2097 = vmatprep.mubr.f32.mxu0 0.0
        %2098 = vmatmul.mubr.f32.gmra.mrb[0].mxu0 %v2020
        %v2099 = vpop.f32.mrb[0].mxu0
        %v2100 = vadd.f32 0.0, %v2099
        %v2101 = vpop.f32.mrb[0].mxu0
        %2102 = vdwg.mxu0
        %v2104 = vsel %vm826, %v1689, 0
        %v2107 = vsel %vm826, %v1694, 0
        %v2110 = vsel %vm826, %v1800, 0
        %v2113 = vsel %vm826, %v1805, 0
        %2115 = vmatprep.subr.mxu0 0.0
        %2116 = vmatpush1.xpose.msra.mxu0 %v2110
        %2117 = vmatprep.subr.mxu0 0.0
        %2118 = vmatpush1.xpose.msra.mxu0 %v2113
        %2119 = vmatprep.subr.mxu0 0.0
        %2120 = vmatpush1.xpose.msra.mxu0 0.0
        %2121 = vmatprep.subr.mxu0 0.0
        %2122 = vmatpush1.xpose.msra.mxu0 0.0
        %2123 = vmatprep.subr.mxu0 0.0
        %2124 = vmatpush1.xpose.msra.mxu0 0.0
        %2125 = vmatprep.subr.mxu0 0.0
        %2126 = vmatpush1.xpose.msra.mxu0 0.0
        %2127 = vmatprep.subr.mxu0 0.0
        %2128 = vmatpush1.xpose.msra.mxu0 0.0
        %2129 = vmatprep.subr.mxu0 0.0
        %2130 = vmatpush1.xpose.msra.mxu0 0.0
        %2131 = vmatprep.subr.mxu0 0.0
        %2132 = vmatpush1.xpose.msra.mxu0 0.0
        %2133 = vmatprep.subr.mxu0 0.0
        %2134 = vmatpush1.xpose.msra.mxu0 0.0
        %2135 = vmatprep.subr.mxu0 0.0
        %2136 = vmatpush1.xpose.msra.mxu0 0.0
        %2137 = vmatprep.subr.mxu0 0.0
        %2138 = vmatpush1.xpose.msra.mxu0 0.0
        %2139 = vmatprep.subr.mxu0 0.0
        %2140 = vmatpush1.xpose.msra.mxu0 0.0
        %2141 = vmatprep.subr.mxu0 0.0
        %2142 = vmatpush1.xpose.msra.mxu0 0.0
        %2143 = vmatprep.subr.mxu0 0.0
        %2144 = vmatpush1.xpose.msra.mxu0 0.0
        %2145 = vmatprep.subr.mxu0 0.0
        %2146 = vmatpush1.xpose.msra.mxu0 0.0
        %2147 = vmatprep.subr.mxu0 0.0
        %2148 = vmatpush1.xpose.msra.mxu0 0.0
        %2149 = vmatprep.subr.mxu0 0.0
        %2150 = vmatpush1.xpose.msra.mxu0 0.0
        %2151 = vmatprep.subr.mxu0 0.0
        %2152 = vmatpush1.xpose.msra.mxu0 0.0
        %2153 = vmatprep.subr.mxu0 0.0
        %2154 = vmatpush1.xpose.msra.mxu0 0.0
        %2155 = vmatprep.subr.mxu0 0.0
        %2156 = vmatpush1.xpose.msra.mxu0 0.0
        %2157 = vmatprep.subr.mxu0 0.0
        %2158 = vmatpush1.xpose.msra.mxu0 0.0
        %2159 = vmatprep.subr.mxu0 0.0
        %2160 = vmatpush1.xpose.msra.mxu0 0.0
        %2161 = vmatprep.subr.mxu0 0.0
        %2162 = vmatpush1.xpose.msra.mxu0 0.0
        %2163 = vmatprep.subr.mxu0 0.0
        %2164 = vmatpush1.xpose.msra.mxu0 0.0
        %2165 = vmatprep.subr.mxu0 0.0
        %2166 = vmatpush1.xpose.msra.mxu0 0.0
        %2167 = vmatprep.subr.mxu0 0.0
        %2168 = vmatpush1.xpose.msra.mxu0 0.0
        %2169 = vmatprep.subr.mxu0 0.0
        %2170 = vmatpush1.xpose.msra.mxu0 0.0
        %2171 = vmatprep.subr.mxu0 0.0
        %2172 = vmatpush1.xpose.msra.mxu0 0.0
        %2173 = vmatprep.subr.mxu0 0.0
        %2174 = vmatpush1.xpose.msra.mxu0 0.0
        %2175 = vmatprep.subr.mxu0 0.0
        %2176 = vmatpush1.xpose.msra.mxu0 0.0
        %2177 = vmatprep.subr.mxu0 0.0
        %2178 = vmatpush1.xpose.msra.mxu0 0.0
        %2179 = vmatprep.mubr.f32.mxu0 0.0
        %2180 = vmatmul.mubr.f32.gmra.mrb[0].mxu0 %v2104
        %v2181 = vpop.f32.mrb[0].mxu0
        %v2182 = vadd.f32 0.0, %v2181
        %v2183 = vpop.f32.mrb[0].mxu0
        %2184 = vmatprep.mubr.f32.mxu0 0.0
        %2185 = vmatmul.mubr.f32.gmra.mrb[0].mxu0 %v2107
        %v2186 = vpop.f32.mrb[0].mxu0
        %v2187 = vadd.f32 0.0, %v2186
        %v2188 = vpop.f32.mrb[0].mxu0
        %2189 = vdwg.mxu0
        %v2191 = vsel %vm826, %v1699, 0
        %v2194 = vsel %vm826, %v1704, 0
        %v2197 = vsel %vm826, %v1810, 0
        %v2200 = vsel %vm826, %v1815, 0
        %2202 = vmatprep.subr.mxu0 0.0
        %2203 = vmatpush1.xpose.msra.mxu0 %v2197
        %2204 = vmatprep.subr.mxu0 0.0
        %2205 = vmatpush1.xpose.msra.mxu0 %v2200
        %2206 = vmatprep.subr.mxu0 0.0
        %2207 = vmatpush1.xpose.msra.mxu0 0.0
        %2208 = vmatprep.subr.mxu0 0.0
        %2209 = vmatpush1.xpose.msra.mxu0 0.0
        %2210 = vmatprep.subr.mxu0 0.0
        %2211 = vmatpush1.xpose.msra.mxu0 0.0
        %2212 = vmatprep.subr.mxu0 0.0
        %2213 = vmatpush1.xpose.msra.mxu0 0.0
        %2214 = vmatprep.subr.mxu0 0.0
        %2215 = vmatpush1.xpose.msra.mxu0 0.0
        %2216 = vmatprep.subr.mxu0 0.0
        %2217 = vmatpush1.xpose.msra.mxu0 0.0
        %2218 = vmatprep.subr.mxu0 0.0
        %2219 = vmatpush1.xpose.msra.mxu0 0.0
        %2220 = vmatprep.subr.mxu0 0.0
        %2221 = vmatpush1.xpose.msra.mxu0 0.0
        %2222 = vmatprep.subr.mxu0 0.0
        %2223 = vmatpush1.xpose.msra.mxu0 0.0
        %2224 = vmatprep.subr.mxu0 0.0
        %2225 = vmatpush1.xpose.msra.mxu0 0.0
        %2226 = vmatprep.subr.mxu0 0.0
        %2227 = vmatpush1.xpose.msra.mxu0 0.0
        %2228 = vmatprep.subr.mxu0 0.0
        %2229 = vmatpush1.xpose.msra.mxu0 0.0
        %2230 = vmatprep.subr.mxu0 0.0
        %2231 = vmatpush1.xpose.msra.mxu0 0.0
        %2232 = vmatprep.subr.mxu0 0.0
        %2233 = vmatpush1.xpose.msra.mxu0 0.0
        %2234 = vmatprep.subr.mxu0 0.0
        %2235 = vmatpush1.xpose.msra.mxu0 0.0
        %2236 = vmatprep.subr.mxu0 0.0
        %2237 = vmatpush1.xpose.msra.mxu0 0.0
        %2238 = vmatprep.subr.mxu0 0.0
        %2239 = vmatpush1.xpose.msra.mxu0 0.0
        %2240 = vmatprep.subr.mxu0 0.0
        %2241 = vmatpush1.xpose.msra.mxu0 0.0
        %2242 = vmatprep.subr.mxu0 0.0
        %2243 = vmatpush1.xpose.msra.mxu0 0.0
        %2244 = vmatprep.subr.mxu0 0.0
        %2245 = vmatpush1.xpose.msra.mxu0 0.0
        %2246 = vmatprep.subr.mxu0 0.0
        %2247 = vmatpush1.xpose.msra.mxu0 0.0
        %2248 = vmatprep.subr.mxu0 0.0
        %2249 = vmatpush1.xpose.msra.mxu0 0.0
        %2250 = vmatprep.subr.mxu0 0.0
        %2251 = vmatpush1.xpose.msra.mxu0 0.0
        %2252 = vmatprep.subr.mxu0 0.0
        %2253 = vmatpush1.xpose.msra.mxu0 0.0
        %2254 = vmatprep.subr.mxu0 0.0
        %2255 = vmatpush1.xpose.msra.mxu0 0.0
        %2256 = vmatprep.subr.mxu0 0.0
        %2257 = vmatpush1.xpose.msra.mxu0 0.0
        %2258 = vmatprep.subr.mxu0 0.0
        %2259 = vmatpush1.xpose.msra.mxu0 0.0
        %2260 = vmatprep.subr.mxu0 0.0
        %2261 = vmatpush1.xpose.msra.mxu0 0.0
        %2262 = vmatprep.subr.mxu0 0.0
        %2263 = vmatpush1.xpose.msra.mxu0 0.0
        %2264 = vmatprep.subr.mxu0 0.0
        %2265 = vmatpush1.xpose.msra.mxu0 0.0
        %2266 = vmatprep.mubr.f32.mxu0 0.0
        %2267 = vmatmul.mubr.f32.gmra.mrb[0].mxu0 %v2191
        %v2268 = vpop.f32.mrb[0].mxu0
        %v2269 = vadd.f32 0.0, %v2268
        %v2270 = vpop.f32.mrb[0].mxu0
        %2271 = vmatprep.mubr.f32.mxu0 0.0
        %2272 = vmatmul.mubr.f32.gmra.mrb[0].mxu0 %v2194
        %v2273 = vpop.f32.mrb[0].mxu0
        %v2274 = vadd.f32 0.0, %v2273
        %v2275 = vpop.f32.mrb[0].mxu0
        %2276 = vdwg.mxu0
        %v2277 = vadd.f32 %v2008, %v374
        %v2278 = vadd.f32 %v2013, %v375
        %v2279 = vadd.f32 %v2095, %v382
        %v2280 = vadd.f32 %v2100, %v383
        %v2281 = vadd.f32 %v2182, %v390
        %v2282 = vadd.f32 %v2187, %v391
        %v2283 = vadd.f32 %v2269, %v398
        %v2284 = vadd.f32 %v2274, %v399
        %v2285 = vsel %vm1183, %v2277, -inf
        %2286 = vmax.xlane.f32.xlu0 %v2285
        %v2287 = vpop.xlane.xlu0 %2286
        %v2288 = vsel %vm1183, %v2278, -inf
        %2289 = vmax.xlane.f32.xlu0 %v2288
        %v2290 = vpop.xlane.xlu0 %2289
        %v2291 = vsel %vm1183, %v2279, -inf
        %2292 = vmax.xlane.f32.xlu0 %v2291
        %v2293 = vpop.xlane.xlu0 %2292
        %v2294 = vsel %vm1183, %v2280, -inf
        %2295 = vmax.xlane.f32.xlu0 %v2294
        %v2296 = vpop.xlane.xlu0 %2295
        %v2297 = vsel %vm1183, %v2281, -inf
        %2298 = vmax.xlane.f32.xlu0 %v2297
        %v2299 = vpop.xlane.xlu0 %2298
        %v2300 = vsel %vm1183, %v2282, -inf
        %2301 = vmax.xlane.f32.xlu0 %v2300
        %v2302 = vpop.xlane.xlu0 %2301
        %v2303 = vsel %vm1183, %v2283, -inf
        %2304 = vmax.xlane.f32.xlu0 %v2303
        %v2305 = vpop.xlane.xlu0 %2304
        %v2306 = vsel %vm1183, %v2284, -inf
        %2307 = vmax.xlane.f32.xlu0 %v2306
        %v2308 = vpop.xlane.xlu0 %2307
        %v2309 = vsub.f32 %v2277, %v2287
        %v2310 = vsub.f32 %v2278, %v2290
        %v2311 = vsub.f32 %v2279, %v2293
        %v2312 = vsub.f32 %v2280, %v2296
        %v2313 = vsub.f32 %v2281, %v2299
        %v2314 = vsub.f32 %v2282, %v2302
        %v2315 = vsub.f32 %v2283, %v2305
        %v2316 = vsub.f32 %v2284, %v2308
        %v2317 = vmul.f32 %v2309, 1.442695
        %v2318 = vpow.pop %v2317
        %v2319 = vmul.f32 %v2310, 1.442695
        %v2320 = vpow.pop %v2319
        %v2321 = vmul.f32 %v2311, 1.442695
        %v2322 = vpow.pop %v2321
        %v2323 = vmul.f32 %v2312, 1.442695
        %v2324 = vpow.pop %v2323
        %v2325 = vmul.f32 %v2313, 1.442695
        %v2326 = vpow.pop %v2325
        %v2327 = vmul.f32 %v2314, 1.442695
        %v2328 = vpow.pop %v2327
        %v2329 = vmul.f32 %v2315, 1.442695
        %v2330 = vpow.pop %v2329
        %v2331 = vmul.f32 %v2316, 1.442695
        %v2332 = vpow.pop %v2331
        %v2333 = vsel %vm1183, %v2318, 0.0
        %2334 = vadd.xlane.f32.xlu0 %v2333
        %v2335 = vpop.xlane.xlu0 %2334
        %v2336 = vsel %vm1183, %v2320, 0.0
        %2337 = vadd.xlane.f32.xlu0 %v2336
        %v2338 = vpop.xlane.xlu0 %2337
        %v2339 = vsel %vm1183, %v2322, 0.0
        %2340 = vadd.xlane.f32.xlu0 %v2339
        %v2341 = vpop.xlane.xlu0 %2340
        %v2342 = vsel %vm1183, %v2324, 0.0
        %2343 = vadd.xlane.f32.xlu0 %v2342
        %v2344 = vpop.xlane.xlu0 %2343
        %v2345 = vsel %vm1183, %v2326, 0.0
        %2346 = vadd.xlane.f32.xlu0 %v2345
        %v2347 = vpop.xlane.xlu0 %2346
        %v2348 = vsel %vm1183, %v2328, 0.0
        %2349 = vadd.xlane.f32.xlu0 %v2348
        %v2350 = vpop.xlane.xlu0 %2349
        %v2351 = vsel %vm1183, %v2330, 0.0
        %2352 = vadd.xlane.f32.xlu0 %v2351
        %v2353 = vpop.xlane.xlu0 %2352
        %v2354 = vsel %vm1183, %v2332, 0.0
        %2355 = vadd.xlane.f32.xlu0 %v2354
        %v2356 = vpop.xlane.xlu0 %2355
        %v2357 = vrcp.pop %v2335
        %v2358 = vmul.f32 %v2318, %v2357
        %v2359 = vrcp.pop %v2338
        %v2360 = vmul.f32 %v2320, %v2359
        %v2361 = vrcp.pop %v2341
        %v2362 = vmul.f32 %v2322, %v2361
        %v2363 = vrcp.pop %v2344
        %v2364 = vmul.f32 %v2324, %v2363
        %v2365 = vrcp.pop %v2347
        %v2366 = vmul.f32 %v2326, %v2365
        %v2367 = vrcp.pop %v2350
        %v2368 = vmul.f32 %v2328, %v2367
        %v2369 = vrcp.pop %v2353
        %v2370 = vmul.f32 %v2330, %v2369
        %v2371 = vrcp.pop %v2356
        %v2372 = vmul.f32 %v2332, %v2371
        %v2374 = vsel %vm1183, %v2358, 0
        %v2377 = vsel %vm1183, %v2360, 0
        %2379 = vmatprep.subr.mxu0 0.0
        %2380 = vmatpush1.msra.mxu0 %v1891
        %2381 = vmatprep.subr.mxu0 0.0
        %2382 = vmatpush1.msra.mxu0 %v1896
        %2383 = vmatprep.subr.mxu0 0.0
        %2384 = vmatpush1.msra.mxu0 0.0
        %2385 = vmatprep.subr.mxu0 0.0
        %2386 = vmatpush1.msra.mxu0 0.0
        %2387 = vmatprep.subr.mxu0 0.0
        %2388 = vmatpush1.msra.mxu0 0.0
        %2389 = vmatprep.subr.mxu0 0.0
        %2390 = vmatpush1.msra.mxu0 0.0
        %2391 = vmatprep.subr.mxu0 0.0
        %2392 = vmatpush1.msra.mxu0 0.0
        %2393 = vmatprep.subr.mxu0 0.0
        %2394 = vmatpush1.msra.mxu0 0.0
        %2395 = vmatprep.subr.mxu0 0.0
        %2396 = vmatpush1.msra.mxu0 0.0
        %2397 = vmatprep.subr.mxu0 0.0
        %2398 = vmatpush1.msra.mxu0 0.0
        %2399 = vmatprep.subr.mxu0 0.0
        %2400 = vmatpush1.msra.mxu0 0.0
        %2401 = vmatprep.subr.mxu0 0.0
        %2402 = vmatpush1.msra.mxu0 0.0
        %2403 = vmatprep.subr.mxu0 0.0
        %2404 = vmatpush1.msra.mxu0 0.0
        %2405 = vmatprep.subr.mxu0 0.0
        %2406 = vmatpush1.msra.mxu0 0.0
        %2407 = vmatprep.subr.mxu0 0.0
        %2408 = vmatpush1.msra.mxu0 0.0
        %2409 = vmatprep.subr.mxu0 0.0
        %2410 = vmatpush1.msra.mxu0 0.0
        %2411 = vmatprep.subr.mxu0 0.0
        %2412 = vmatpush1.msra.mxu0 0.0
        %2413 = vmatprep.subr.mxu0 0.0
        %2414 = vmatpush1.msra.mxu0 0.0
        %2415 = vmatprep.subr.mxu0 0.0
        %2416 = vmatpush1.msra.mxu0 0.0
        %2417 = vmatprep.subr.mxu0 0.0
        %2418 = vmatpush1.msra.mxu0 0.0
        %2419 = vmatprep.subr.mxu0 0.0
        %2420 = vmatpush1.msra.mxu0 0.0
        %2421 = vmatprep.subr.mxu0 0.0
        %2422 = vmatpush1.msra.mxu0 0.0
        %2423 = vmatprep.subr.mxu0 0.0
        %2424 = vmatpush1.msra.mxu0 0.0
        %2425 = vmatprep.subr.mxu0 0.0
        %2426 = vmatpush1.msra.mxu0 0.0
        %2427 = vmatprep.subr.mxu0 0.0
        %2428 = vmatpush1.msra.mxu0 0.0
        %2429 = vmatprep.subr.mxu0 0.0
        %2430 = vmatpush1.msra.mxu0 0.0
        %2431 = vmatprep.subr.mxu0 0.0
        %2432 = vmatpush1.msra.mxu0 0.0
        %2433 = vmatprep.subr.mxu0 0.0
        %2434 = vmatpush1.msra.mxu0 0.0
        %2435 = vmatprep.subr.mxu0 0.0
        %2436 = vmatpush1.msra.mxu0 0.0
        %2437 = vmatprep.subr.mxu0 0.0
        %2438 = vmatpush1.msra.mxu0 0.0
        %2439 = vmatprep.subr.mxu0 0.0
        %2440 = vmatpush1.msra.mxu0 0.0
        %2441 = vmatprep.subr.mxu0 0.0
        %2442 = vmatpush1.msra.mxu0 0.0
        %2443 = vmatprep.mubr.f32.mxu0 0.0
        %2444 = vmatmul.mubr.f32.gmra.mrb[0].mxu0 %v2374
        %v2445 = vpop.f32.mrb[0].mxu0
        %v2446 = vadd.f32 0.0, %v2445
        %v2447 = vpop.f32.mrb[0].mxu0
        %2448 = vmatprep.mubr.f32.mxu0 0.0
        %2449 = vmatmul.mubr.f32.gmra.mrb[0].mxu0 %v2377
        %v2450 = vpop.f32.mrb[0].mxu0
        %v2451 = vadd.f32 0.0, %v2450
        %v2452 = vpop.f32.mrb[0].mxu0
        %2453 = vdwg.mxu0
        %v2455 = vsel %vm1183, %v2362, 0
        %v2458 = vsel %vm1183, %v2364, 0
        %2460 = vmatprep.subr.mxu0 0.0
        %2461 = vmatpush1.msra.mxu0 %v1901
        %2462 = vmatprep.subr.mxu0 0.0
        %2463 = vmatpush1.msra.mxu0 %v1906
        %2464 = vmatprep.subr.mxu0 0.0
        %2465 = vmatpush1.msra.mxu0 0.0
        %2466 = vmatprep.subr.mxu0 0.0
        %2467 = vmatpush1.msra.mxu0 0.0
        %2468 = vmatprep.subr.mxu0 0.0
        %2469 = vmatpush1.msra.mxu0 0.0
        %2470 = vmatprep.subr.mxu0 0.0
        %2471 = vmatpush1.msra.mxu0 0.0
        %2472 = vmatprep.subr.mxu0 0.0
        %2473 = vmatpush1.msra.mxu0 0.0
        %2474 = vmatprep.subr.mxu0 0.0
        %2475 = vmatpush1.msra.mxu0 0.0
        %2476 = vmatprep.subr.mxu0 0.0
        %2477 = vmatpush1.msra.mxu0 0.0
        %2478 = vmatprep.subr.mxu0 0.0
        %2479 = vmatpush1.msra.mxu0 0.0
        %2480 = vmatprep.subr.mxu0 0.0
        %2481 = vmatpush1.msra.mxu0 0.0
        %2482 = vmatprep.subr.mxu0 0.0
        %2483 = vmatpush1.msra.mxu0 0.0
        %2484 = vmatprep.subr.mxu0 0.0
        %2485 = vmatpush1.msra.mxu0 0.0
        %2486 = vmatprep.subr.mxu0 0.0
        %2487 = vmatpush1.msra.mxu0 0.0
        %2488 = vmatprep.subr.mxu0 0.0
        %2489 = vmatpush1.msra.mxu0 0.0
        %2490 = vmatprep.subr.mxu0 0.0
        %2491 = vmatpush1.msra.mxu0 0.0
        %2492 = vmatprep.subr.mxu0 0.0
        %2493 = vmatpush1.msra.mxu0 0.0
        %2494 = vmatprep.subr.mxu0 0.0
        %2495 = vmatpush1.msra.mxu0 0.0
        %2496 = vmatprep.subr.mxu0 0.0
        %2497 = vmatpush1.msra.mxu0 0.0
        %2498 = vmatprep.subr.mxu0 0.0
        %2499 = vmatpush1.msra.mxu0 0.0
        %2500 = vmatprep.subr.mxu0 0.0
        %2501 = vmatpush1.msra.mxu0 0.0
        %2502 = vmatprep.subr.mxu0 0.0
        %2503 = vmatpush1.msra.mxu0 0.0
        %2504 = vmatprep.subr.mxu0 0.0
        %2505 = vmatpush1.msra.mxu0 0.0
        %2506 = vmatprep.subr.mxu0 0.0
        %2507 = vmatpush1.msra.mxu0 0.0
        %2508 = vmatprep.subr.mxu0 0.0
        %2509 = vmatpush1.msra.mxu0 0.0
        %2510 = vmatprep.subr.mxu0 0.0
        %2511 = vmatpush1.msra.mxu0 0.0
        %2512 = vmatprep.subr.mxu0 0.0
        %2513 = vmatpush1.msra.mxu0 0.0
        %2514 = vmatprep.subr.mxu0 0.0
        %2515 = vmatpush1.msra.mxu0 0.0
        %2516 = vmatprep.subr.mxu0 0.0
        %2517 = vmatpush1.msra.mxu0 0.0
        %2518 = vmatprep.subr.mxu0 0.0
        %2519 = vmatpush1.msra.mxu0 0.0
        %2520 = vmatprep.subr.mxu0 0.0
        %2521 = vmatpush1.msra.mxu0 0.0
        %2522 = vmatprep.subr.mxu0 0.0
        %2523 = vmatpush1.msra.mxu0 0.0
        %2524 = vmatprep.mubr.f32.mxu0 0.0
        %2525 = vmatmul.mubr.f32.gmra.mrb[0].mxu0 %v2455
        %v2526 = vpop.f32.mrb[0].mxu0
        %v2527 = vadd.f32 0.0, %v2526
        %v2528 = vpop.f32.mrb[0].mxu0
        %2529 = vmatprep.mubr.f32.mxu0 0.0
        %2530 = vmatmul.mubr.f32.gmra.mrb[0].mxu0 %v2458
        %v2531 = vpop.f32.mrb[0].mxu0
        %v2532 = vadd.f32 0.0, %v2531
        %v2533 = vpop.f32.mrb[0].mxu0
        %2534 = vdwg.mxu0
        %v2536 = vsel %vm1183, %v2366, 0
        %v2539 = vsel %vm1183, %v2368, 0
        %2541 = vmatprep.subr.mxu0 0.0
        %2542 = vmatpush1.msra.mxu0 %v1911
        %2543 = vmatprep.subr.mxu0 0.0
        %2544 = vmatpush1.msra.mxu0 %v1916
        %2545 = vmatprep.subr.mxu0 0.0
        %2546 = vmatpush1.msra.mxu0 0.0
        %2547 = vmatprep.subr.mxu0 0.0
        %2548 = vmatpush1.msra.mxu0 0.0
        %2549 = vmatprep.subr.mxu0 0.0
        %2550 = vmatpush1.msra.mxu0 0.0
        %2551 = vmatprep.subr.mxu0 0.0
        %2552 = vmatpush1.msra.mxu0 0.0
        %2553 = vmatprep.subr.mxu0 0.0
        %2554 = vmatpush1.msra.mxu0 0.0
        %2555 = vmatprep.subr.mxu0 0.0
        %2556 = vmatpush1.msra.mxu0 0.0
        %2557 = vmatprep.subr.mxu0 0.0
        %2558 = vmatpush1.msra.mxu0 0.0
        %2559 = vmatprep.subr.mxu0 0.0
        %2560 = vmatpush1.msra.mxu0 0.0
        %2561 = vmatprep.subr.mxu0 0.0
        %2562 = vmatpush1.msra.mxu0 0.0
        %2563 = vmatprep.subr.mxu0 0.0
        %2564 = vmatpush1.msra.mxu0 0.0
        %2565 = vmatprep.subr.mxu0 0.0
        %2566 = vmatpush1.msra.mxu0 0.0
        %2567 = vmatprep.subr.mxu0 0.0
        %2568 = vmatpush1.msra.mxu0 0.0
        %2569 = vmatprep.subr.mxu0 0.0
        %2570 = vmatpush1.msra.mxu0 0.0
        %2571 = vmatprep.subr.mxu0 0.0
        %2572 = vmatpush1.msra.mxu0 0.0
        %2573 = vmatprep.subr.mxu0 0.0
        %2574 = vmatpush1.msra.mxu0 0.0
        %2575 = vmatprep.subr.mxu0 0.0
        %2576 = vmatpush1.msra.mxu0 0.0
        %2577 = vmatprep.subr.mxu0 0.0
        %2578 = vmatpush1.msra.mxu0 0.0
        %2579 = vmatprep.subr.mxu0 0.0
        %2580 = vmatpush1.msra.mxu0 0.0
        %2581 = vmatprep.subr.mxu0 0.0
        %2582 = vmatpush1.msra.mxu0 0.0
        %2583 = vmatprep.subr.mxu0 0.0
        %2584 = vmatpush1.msra.mxu0 0.0
        %2585 = vmatprep.subr.mxu0 0.0
        %2586 = vmatpush1.msra.mxu0 0.0
        %2587 = vmatprep.subr.mxu0 0.0
        %2588 = vmatpush1.msra.mxu0 0.0
        %2589 = vmatprep.subr.mxu0 0.0
        %2590 = vmatpush1.msra.mxu0 0.0
        %2591 = vmatprep.subr.mxu0 0.0
        %2592 = vmatpush1.msra.mxu0 0.0
        %2593 = vmatprep.subr.mxu0 0.0
        %2594 = vmatpush1.msra.mxu0 0.0
        %2595 = vmatprep.subr.mxu0 0.0
        %2596 = vmatpush1.msra.mxu0 0.0
        %2597 = vmatprep.subr.mxu0 0.0
        %2598 = vmatpush1.msra.mxu0 0.0
        %2599 = vmatprep.subr.mxu0 0.0
        %2600 = vmatpush1.msra.mxu0 0.0
        %2601 = vmatprep.subr.mxu0 0.0
        %2602 = vmatpush1.msra.mxu0 0.0
        %2603 = vmatprep.subr.mxu0 0.0
        %2604 = vmatpush1.msra.mxu0 0.0
        %2605 = vmatprep.mubr.f32.mxu0 0.0
        %2606 = vmatmul.mubr.f32.gmra.mrb[0].mxu0 %v2536
        %v2607 = vpop.f32.mrb[0].mxu0
        %v2608 = vadd.f32 0.0, %v2607
        %v2609 = vpop.f32.mrb[0].mxu0
        %2610 = vmatprep.mubr.f32.mxu0 0.0
        %2611 = vmatmul.mubr.f32.gmra.mrb[0].mxu0 %v2539
        %v2612 = vpop.f32.mrb[0].mxu0
        %v2613 = vadd.f32 0.0, %v2612
        %v2614 = vpop.f32.mrb[0].mxu0
        %2615 = vdwg.mxu0
        %v2617 = vsel %vm1183, %v2370, 0
        %v2620 = vsel %vm1183, %v2372, 0
        %2622 = vmatprep.subr.mxu0 0.0
        %2623 = vmatpush1.msra.mxu0 %v1921
        %2624 = vmatprep.subr.mxu0 0.0
        %2625 = vmatpush1.msra.mxu0 %v1926
        %2626 = vmatprep.subr.mxu0 0.0
        %2627 = vmatpush1.msra.mxu0 0.0
        %2628 = vmatprep.subr.mxu0 0.0
        %2629 = vmatpush1.msra.mxu0 0.0
        %2630 = vmatprep.subr.mxu0 0.0
        %2631 = vmatpush1.msra.mxu0 0.0
        %2632 = vmatprep.subr.mxu0 0.0
        %2633 = vmatpush1.msra.mxu0 0.0
        %2634 = vmatprep.subr.mxu0 0.0
        %2635 = vmatpush1.msra.mxu0 0.0
        %2636 = vmatprep.subr.mxu0 0.0
        %2637 = vmatpush1.msra.mxu0 0.0
        %2638 = vmatprep.subr.mxu0 0.0
        %2639 = vmatpush1.msra.mxu0 0.0
        %2640 = vmatprep.subr.mxu0 0.0
        %2641 = vmatpush1.msra.mxu0 0.0
        %2642 = vmatprep.subr.mxu0 0.0
        %2643 = vmatpush1.msra.mxu0 0.0
        %2644 = vmatprep.subr.mxu0 0.0
        %2645 = vmatpush1.msra.mxu0 0.0
        %2646 = vmatprep.subr.mxu0 0.0
        %2647 = vmatpush1.msra.mxu0 0.0
        %2648 = vmatprep.subr.mxu0 0.0
        %2649 = vmatpush1.msra.mxu0 0.0
        %2650 = vmatprep.subr.mxu0 0.0
        %2651 = vmatpush1.msra.mxu0 0.0
        %2652 = vmatprep.subr.mxu0 0.0
        %2653 = vmatpush1.msra.mxu0 0.0
        %2654 = vmatprep.subr.mxu0 0.0
        %2655 = vmatpush1.msra.mxu0 0.0
        %2656 = vmatprep.subr.mxu0 0.0
        %2657 = vmatpush1.msra.mxu0 0.0
        %2658 = vmatprep.subr.mxu0 0.0
        %2659 = vmatpush1.msra.mxu0 0.0
        %2660 = vmatprep.subr.mxu0 0.0
        %2661 = vmatpush1.msra.mxu0 0.0
        %2662 = vmatprep.subr.mxu0 0.0
        %2663 = vmatpush1.msra.mxu0 0.0
        %2664 = vmatprep.subr.mxu0 0.0
        %2665 = vmatpush1.msra.mxu0 0.0
        %2666 = vmatprep.subr.mxu0 0.0
        %2667 = vmatpush1.msra.mxu0 0.0
        %2668 = vmatprep.subr.mxu0 0.0
        %2669 = vmatpush1.msra.mxu0 0.0
        %2670 = vmatprep.subr.mxu0 0.0
        %2671 = vmatpush1.msra.mxu0 0.0
        %2672 = vmatprep.subr.mxu0 0.0
        %2673 = vmatpush1.msra.mxu0 0.0
        %2674 = vmatprep.subr.mxu0 0.0
        %2675 = vmatpush1.msra.mxu0 0.0
        %2676 = vmatprep.subr.mxu0 0.0
        %2677 = vmatpush1.msra.mxu0 0.0
        %2678 = vmatprep.subr.mxu0 0.0
        %2679 = vmatpush1.msra.mxu0 0.0
        %2680 = vmatprep.subr.mxu0 0.0
        %2681 = vmatpush1.msra.mxu0 0.0
        %2682 = vmatprep.subr.mxu0 0.0
        %2683 = vmatpush1.msra.mxu0 0.0
        %2684 = vmatprep.subr.mxu0 0.0
        %2685 = vmatpush1.msra.mxu0 0.0
        %2686 = vmatprep.mubr.f32.mxu0 0.0
        %2687 = vmatmul.mubr.f32.gmra.mrb[0].mxu0 %v2617
        %v2688 = vpop.f32.mrb[0].mxu0
        %v2689 = vadd.f32 0.0, %v2688
        %v2690 = vpop.f32.mrb[0].mxu0
        %2691 = vmatprep.mubr.f32.mxu0 0.0
        %2692 = vmatmul.mubr.f32.gmra.mrb[0].mxu0 %v2620
        %v2693 = vpop.f32.mrb[0].mxu0
        %v2694 = vadd.f32 0.0, %v2693
        %v2695 = vpop.f32.mrb[0].mxu0
        %2696 = vdwg.mxu0
        %v2698 = vsel %vm826, %v2446, 0
        %v2701 = vsel %vm826, %v2451, 0
        %v2704 = vsel %vm826, %v2527, 0
        %v2707 = vsel %vm826, %v2532, 0
        %v2710 = vsel %vm826, %v2608, 0
        %v2713 = vsel %vm826, %v2613, 0
        %v2716 = vsel %vm826, %v2689, 0
        %v2719 = vsel %vm826, %v2694, 0
        %2721 = vmatprep.subr.mxu0 0.0
        %2722 = vmatpush1.msra.mxu0 %v465
        %2723 = vmatprep.subr.mxu0 0.0
        %2724 = vmatpush1.msra.mxu0 0.0
        %2725 = vmatprep.subr.mxu0 0.0
        %2726 = vmatpush1.msra.mxu0 0.0
        %2727 = vmatprep.subr.mxu0 0.0
        %2728 = vmatpush1.msra.mxu0 0.0
        %2729 = vmatprep.subr.mxu0 0.0
        %2730 = vmatpush1.msra.mxu0 0.0
        %2731 = vmatprep.subr.mxu0 0.0
        %2732 = vmatpush1.msra.mxu0 0.0
        %2733 = vmatprep.subr.mxu0 0.0
        %2734 = vmatpush1.msra.mxu0 0.0
        %2735 = vmatprep.subr.mxu0 0.0
        %2736 = vmatpush1.msra.mxu0 0.0
        %2737 = vmatprep.subr.mxu0 0.0
        %2738 = vmatpush1.msra.mxu0 0.0
        %2739 = vmatprep.subr.mxu0 0.0
        %2740 = vmatpush1.msra.mxu0 0.0
        %2741 = vmatprep.subr.mxu0 0.0
        %2742 = vmatpush1.msra.mxu0 0.0
        %2743 = vmatprep.subr.mxu0 0.0
        %2744 = vmatpush1.msra.mxu0 0.0
        %2745 = vmatprep.subr.mxu0 0.0
        %2746 = vmatpush1.msra.mxu0 0.0
        %2747 = vmatprep.subr.mxu0 0.0
        %2748 = vmatpush1.msra.mxu0 0.0
        %2749 = vmatprep.subr.mxu0 0.0
        %2750 = vmatpush1.msra.mxu0 0.0
        %2751 = vmatprep.subr.mxu0 0.0
        %2752 = vmatpush1.msra.mxu0 0.0
        %2753 = vmatprep.subr.mxu0 0.0
        %2754 = vmatpush1.msra.mxu0 0.0
        %2755 = vmatprep.subr.mxu0 0.0
        %2756 = vmatpush1.msra.mxu0 0.0
        %2757 = vmatprep.subr.mxu0 0.0
        %2758 = vmatpush1.msra.mxu0 0.0
        %2759 = vmatprep.subr.mxu0 0.0
        %2760 = vmatpush1.msra.mxu0 0.0
        %2761 = vmatprep.subr.mxu0 0.0
        %2762 = vmatpush1.msra.mxu0 0.0
        %2763 = vmatprep.subr.mxu0 0.0
        %2764 = vmatpush1.msra.mxu0 0.0
        %2765 = vmatprep.subr.mxu0 0.0
        %2766 = vmatpush1.msra.mxu0 0.0
        %2767 = vmatprep.subr.mxu0 0.0
        %2768 = vmatpush1.msra.mxu0 0.0
        %2769 = vmatprep.subr.mxu0 0.0
        %2770 = vmatpush1.msra.mxu0 0.0
        %2771 = vmatprep.subr.mxu0 0.0
        %2772 = vmatpush1.msra.mxu0 0.0
        %2773 = vmatprep.subr.mxu0 0.0
        %2774 = vmatpush1.msra.mxu0 0.0
        %2775 = vmatprep.subr.mxu0 0.0
        %2776 = vmatpush1.msra.mxu0 0.0
        %2777 = vmatprep.subr.mxu0 0.0
        %2778 = vmatpush1.msra.mxu0 0.0
        %2779 = vmatprep.subr.mxu0 0.0
        %2780 = vmatpush1.msra.mxu0 0.0
        %2781 = vmatprep.subr.mxu0 0.0
        %2782 = vmatpush1.msra.mxu0 0.0
        %2783 = vmatprep.subr.mxu0 0.0
        %2784 = vmatpush1.msra.mxu0 0.0
        %2785 = vmatprep.mubr.f32.mxu0 0.0
        %2786 = vmatmul.mubr.f32.gmra.mrb[0].mxu0 %v2698
        %v2787 = vpop.f32.mrb[0].mxu0
        %v2788 = vadd.f32 0.0, %v2787
        %v2789 = vpop.f32.mrb[0].mxu0
        %2790 = vmatprep.mubr.f32.mxu0 0.0
        %2791 = vmatmul.mubr.f32.gmra.mrb[0].mxu0 %v2701
        %v2792 = vpop.f32.mrb[0].mxu0
        %v2793 = vadd.f32 0.0, %v2792
        %v2794 = vpop.f32.mrb[0].mxu0
        %2795 = vmatprep.mubr.f32.mxu0 0.0
        %2796 = vmatmul.mubr.f32.gmra.mrb[0].mxu0 %v2704
        %v2797 = vpop.f32.mrb[0].mxu0
        %v2798 = vadd.f32 0.0, %v2797
        %v2799 = vpop.f32.mrb[0].mxu0
        %2800 = vmatprep.mubr.f32.mxu0 0.0
        %2801 = vmatmul.mubr.f32.gmra.mrb[0].mxu0 %v2707
        %v2802 = vpop.f32.mrb[0].mxu0
        %v2803 = vadd.f32 0.0, %v2802
        %v2804 = vpop.f32.mrb[0].mxu0
        %2805 = vmatprep.mubr.f32.mxu0 0.0
        %2806 = vmatmul.mubr.f32.gmra.mrb[0].mxu0 %v2710
        %v2807 = vpop.f32.mrb[0].mxu0
        %v2808 = vadd.f32 0.0, %v2807
        %v2809 = vpop.f32.mrb[0].mxu0
        %2810 = vmatprep.mubr.f32.mxu0 0.0
        %2811 = vmatmul.mubr.f32.gmra.mrb[0].mxu0 %v2713
        %v2812 = vpop.f32.mrb[0].mxu0
        %v2813 = vadd.f32 0.0, %v2812
        %v2814 = vpop.f32.mrb[0].mxu0
        %2815 = vmatprep.mubr.f32.mxu0 0.0
        %2816 = vmatmul.mubr.f32.gmra.mrb[0].mxu0 %v2716
        %v2817 = vpop.f32.mrb[0].mxu0
        %v2818 = vadd.f32 0.0, %v2817
        %v2819 = vpop.f32.mrb[0].mxu0
        %2820 = vmatprep.mubr.f32.mxu0 0.0
        %2821 = vmatmul.mubr.f32.gmra.mrb[0].mxu0 %v2719
        %v2822 = vpop.f32.mrb[0].mxu0
        %v2823 = vadd.f32 0.0, %v2822
        %v2824 = vpop.f32.mrb[0].mxu0
        %2825 = vdwg.mxu0
        %v2827 = vsel %vm826, %v1345, 0
        %v2830 = vsel %vm826, %v1350, 0
        %v2833 = vsel %vm826, %v1426, 0
        %v2836 = vsel %vm826, %v1431, 0
        %v2839 = vsel %vm826, %v1507, 0
        %v2842 = vsel %vm826, %v1512, 0
        %v2845 = vsel %vm826, %v1588, 0
        %v2848 = vsel %vm826, %v1593, 0
        %2850 = vmatprep.subr.mxu0 0.0
        %2851 = vmatpush1.msra.mxu0 %v464
        %2852 = vmatprep.subr.mxu0 0.0
        %2853 = vmatpush1.msra.mxu0 0.0
        %2854 = vmatprep.subr.mxu0 0.0
        %2855 = vmatpush1.msra.mxu0 0.0
        %2856 = vmatprep.subr.mxu0 0.0
        %2857 = vmatpush1.msra.mxu0 0.0
        %2858 = vmatprep.subr.mxu0 0.0
        %2859 = vmatpush1.msra.mxu0 0.0
        %2860 = vmatprep.subr.mxu0 0.0
        %2861 = vmatpush1.msra.mxu0 0.0
        %2862 = vmatprep.subr.mxu0 0.0
        %2863 = vmatpush1.msra.mxu0 0.0
        %2864 = vmatprep.subr.mxu0 0.0
        %2865 = vmatpush1.msra.mxu0 0.0
        %2866 = vmatprep.subr.mxu0 0.0
        %2867 = vmatpush1.msra.mxu0 0.0
        %2868 = vmatprep.subr.mxu0 0.0
        %2869 = vmatpush1.msra.mxu0 0.0
        %2870 = vmatprep.subr.mxu0 0.0
        %2871 = vmatpush1.msra.mxu0 0.0
        %2872 = vmatprep.subr.mxu0 0.0
        %2873 = vmatpush1.msra.mxu0 0.0
        %2874 = vmatprep.subr.mxu0 0.0
        %2875 = vmatpush1.msra.mxu0 0.0
        %2876 = vmatprep.subr.mxu0 0.0
        %2877 = vmatpush1.msra.mxu0 0.0
        %2878 = vmatprep.subr.mxu0 0.0
        %2879 = vmatpush1.msra.mxu0 0.0
        %2880 = vmatprep.subr.mxu0 0.0
        %2881 = vmatpush1.msra.mxu0 0.0
        %2882 = vmatprep.subr.mxu0 0.0
        %2883 = vmatpush1.msra.mxu0 0.0
        %2884 = vmatprep.subr.mxu0 0.0
        %2885 = vmatpush1.msra.mxu0 0.0
        %2886 = vmatprep.subr.mxu0 0.0
        %2887 = vmatpush1.msra.mxu0 0.0
        %2888 = vmatprep.subr.mxu0 0.0
        %2889 = vmatpush1.msra.mxu0 0.0
        %2890 = vmatprep.subr.mxu0 0.0
        %2891 = vmatpush1.msra.mxu0 0.0
        %2892 = vmatprep.subr.mxu0 0.0
        %2893 = vmatpush1.msra.mxu0 0.0
        %2894 = vmatprep.subr.mxu0 0.0
        %2895 = vmatpush1.msra.mxu0 0.0
        %2896 = vmatprep.subr.mxu0 0.0
        %2897 = vmatpush1.msra.mxu0 0.0
        %2898 = vmatprep.subr.mxu0 0.0
        %2899 = vmatpush1.msra.mxu0 0.0
        %2900 = vmatprep.subr.mxu0 0.0
        %2901 = vmatpush1.msra.mxu0 0.0
        %2902 = vmatprep.subr.mxu0 0.0
        %2903 = vmatpush1.msra.mxu0 0.0
        %2904 = vmatprep.subr.mxu0 0.0
        %2905 = vmatpush1.msra.mxu0 0.0
        %2906 = vmatprep.subr.mxu0 0.0
        %2907 = vmatpush1.msra.mxu0 0.0
        %2908 = vmatprep.subr.mxu0 0.0
        %2909 = vmatpush1.msra.mxu0 0.0
        %2910 = vmatprep.subr.mxu0 0.0
        %2911 = vmatpush1.msra.mxu0 0.0
        %2912 = vmatprep.subr.mxu0 0.0
        %2913 = vmatpush1.msra.mxu0 0.0
        %2914 = vmatprep.mubr.f32.mxu0 0.0
        %2915 = vmatmul.mubr.f32.gmra.mrb[0].mxu0 %v2827
        %v2916 = vpop.f32.mrb[0].mxu0
        %v2917 = vadd.f32 %v2788, %v2916
        %v2918 = vpop.f32.mrb[0].mxu0
        %2919 = vmatprep.mubr.f32.mxu0 0.0
        %2920 = vmatmul.mubr.f32.gmra.mrb[0].mxu0 %v2830
        %v2921 = vpop.f32.mrb[0].mxu0
        %v2922 = vadd.f32 %v2793, %v2921
        %v2923 = vpop.f32.mrb[0].mxu0
        %2924 = vmatprep.mubr.f32.mxu0 0.0
        %2925 = vmatmul.mubr.f32.gmra.mrb[0].mxu0 %v2833
        %v2926 = vpop.f32.mrb[0].mxu0
        %v2927 = vadd.f32 %v2798, %v2926
        %v2928 = vpop.f32.mrb[0].mxu0
        %2929 = vmatprep.mubr.f32.mxu0 0.0
        %2930 = vmatmul.mubr.f32.gmra.mrb[0].mxu0 %v2836
        %v2931 = vpop.f32.mrb[0].mxu0
        %v2932 = vadd.f32 %v2803, %v2931
        %v2933 = vpop.f32.mrb[0].mxu0
        %2934 = vmatprep.mubr.f32.mxu0 0.0
        %2935 = vmatmul.mubr.f32.gmra.mrb[0].mxu0 %v2839
        %v2936 = vpop.f32.mrb[0].mxu0
        %v2937 = vadd.f32 %v2808, %v2936
        %v2938 = vpop.f32.mrb[0].mxu0
        %2939 = vmatprep.mubr.f32.mxu0 0.0
        %2940 = vmatmul.mubr.f32.gmra.mrb[0].mxu0 %v2842
        %v2941 = vpop.f32.mrb[0].mxu0
        %v2942 = vadd.f32 %v2813, %v2941
        %v2943 = vpop.f32.mrb[0].mxu0
        %2944 = vmatprep.mubr.f32.mxu0 0.0
        %2945 = vmatmul.mubr.f32.gmra.mrb[0].mxu0 %v2845
        %v2946 = vpop.f32.mrb[0].mxu0
        %v2947 = vadd.f32 %v2818, %v2946
        %v2948 = vpop.f32.mrb[0].mxu0
        %2949 = vmatprep.mubr.f32.mxu0 0.0
        %2950 = vmatmul.mubr.f32.gmra.mrb[0].mxu0 %v2848
        %v2951 = vpop.f32.mrb[0].mxu0
        %v2952 = vadd.f32 %v2823, %v2951
        %v2953 = vpop.f32.mrb[0].mxu0
        %2954 = vdwg.mxu0
        %v2956 = vlaneseq
        %v2957 = vshrl.u32 %v2956, 7
        %v2958 = vsub.s32 0, %v2957
        %v2959 = vrot.slane %v454, %v2958
        %2961 = vmatprep.subr.mxu0 0.0
        %2962 = vmatpush1.msra.mxu0 %v412
        %2963 = vmatprep.subr.mxu0 0.0
        %2964 = vmatpush1.msra.mxu0 %v413
        %2965 = vmatprep.subr.mxu0 0.0
        %2966 = vmatpush1.msra.mxu0 %v414
        %2967 = vmatprep.subr.mxu0 0.0
        %2968 = vmatpush1.msra.mxu0 %v415
        %2969 = vmatprep.subr.mxu0 0.0
        %2970 = vmatpush1.msra.mxu0 0.0
        %2971 = vmatprep.subr.mxu0 0.0
        %2972 = vmatpush1.msra.mxu0 0.0
        %2973 = vmatprep.subr.mxu0 0.0
        %2974 = vmatpush1.msra.mxu0 0.0
        %2975 = vmatprep.subr.mxu0 0.0
        %2976 = vmatpush1.msra.mxu0 0.0
        %2977 = vmatprep.subr.mxu0 0.0
        %2978 = vmatpush1.msra.mxu0 0.0
        %2979 = vmatprep.subr.mxu0 0.0
        %2980 = vmatpush1.msra.mxu0 0.0
        %2981 = vmatprep.subr.mxu0 0.0
        %2982 = vmatpush1.msra.mxu0 0.0
        %2983 = vmatprep.subr.mxu0 0.0
        %2984 = vmatpush1.msra.mxu0 0.0
        %2985 = vmatprep.subr.mxu0 0.0
        %2986 = vmatpush1.msra.mxu0 0.0
        %2987 = vmatprep.subr.mxu0 0.0
        %2988 = vmatpush1.msra.mxu0 0.0
        %2989 = vmatprep.subr.mxu0 0.0
        %2990 = vmatpush1.msra.mxu0 0.0
        %2991 = vmatprep.subr.mxu0 0.0
        %2992 = vmatpush1.msra.mxu0 0.0
        %2993 = vmatprep.subr.mxu0 0.0
        %2994 = vmatpush1.msra.mxu0 0.0
        %2995 = vmatprep.subr.mxu0 0.0
        %2996 = vmatpush1.msra.mxu0 0.0
        %2997 = vmatprep.subr.mxu0 0.0
        %2998 = vmatpush1.msra.mxu0 0.0
        %2999 = vmatprep.subr.mxu0 0.0
        %3000 = vmatpush1.msra.mxu0 0.0
        %3001 = vmatprep.subr.mxu0 0.0
        %3002 = vmatpush1.msra.mxu0 0.0
        %3003 = vmatprep.subr.mxu0 0.0
        %3004 = vmatpush1.msra.mxu0 0.0
        %3005 = vmatprep.subr.mxu0 0.0
        %3006 = vmatpush1.msra.mxu0 0.0
        %3007 = vmatprep.subr.mxu0 0.0
        %3008 = vmatpush1.msra.mxu0 0.0
        %3009 = vmatprep.subr.mxu0 0.0
        %3010 = vmatpush1.msra.mxu0 0.0
        %3011 = vmatprep.subr.mxu0 0.0
        %3012 = vmatpush1.msra.mxu0 0.0
        %3013 = vmatprep.subr.mxu0 0.0
        %3014 = vmatpush1.msra.mxu0 0.0
        %3015 = vmatprep.subr.mxu0 0.0
        %3016 = vmatpush1.msra.mxu0 0.0
        %3017 = vmatprep.subr.mxu0 0.0
        %3018 = vmatpush1.msra.mxu0 0.0
        %3019 = vmatprep.subr.mxu0 0.0
        %3020 = vmatpush1.msra.mxu0 0.0
        %3021 = vmatprep.subr.mxu0 0.0
        %3022 = vmatpush1.msra.mxu0 0.0
        %3023 = vmatprep.subr.mxu0 0.0
        %3024 = vmatpush1.msra.mxu0 0.0
        %3025 = vmatprep.mubr.f32.mxu0 0.0
        %3026 = vmatmul.mubr.f32.gmra.mrb[0].mxu0 %v476
        %v3027 = vpop.f32.mrb[0].mxu0
        %v3028 = vadd.f32 %v2959, %v3027
        %v3029 = vpop.f32.mrb[0].mxu0
        %3030 = vmatprep.mubr.f32.mxu0 0.0
        %3031 = vmatmul.mubr.f32.gmra.mrb[0].mxu0 %v479
        %v3032 = vpop.f32.mrb[0].mxu0
        %v3033 = vadd.f32 %v2959, %v3032
        %v3034 = vpop.f32.mrb[0].mxu0
        %3035 = vmatprep.mubr.f32.mxu0 0.0
        %3036 = vmatmul.mubr.f32.gmra.mrb[0].mxu0 %v482
        %v3037 = vpop.f32.mrb[0].mxu0
        %v3038 = vadd.f32 %v2959, %v3037
        %v3039 = vpop.f32.mrb[0].mxu0
        %3040 = vmatprep.mubr.f32.mxu0 0.0
        %3041 = vmatmul.mubr.f32.gmra.mrb[0].mxu0 %v485
        %v3042 = vpop.f32.mrb[0].mxu0
        %v3043 = vadd.f32 %v2959, %v3042
        %v3044 = vpop.f32.mrb[0].mxu0
        %3045 = vmatprep.mubr.f32.mxu0 0.0
        %3046 = vmatmul.mubr.f32.gmra.mrb[0].mxu0 %v488
        %v3047 = vpop.f32.mrb[0].mxu0
        %v3048 = vadd.f32 %v2959, %v3047
        %v3049 = vpop.f32.mrb[0].mxu0
        %3050 = vmatprep.mubr.f32.mxu0 0.0
        %3051 = vmatmul.mubr.f32.gmra.mrb[0].mxu0 %v491
        %v3052 = vpop.f32.mrb[0].mxu0
        %v3053 = vadd.f32 %v2959, %v3052
        %v3054 = vpop.f32.mrb[0].mxu0
        %3055 = vmatprep.mubr.f32.mxu0 0.0
        %3056 = vmatmul.mubr.f32.gmra.mrb[0].mxu0 %v494
        %v3057 = vpop.f32.mrb[0].mxu0
        %v3058 = vadd.f32 %v2959, %v3057
        %v3059 = vpop.f32.mrb[0].mxu0
        %3060 = vmatprep.mubr.f32.mxu0 0.0
        %3061 = vmatmul.mubr.f32.gmra.mrb[0].mxu0 %v497
        %v3062 = vpop.f32.mrb[0].mxu0
        %v3063 = vadd.f32 %v2959, %v3062
        %v3064 = vpop.f32.mrb[0].mxu0
        %3065 = vdwg.mxu0
        %v3067 = vlaneseq
        %v3068 = vshrl.u32 %v3067, 7
        %v3069 = vsub.s32 0, %v3068
        %v3070 = vrot.slane %v458, %v3069
        %3072 = vmatprep.subr.mxu0 0.0
        %3073 = vmatpush1.msra.mxu0 %v428
        %3074 = vmatprep.subr.mxu0 0.0
        %3075 = vmatpush1.msra.mxu0 %v429
        %3076 = vmatprep.subr.mxu0 0.0
        %3077 = vmatpush1.msra.mxu0 %v430
        %3078 = vmatprep.subr.mxu0 0.0
        %3079 = vmatpush1.msra.mxu0 %v431
        %3080 = vmatprep.subr.mxu0 0.0
        %3081 = vmatpush1.msra.mxu0 0.0
        %3082 = vmatprep.subr.mxu0 0.0
        %3083 = vmatpush1.msra.mxu0 0.0
        %3084 = vmatprep.subr.mxu0 0.0
        %3085 = vmatpush1.msra.mxu0 0.0
        %3086 = vmatprep.subr.mxu0 0.0
        %3087 = vmatpush1.msra.mxu0 0.0
        %3088 = vmatprep.subr.mxu0 0.0
        %3089 = vmatpush1.msra.mxu0 0.0
        %3090 = vmatprep.subr.mxu0 0.0
        %3091 = vmatpush1.msra.mxu0 0.0
        %3092 = vmatprep.subr.mxu0 0.0
        %3093 = vmatpush1.msra.mxu0 0.0
        %3094 = vmatprep.subr.mxu0 0.0
        %3095 = vmatpush1.msra.mxu0 0.0
        %3096 = vmatprep.subr.mxu0 0.0
        %3097 = vmatpush1.msra.mxu0 0.0
        %3098 = vmatprep.subr.mxu0 0.0
        %3099 = vmatpush1.msra.mxu0 0.0
        %3100 = vmatprep.subr.mxu0 0.0
        %3101 = vmatpush1.msra.mxu0 0.0
        %3102 = vmatprep.subr.mxu0 0.0
        %3103 = vmatpush1.msra.mxu0 0.0
        %3104 = vmatprep.subr.mxu0 0.0
        %3105 = vmatpush1.msra.mxu0 0.0
        %3106 = vmatprep.subr.mxu0 0.0
        %3107 = vmatpush1.msra.mxu0 0.0
        %3108 = vmatprep.subr.mxu0 0.0
        %3109 = vmatpush1.msra.mxu0 0.0
        %3110 = vmatprep.subr.mxu0 0.0
        %3111 = vmatpush1.msra.mxu0 0.0
        %3112 = vmatprep.subr.mxu0 0.0
        %3113 = vmatpush1.msra.mxu0 0.0
        %3114 = vmatprep.subr.mxu0 0.0
        %3115 = vmatpush1.msra.mxu0 0.0
        %3116 = vmatprep.subr.mxu0 0.0
        %3117 = vmatpush1.msra.mxu0 0.0
        %3118 = vmatprep.subr.mxu0 0.0
        %3119 = vmatpush1.msra.mxu0 0.0
        %3120 = vmatprep.subr.mxu0 0.0
        %3121 = vmatpush1.msra.mxu0 0.0
        %3122 = vmatprep.subr.mxu0 0.0
        %3123 = vmatpush1.msra.mxu0 0.0
        %3124 = vmatprep.subr.mxu0 0.0
        %3125 = vmatpush1.msra.mxu0 0.0
        %3126 = vmatprep.subr.mxu0 0.0
        %3127 = vmatpush1.msra.mxu0 0.0
        %3128 = vmatprep.subr.mxu0 0.0
        %3129 = vmatpush1.msra.mxu0 0.0
        %3130 = vmatprep.subr.mxu0 0.0
        %3131 = vmatpush1.msra.mxu0 0.0
        %3132 = vmatprep.subr.mxu0 0.0
        %3133 = vmatpush1.msra.mxu0 0.0
        %3134 = vmatprep.subr.mxu0 0.0
        %3135 = vmatpush1.msra.mxu0 0.0
        %3136 = vmatprep.mubr.f32.mxu0 0.0
        %3137 = vmatmul.mubr.f32.gmra.mrb[0].mxu0 %v476
        %v3138 = vpop.f32.mrb[0].mxu0
        %v3139 = vadd.f32 %v3070, %v3138
        %v3140 = vpop.f32.mrb[0].mxu0
        %3141 = vmatprep.mubr.f32.mxu0 0.0
        %3142 = vmatmul.mubr.f32.gmra.mrb[0].mxu0 %v479
        %v3143 = vpop.f32.mrb[0].mxu0
        %v3144 = vadd.f32 %v3070, %v3143
        %v3145 = vpop.f32.mrb[0].mxu0
        %3146 = vmatprep.mubr.f32.mxu0 0.0
        %3147 = vmatmul.mubr.f32.gmra.mrb[0].mxu0 %v482
        %v3148 = vpop.f32.mrb[0].mxu0
        %v3149 = vadd.f32 %v3070, %v3148
        %v3150 = vpop.f32.mrb[0].mxu0
        %3151 = vmatprep.mubr.f32.mxu0 0.0
        %3152 = vmatmul.mubr.f32.gmra.mrb[0].mxu0 %v485
        %v3153 = vpop.f32.mrb[0].mxu0
        %v3154 = vadd.f32 %v3070, %v3153
        %v3155 = vpop.f32.mrb[0].mxu0
        %3156 = vmatprep.mubr.f32.mxu0 0.0
        %3157 = vmatmul.mubr.f32.gmra.mrb[0].mxu0 %v488
        %v3158 = vpop.f32.mrb[0].mxu0
        %v3159 = vadd.f32 %v3070, %v3158
        %v3160 = vpop.f32.mrb[0].mxu0
        %3161 = vmatprep.mubr.f32.mxu0 0.0
        %3162 = vmatmul.mubr.f32.gmra.mrb[0].mxu0 %v491
        %v3163 = vpop.f32.mrb[0].mxu0
        %v3164 = vadd.f32 %v3070, %v3163
        %v3165 = vpop.f32.mrb[0].mxu0
        %3166 = vmatprep.mubr.f32.mxu0 0.0
        %3167 = vmatmul.mubr.f32.gmra.mrb[0].mxu0 %v494
        %v3168 = vpop.f32.mrb[0].mxu0
        %v3169 = vadd.f32 %v3070, %v3168
        %v3170 = vpop.f32.mrb[0].mxu0
        %3171 = vmatprep.mubr.f32.mxu0 0.0
        %3172 = vmatmul.mubr.f32.gmra.mrb[0].mxu0 %v497
        %v3173 = vpop.f32.mrb[0].mxu0
        %v3174 = vadd.f32 %v3070, %v3173
        %v3175 = vpop.f32.mrb[0].mxu0
        %3176 = vdwg.mxu0
        %v3178 = vlaneseq
        %v3179 = vshrl.u32 %v3178, 7
        %v3180 = vsub.s32 0, %v3179
        %v3181 = vrot.slane %v462, %v3180
        %3183 = vmatprep.subr.mxu0 0.0
        %3184 = vmatpush1.msra.mxu0 %v444
        %3185 = vmatprep.subr.mxu0 0.0
        %3186 = vmatpush1.msra.mxu0 %v445
        %3187 = vmatprep.subr.mxu0 0.0
        %3188 = vmatpush1.msra.mxu0 %v446
        %3189 = vmatprep.subr.mxu0 0.0
        %3190 = vmatpush1.msra.mxu0 %v447
        %3191 = vmatprep.subr.mxu0 0.0
        %3192 = vmatpush1.msra.mxu0 0.0
        %3193 = vmatprep.subr.mxu0 0.0
        %3194 = vmatpush1.msra.mxu0 0.0
        %3195 = vmatprep.subr.mxu0 0.0
        %3196 = vmatpush1.msra.mxu0 0.0
        %3197 = vmatprep.subr.mxu0 0.0
        %3198 = vmatpush1.msra.mxu0 0.0
        %3199 = vmatprep.subr.mxu0 0.0
        %3200 = vmatpush1.msra.mxu0 0.0
        %3201 = vmatprep.subr.mxu0 0.0
        %3202 = vmatpush1.msra.mxu0 0.0
        %3203 = vmatprep.subr.mxu0 0.0
        %3204 = vmatpush1.msra.mxu0 0.0
        %3205 = vmatprep.subr.mxu0 0.0
        %3206 = vmatpush1.msra.mxu0 0.0
        %3207 = vmatprep.subr.mxu0 0.0
        %3208 = vmatpush1.msra.mxu0 0.0
        %3209 = vmatprep.subr.mxu0 0.0
        %3210 = vmatpush1.msra.mxu0 0.0
        %3211 = vmatprep.subr.mxu0 0.0
        %3212 = vmatpush1.msra.mxu0 0.0
        %3213 = vmatprep.subr.mxu0 0.0
        %3214 = vmatpush1.msra.mxu0 0.0
        %3215 = vmatprep.subr.mxu0 0.0
        %3216 = vmatpush1.msra.mxu0 0.0
        %3217 = vmatprep.subr.mxu0 0.0
        %3218 = vmatpush1.msra.mxu0 0.0
        %3219 = vmatprep.subr.mxu0 0.0
        %3220 = vmatpush1.msra.mxu0 0.0
        %3221 = vmatprep.subr.mxu0 0.0
        %3222 = vmatpush1.msra.mxu0 0.0
        %3223 = vmatprep.subr.mxu0 0.0
        %3224 = vmatpush1.msra.mxu0 0.0
        %3225 = vmatprep.subr.mxu0 0.0
        %3226 = vmatpush1.msra.mxu0 0.0
        %3227 = vmatprep.subr.mxu0 0.0
        %3228 = vmatpush1.msra.mxu0 0.0
        %3229 = vmatprep.subr.mxu0 0.0
        %3230 = vmatpush1.msra.mxu0 0.0
        %3231 = vmatprep.subr.mxu0 0.0
        %3232 = vmatpush1.msra.mxu0 0.0
        %3233 = vmatprep.subr.mxu0 0.0
        %3234 = vmatpush1.msra.mxu0 0.0
        %3235 = vmatprep.subr.mxu0 0.0
        %3236 = vmatpush1.msra.mxu0 0.0
        %3237 = vmatprep.subr.mxu0 0.0
        %3238 = vmatpush1.msra.mxu0 0.0
        %3239 = vmatprep.subr.mxu0 0.0
        %3240 = vmatpush1.msra.mxu0 0.0
        %3241 = vmatprep.subr.mxu0 0.0
        %3242 = vmatpush1.msra.mxu0 0.0
        %3243 = vmatprep.subr.mxu0 0.0
        %3244 = vmatpush1.msra.mxu0 0.0
        %3245 = vmatprep.subr.mxu0 0.0
        %3246 = vmatpush1.msra.mxu0 0.0
        %3247 = vmatprep.mubr.f32.mxu0 0.0
        %3248 = vmatmul.mubr.f32.gmra.mrb[0].mxu0 %v476
        %v3249 = vpop.f32.mrb[0].mxu0
        %v3250 = vadd.f32 %v3181, %v3249
        %v3251 = vpop.f32.mrb[0].mxu0
        %3252 = vmatprep.mubr.f32.mxu0 0.0
        %3253 = vmatmul.mubr.f32.gmra.mrb[0].mxu0 %v479
        %v3254 = vpop.f32.mrb[0].mxu0
        %v3255 = vadd.f32 %v3181, %v3254
        %v3256 = vpop.f32.mrb[0].mxu0
        %3257 = vmatprep.mubr.f32.mxu0 0.0
        %3258 = vmatmul.mubr.f32.gmra.mrb[0].mxu0 %v482
        %v3259 = vpop.f32.mrb[0].mxu0
        %v3260 = vadd.f32 %v3181, %v3259
        %v3261 = vpop.f32.mrb[0].mxu0
        %3262 = vmatprep.mubr.f32.mxu0 0.0
        %3263 = vmatmul.mubr.f32.gmra.mrb[0].mxu0 %v485
        %v3264 = vpop.f32.mrb[0].mxu0
        %v3265 = vadd.f32 %v3181, %v3264
        %v3266 = vpop.f32.mrb[0].mxu0
        %3267 = vmatprep.mubr.f32.mxu0 0.0
        %3268 = vmatmul.mubr.f32.gmra.mrb[0].mxu0 %v488
        %v3269 = vpop.f32.mrb[0].mxu0
        %v3270 = vadd.f32 %v3181, %v3269
        %v3271 = vpop.f32.mrb[0].mxu0
        %3272 = vmatprep.mubr.f32.mxu0 0.0
        %3273 = vmatmul.mubr.f32.gmra.mrb[0].mxu0 %v491
        %v3274 = vpop.f32.mrb[0].mxu0
        %v3275 = vadd.f32 %v3181, %v3274
        %v3276 = vpop.f32.mrb[0].mxu0
        %3277 = vmatprep.mubr.f32.mxu0 0.0
        %3278 = vmatmul.mubr.f32.gmra.mrb[0].mxu0 %v494
        %v3279 = vpop.f32.mrb[0].mxu0
        %v3280 = vadd.f32 %v3181, %v3279
        %v3281 = vpop.f32.mrb[0].mxu0
        %3282 = vmatprep.mubr.f32.mxu0 0.0
        %3283 = vmatmul.mubr.f32.gmra.mrb[0].mxu0 %v497
        %v3284 = vpop.f32.mrb[0].mxu0
        %v3285 = vadd.f32 %v3181, %v3284
        %v3286 = vpop.f32.mrb[0].mxu0
        %3287 = vdwg.mxu0
        %v3289 = vsel %vm826, %v3028, 0
        %v3292 = vsel %vm826, %v3033, 0
        %v3295 = vsel %vm826, %v3139, 0
        %v3298 = vsel %vm826, %v3144, 0
        %3300 = vmatprep.subr.mxu0 0.0
        %3301 = vmatpush1.xpose.msra.mxu0 %v3295
        %3302 = vmatprep.subr.mxu0 0.0
        %3303 = vmatpush1.xpose.msra.mxu0 %v3298
        %3304 = vmatprep.subr.mxu0 0.0
        %3305 = vmatpush1.xpose.msra.mxu0 0.0
        %3306 = vmatprep.subr.mxu0 0.0
        %3307 = vmatpush1.xpose.msra.mxu0 0.0
        %3308 = vmatprep.subr.mxu0 0.0
        %3309 = vmatpush1.xpose.msra.mxu0 0.0
        %3310 = vmatprep.subr.mxu0 0.0
        %3311 = vmatpush1.xpose.msra.mxu0 0.0
        %3312 = vmatprep.subr.mxu0 0.0
        %3313 = vmatpush1.xpose.msra.mxu0 0.0
        %3314 = vmatprep.subr.mxu0 0.0
        %3315 = vmatpush1.xpose.msra.mxu0 0.0
        %3316 = vmatprep.subr.mxu0 0.0
        %3317 = vmatpush1.xpose.msra.mxu0 0.0
        %3318 = vmatprep.subr.mxu0 0.0
        %3319 = vmatpush1.xpose.msra.mxu0 0.0
        %3320 = vmatprep.subr.mxu0 0.0
        %3321 = vmatpush1.xpose.msra.mxu0 0.0
        %3322 = vmatprep.subr.mxu0 0.0
        %3323 = vmatpush1.xpose.msra.mxu0 0.0
        %3324 = vmatprep.subr.mxu0 0.0
        %3325 = vmatpush1.xpose.msra.mxu0 0.0
        %3326 = vmatprep.subr.mxu0 0.0
        %3327 = vmatpush1.xpose.msra.mxu0 0.0
        %3328 = vmatprep.subr.mxu0 0.0
        %3329 = vmatpush1.xpose.msra.mxu0 0.0
        %3330 = vmatprep.subr.mxu0 0.0
        %3331 = vmatpush1.xpose.msra.mxu0 0.0
        %3332 = vmatprep.subr.mxu0 0.0
        %3333 = vmatpush1.xpose.msra.mxu0 0.0
        %3334 = vmatprep.subr.mxu0 0.0
        %3335 = vmatpush1.xpose.msra.mxu0 0.0
        %3336 = vmatprep.subr.mxu0 0.0
        %3337 = vmatpush1.xpose.msra.mxu0 0.0
        %3338 = vmatprep.subr.mxu0 0.0
        %3339 = vmatpush1.xpose.msra.mxu0 0.0
        %3340 = vmatprep.subr.mxu0 0.0
        %3341 = vmatpush1.xpose.msra.mxu0 0.0
        %3342 = vmatprep.subr.mxu0 0.0
        %3343 = vmatpush1.xpose.msra.mxu0 0.0
        %3344 = vmatprep.subr.mxu0 0.0
        %3345 = vmatpush1.xpose.msra.mxu0 0.0
        %3346 = vmatprep.subr.mxu0 0.0
        %3347 = vmatpush1.xpose.msra.mxu0 0.0
        %3348 = vmatprep.subr.mxu0 0.0
        %3349 = vmatpush1.xpose.msra.mxu0 0.0
        %3350 = vmatprep.subr.mxu0 0.0
        %3351 = vmatpush1.xpose.msra.mxu0 0.0
        %3352 = vmatprep.subr.mxu0 0.0
        %3353 = vmatpush1.xpose.msra.mxu0 0.0
        %3354 = vmatprep.subr.mxu0 0.0
        %3355 = vmatpush1.xpose.msra.mxu0 0.0
        %3356 = vmatprep.subr.mxu0 0.0
        %3357 = vmatpush1.xpose.msra.mxu0 0.0
        %3358 = vmatprep.subr.mxu0 0.0
        %3359 = vmatpush1.xpose.msra.mxu0 0.0
        %3360 = vmatprep.subr.mxu0 0.0
        %3361 = vmatpush1.xpose.msra.mxu0 0.0
        %3362 = vmatprep.subr.mxu0 0.0
        %3363 = vmatpush1.xpose.msra.mxu0 0.0
        %3364 = vmatprep.mubr.f32.mxu0 0.0
        %3365 = vmatmul.mubr.f32.gmra.mrb[0].mxu0 %v3289
        %v3366 = vpop.f32.mrb[0].mxu0
        %v3367 = vadd.f32 0.0, %v3366
        %v3368 = vpop.f32.mrb[0].mxu0
        %3369 = vmatprep.mubr.f32.mxu0 0.0
        %3370 = vmatmul.mubr.f32.gmra.mrb[0].mxu0 %v3292
        %v3371 = vpop.f32.mrb[0].mxu0
        %v3372 = vadd.f32 0.0, %v3371
        %v3373 = vpop.f32.mrb[0].mxu0
        %3374 = vdwg.mxu0
        %v3376 = vsel %vm826, %v3038, 0
        %v3379 = vsel %vm826, %v3043, 0
        %v3382 = vsel %vm826, %v3149, 0
        %v3385 = vsel %vm826, %v3154, 0
        %3387 = vmatprep.subr.mxu0 0.0
        %3388 = vmatpush1.xpose.msra.mxu0 %v3382
        %3389 = vmatprep.subr.mxu0 0.0
        %3390 = vmatpush1.xpose.msra.mxu0 %v3385
        %3391 = vmatprep.subr.mxu0 0.0
        %3392 = vmatpush1.xpose.msra.mxu0 0.0
        %3393 = vmatprep.subr.mxu0 0.0
        %3394 = vmatpush1.xpose.msra.mxu0 0.0
        %3395 = vmatprep.subr.mxu0 0.0
        %3396 = vmatpush1.xpose.msra.mxu0 0.0
        %3397 = vmatprep.subr.mxu0 0.0
        %3398 = vmatpush1.xpose.msra.mxu0 0.0
        %3399 = vmatprep.subr.mxu0 0.0
        %3400 = vmatpush1.xpose.msra.mxu0 0.0
        %3401 = vmatprep.subr.mxu0 0.0
        %3402 = vmatpush1.xpose.msra.mxu0 0.0
        %3403 = vmatprep.subr.mxu0 0.0
        %3404 = vmatpush1.xpose.msra.mxu0 0.0
        %3405 = vmatprep.subr.mxu0 0.0
        %3406 = vmatpush1.xpose.msra.mxu0 0.0
        %3407 = vmatprep.subr.mxu0 0.0
        %3408 = vmatpush1.xpose.msra.mxu0 0.0
        %3409 = vmatprep.subr.mxu0 0.0
        %3410 = vmatpush1.xpose.msra.mxu0 0.0
        %3411 = vmatprep.subr.mxu0 0.0
        %3412 = vmatpush1.xpose.msra.mxu0 0.0
        %3413 = vmatprep.subr.mxu0 0.0
        %3414 = vmatpush1.xpose.msra.mxu0 0.0
        %3415 = vmatprep.subr.mxu0 0.0
        %3416 = vmatpush1.xpose.msra.mxu0 0.0
        %3417 = vmatprep.subr.mxu0 0.0
        %3418 = vmatpush1.xpose.msra.mxu0 0.0
        %3419 = vmatprep.subr.mxu0 0.0
        %3420 = vmatpush1.xpose.msra.mxu0 0.0
        %3421 = vmatprep.subr.mxu0 0.0
        %3422 = vmatpush1.xpose.msra.mxu0 0.0
        %3423 = vmatprep.subr.mxu0 0.0
        %3424 = vmatpush1.xpose.msra.mxu0 0.0
        %3425 = vmatprep.subr.mxu0 0.0
        %3426 = vmatpush1.xpose.msra.mxu0 0.0
        %3427 = vmatprep.subr.mxu0 0.0
        %3428 = vmatpush1.xpose.msra.mxu0 0.0
        %3429 = vmatprep.subr.mxu0 0.0
        %3430 = vmatpush1.xpose.msra.mxu0 0.0
        %3431 = vmatprep.subr.mxu0 0.0
        %3432 = vmatpush1.xpose.msra.mxu0 0.0
        %3433 = vmatprep.subr.mxu0 0.0
        %3434 = vmatpush1.xpose.msra.mxu0 0.0
        %3435 = vmatprep.subr.mxu0 0.0
        %3436 = vmatpush1.xpose.msra.mxu0 0.0
        %3437 = vmatprep.subr.mxu0 0.0
        %3438 = vmatpush1.xpose.msra.mxu0 0.0
        %3439 = vmatprep.subr.mxu0 0.0
        %3440 = vmatpush1.xpose.msra.mxu0 0.0
        %3441 = vmatprep.subr.mxu0 0.0
        %3442 = vmatpush1.xpose.msra.mxu0 0.0
        %3443 = vmatprep.subr.mxu0 0.0
        %3444 = vmatpush1.xpose.msra.mxu0 0.0
        %3445 = vmatprep.subr.mxu0 0.0
        %3446 = vmatpush1.xpose.msra.mxu0 0.0
        %3447 = vmatprep.subr.mxu0 0.0
        %3448 = vmatpush1.xpose.msra.mxu0 0.0
        %3449 = vmatprep.subr.mxu0 0.0
        %3450 = vmatpush1.xpose.msra.mxu0 0.0
        %3451 = vmatprep.mubr.f32.mxu0 0.0
        %3452 = vmatmul.mubr.f32.gmra.mrb[0].mxu0 %v3376
        %v3453 = vpop.f32.mrb[0].mxu0
        %v3454 = vadd.f32 0.0, %v3453
        %v3455 = vpop.f32.mrb[0].mxu0
        %3456 = vmatprep.mubr.f32.mxu0 0.0
        %3457 = vmatmul.mubr.f32.gmra.mrb[0].mxu0 %v3379
        %v3458 = vpop.f32.mrb[0].mxu0
        %v3459 = vadd.f32 0.0, %v3458
        %v3460 = vpop.f32.mrb[0].mxu0
        %3461 = vdwg.mxu0
        %v3463 = vsel %vm826, %v3048, 0
        %v3466 = vsel %vm826, %v3053, 0
        %v3469 = vsel %vm826, %v3159, 0
        %v3472 = vsel %vm826, %v3164, 0
        %3474 = vmatprep.subr.mxu0 0.0
        %3475 = vmatpush1.xpose.msra.mxu0 %v3469
        %3476 = vmatprep.subr.mxu0 0.0
        %3477 = vmatpush1.xpose.msra.mxu0 %v3472
        %3478 = vmatprep.subr.mxu0 0.0
        %3479 = vmatpush1.xpose.msra.mxu0 0.0
        %3480 = vmatprep.subr.mxu0 0.0
        %3481 = vmatpush1.xpose.msra.mxu0 0.0
        %3482 = vmatprep.subr.mxu0 0.0
        %3483 = vmatpush1.xpose.msra.mxu0 0.0
        %3484 = vmatprep.subr.mxu0 0.0
        %3485 = vmatpush1.xpose.msra.mxu0 0.0
        %3486 = vmatprep.subr.mxu0 0.0
        %3487 = vmatpush1.xpose.msra.mxu0 0.0
        %3488 = vmatprep.subr.mxu0 0.0
        %3489 = vmatpush1.xpose.msra.mxu0 0.0
        %3490 = vmatprep.subr.mxu0 0.0
        %3491 = vmatpush1.xpose.msra.mxu0 0.0
        %3492 = vmatprep.subr.mxu0 0.0
        %3493 = vmatpush1.xpose.msra.mxu0 0.0
        %3494 = vmatprep.subr.mxu0 0.0
        %3495 = vmatpush1.xpose.msra.mxu0 0.0
        %3496 = vmatprep.subr.mxu0 0.0
        %3497 = vmatpush1.xpose.msra.mxu0 0.0
        %3498 = vmatprep.subr.mxu0 0.0
        %3499 = vmatpush1.xpose.msra.mxu0 0.0
        %3500 = vmatprep.subr.mxu0 0.0
        %3501 = vmatpush1.xpose.msra.mxu0 0.0
        %3502 = vmatprep.subr.mxu0 0.0
        %3503 = vmatpush1.xpose.msra.mxu0 0.0
        %3504 = vmatprep.subr.mxu0 0.0
        %3505 = vmatpush1.xpose.msra.mxu0 0.0
        %3506 = vmatprep.subr.mxu0 0.0
        %3507 = vmatpush1.xpose.msra.mxu0 0.0
        %3508 = vmatprep.subr.mxu0 0.0
        %3509 = vmatpush1.xpose.msra.mxu0 0.0
        %3510 = vmatprep.subr.mxu0 0.0
        %3511 = vmatpush1.xpose.msra.mxu0 0.0
        %3512 = vmatprep.subr.mxu0 0.0
        %3513 = vmatpush1.xpose.msra.mxu0 0.0
        %3514 = vmatprep.subr.mxu0 0.0
        %3515 = vmatpush1.xpose.msra.mxu0 0.0
        %3516 = vmatprep.subr.mxu0 0.0
        %3517 = vmatpush1.xpose.msra.mxu0 0.0
        %3518 = vmatprep.subr.mxu0 0.0
        %3519 = vmatpush1.xpose.msra.mxu0 0.0
        %3520 = vmatprep.subr.mxu0 0.0
        %3521 = vmatpush1.xpose.msra.mxu0 0.0
        %3522 = vmatprep.subr.mxu0 0.0
        %3523 = vmatpush1.xpose.msra.mxu0 0.0
        %3524 = vmatprep.subr.mxu0 0.0
        %3525 = vmatpush1.xpose.msra.mxu0 0.0
        %3526 = vmatprep.subr.mxu0 0.0
        %3527 = vmatpush1.xpose.msra.mxu0 0.0
        %3528 = vmatprep.subr.mxu0 0.0
        %3529 = vmatpush1.xpose.msra.mxu0 0.0
        %3530 = vmatprep.subr.mxu0 0.0
        %3531 = vmatpush1.xpose.msra.mxu0 0.0
        %3532 = vmatprep.subr.mxu0 0.0
        %3533 = vmatpush1.xpose.msra.mxu0 0.0
        %3534 = vmatprep.subr.mxu0 0.0
        %3535 = vmatpush1.xpose.msra.mxu0 0.0
        %3536 = vmatprep.subr.mxu0 0.0
        %3537 = vmatpush1.xpose.msra.mxu0 0.0
        %3538 = vmatprep.mubr.f32.mxu0 0.0
        %3539 = vmatmul.mubr.f32.gmra.mrb[0].mxu0 %v3463
        %v3540 = vpop.f32.mrb[0].mxu0
        %v3541 = vadd.f32 0.0, %v3540
        %v3542 = vpop.f32.mrb[0].mxu0
        %3543 = vmatprep.mubr.f32.mxu0 0.0
        %3544 = vmatmul.mubr.f32.gmra.mrb[0].mxu0 %v3466
        %v3545 = vpop.f32.mrb[0].mxu0
        %v3546 = vadd.f32 0.0, %v3545
        %v3547 = vpop.f32.mrb[0].mxu0
        %3548 = vdwg.mxu0
        %v3550 = vsel %vm826, %v3058, 0
        %v3553 = vsel %vm826, %v3063, 0
        %v3556 = vsel %vm826, %v3169, 0
        %v3559 = vsel %vm826, %v3174, 0
        %3561 = vmatprep.subr.mxu0 0.0
        %3562 = vmatpush1.xpose.msra.mxu0 %v3556
        %3563 = vmatprep.subr.mxu0 0.0
        %3564 = vmatpush1.xpose.msra.mxu0 %v3559
        %3565 = vmatprep.subr.mxu0 0.0
        %3566 = vmatpush1.xpose.msra.mxu0 0.0
        %3567 = vmatprep.subr.mxu0 0.0
        %3568 = vmatpush1.xpose.msra.mxu0 0.0
        %3569 = vmatprep.subr.mxu0 0.0
        %3570 = vmatpush1.xpose.msra.mxu0 0.0
        %3571 = vmatprep.subr.mxu0 0.0
        %3572 = vmatpush1.xpose.msra.mxu0 0.0
        %3573 = vmatprep.subr.mxu0 0.0
        %3574 = vmatpush1.xpose.msra.mxu0 0.0
        %3575 = vmatprep.subr.mxu0 0.0
        %3576 = vmatpush1.xpose.msra.mxu0 0.0
        %3577 = vmatprep.subr.mxu0 0.0
        %3578 = vmatpush1.xpose.msra.mxu0 0.0
        %3579 = vmatprep.subr.mxu0 0.0
        %3580 = vmatpush1.xpose.msra.mxu0 0.0
        %3581 = vmatprep.subr.mxu0 0.0
        %3582 = vmatpush1.xpose.msra.mxu0 0.0
        %3583 = vmatprep.subr.mxu0 0.0
        %3584 = vmatpush1.xpose.msra.mxu0 0.0
        %3585 = vmatprep.subr.mxu0 0.0
        %3586 = vmatpush1.xpose.msra.mxu0 0.0
        %3587 = vmatprep.subr.mxu0 0.0
        %3588 = vmatpush1.xpose.msra.mxu0 0.0
        %3589 = vmatprep.subr.mxu0 0.0
        %3590 = vmatpush1.xpose.msra.mxu0 0.0
        %3591 = vmatprep.subr.mxu0 0.0
        %3592 = vmatpush1.xpose.msra.mxu0 0.0
        %3593 = vmatprep.subr.mxu0 0.0
        %3594 = vmatpush1.xpose.msra.mxu0 0.0
        %3595 = vmatprep.subr.mxu0 0.0
        %3596 = vmatpush1.xpose.msra.mxu0 0.0
        %3597 = vmatprep.subr.mxu0 0.0
        %3598 = vmatpush1.xpose.msra.mxu0 0.0
        %3599 = vmatprep.subr.mxu0 0.0
        %3600 = vmatpush1.xpose.msra.mxu0 0.0
        %3601 = vmatprep.subr.mxu0 0.0
        %3602 = vmatpush1.xpose.msra.mxu0 0.0
        %3603 = vmatprep.subr.mxu0 0.0
        %3604 = vmatpush1.xpose.msra.mxu0 0.0
        %3605 = vmatprep.subr.mxu0 0.0
        %3606 = vmatpush1.xpose.msra.mxu0 0.0
        %3607 = vmatprep.subr.mxu0 0.0
        %3608 = vmatpush1.xpose.msra.mxu0 0.0
        %3609 = vmatprep.subr.mxu0 0.0
        %3610 = vmatpush1.xpose.msra.mxu0 0.0
        %3611 = vmatprep.subr.mxu0 0.0
        %3612 = vmatpush1.xpose.msra.mxu0 0.0
        %3613 = vmatprep.subr.mxu0 0.0
        %3614 = vmatpush1.xpose.msra.mxu0 0.0
        %3615 = vmatprep.subr.mxu0 0.0
        %3616 = vmatpush1.xpose.msra.mxu0 0.0
        %3617 = vmatprep.subr.mxu0 0.0
        %3618 = vmatpush1.xpose.msra.mxu0 0.0
        %3619 = vmatprep.subr.mxu0 0.0
        %3620 = vmatpush1.xpose.msra.mxu0 0.0
        %3621 = vmatprep.subr.mxu0 0.0
        %3622 = vmatpush1.xpose.msra.mxu0 0.0
        %3623 = vmatprep.subr.mxu0 0.0
        %3624 = vmatpush1.xpose.msra.mxu0 0.0
        %3625 = vmatprep.mubr.f32.mxu0 0.0
        %3626 = vmatmul.mubr.f32.gmra.mrb[0].mxu0 %v3550
        %v3627 = vpop.f32.mrb[0].mxu0
        %v3628 = vadd.f32 0.0, %v3627
        %v3629 = vpop.f32.mrb[0].mxu0
        %3630 = vmatprep.mubr.f32.mxu0 0.0
        %3631 = vmatmul.mubr.f32.gmra.mrb[0].mxu0 %v3553
        %v3632 = vpop.f32.mrb[0].mxu0
        %v3633 = vadd.f32 0.0, %v3632
        %v3634 = vpop.f32.mrb[0].mxu0
        %3635 = vdwg.mxu0
        %v3636 = vadd.f32 %v3367, %v376
        %v3637 = vadd.f32 %v3372, %v377
        %v3638 = vadd.f32 %v3454, %v384
        %v3639 = vadd.f32 %v3459, %v385
        %v3640 = vadd.f32 %v3541, %v392
        %v3641 = vadd.f32 %v3546, %v393
        %v3642 = vadd.f32 %v3628, %v400
        %v3643 = vadd.f32 %v3633, %v401
        %v3644 = vsel %vm1183, %v3636, -inf
        %3645 = vmax.xlane.f32.xlu0 %v3644
        %v3646 = vpop.xlane.xlu0 %3645
        %v3647 = vsel %vm1183, %v3637, -inf
        %3648 = vmax.xlane.f32.xlu0 %v3647
        %v3649 = vpop.xlane.xlu0 %3648
        %v3650 = vsel %vm1183, %v3638, -inf
        %3651 = vmax.xlane.f32.xlu0 %v3650
        %v3652 = vpop.xlane.xlu0 %3651
        %v3653 = vsel %vm1183, %v3639, -inf
        %3654 = vmax.xlane.f32.xlu0 %v3653
        %v3655 = vpop.xlane.xlu0 %3654
        %v3656 = vsel %vm1183, %v3640, -inf
        %3657 = vmax.xlane.f32.xlu0 %v3656
        %v3658 = vpop.xlane.xlu0 %3657
        %v3659 = vsel %vm1183, %v3641, -inf
        %3660 = vmax.xlane.f32.xlu0 %v3659
        %v3661 = vpop.xlane.xlu0 %3660
        %v3662 = vsel %vm1183, %v3642, -inf
        %3663 = vmax.xlane.f32.xlu0 %v3662
        %v3664 = vpop.xlane.xlu0 %3663
        %v3665 = vsel %vm1183, %v3643, -inf
        %3666 = vmax.xlane.f32.xlu0 %v3665
        %v3667 = vpop.xlane.xlu0 %3666
        %v3668 = vsub.f32 %v3636, %v3646
        %v3669 = vsub.f32 %v3637, %v3649
        %v3670 = vsub.f32 %v3638, %v3652
        %v3671 = vsub.f32 %v3639, %v3655
        %v3672 = vsub.f32 %v3640, %v3658
        %v3673 = vsub.f32 %v3641, %v3661
        %v3674 = vsub.f32 %v3642, %v3664
        %v3675 = vsub.f32 %v3643, %v3667
        %v3676 = vmul.f32 %v3668, 1.442695
        %v3677 = vpow.pop %v3676
        %v3678 = vmul.f32 %v3669, 1.442695
        %v3679 = vpow.pop %v3678
        %v3680 = vmul.f32 %v3670, 1.442695
        %v3681 = vpow.pop %v3680
        %v3682 = vmul.f32 %v3671, 1.442695
        %v3683 = vpow.pop %v3682
        %v3684 = vmul.f32 %v3672, 1.442695
        %v3685 = vpow.pop %v3684
        %v3686 = vmul.f32 %v3673, 1.442695
        %v3687 = vpow.pop %v3686
        %v3688 = vmul.f32 %v3674, 1.442695
        %v3689 = vpow.pop %v3688
        %v3690 = vmul.f32 %v3675, 1.442695
        %v3691 = vpow.pop %v3690
        %v3692 = vsel %vm1183, %v3677, 0.0
        %3693 = vadd.xlane.f32.xlu0 %v3692
        %v3694 = vpop.xlane.xlu0 %3693
        %v3695 = vsel %vm1183, %v3679, 0.0
        %3696 = vadd.xlane.f32.xlu0 %v3695
        %v3697 = vpop.xlane.xlu0 %3696
        %v3698 = vsel %vm1183, %v3681, 0.0
        %3699 = vadd.xlane.f32.xlu0 %v3698
        %v3700 = vpop.xlane.xlu0 %3699
        %v3701 = vsel %vm1183, %v3683, 0.0
        %3702 = vadd.xlane.f32.xlu0 %v3701
        %v3703 = vpop.xlane.xlu0 %3702
        %v3704 = vsel %vm1183, %v3685, 0.0
        %3705 = vadd.xlane.f32.xlu0 %v3704
        %v3706 = vpop.xlane.xlu0 %3705
        %v3707 = vsel %vm1183, %v3687, 0.0
        %3708 = vadd.xlane.f32.xlu0 %v3707
        %v3709 = vpop.xlane.xlu0 %3708
        %v3710 = vsel %vm1183, %v3689, 0.0
        %3711 = vadd.xlane.f32.xlu0 %v3710
        %v3712 = vpop.xlane.xlu0 %3711
        %v3713 = vsel %vm1183, %v3691, 0.0
        %3714 = vadd.xlane.f32.xlu0 %v3713
        %v3715 = vpop.xlane.xlu0 %3714
        %v3716 = vrcp.pop %v3694
        %v3717 = vmul.f32 %v3677, %v3716
        %v3718 = vrcp.pop %v3697
        %v3719 = vmul.f32 %v3679, %v3718
        %v3720 = vrcp.pop %v3700
        %v3721 = vmul.f32 %v3681, %v3720
        %v3722 = vrcp.pop %v3703
        %v3723 = vmul.f32 %v3683, %v3722
        %v3724 = vrcp.pop %v3706
        %v3725 = vmul.f32 %v3685, %v3724
        %v3726 = vrcp.pop %v3709
        %v3727 = vmul.f32 %v3687, %v3726
        %v3728 = vrcp.pop %v3712
        %v3729 = vmul.f32 %v3689, %v3728
        %v3730 = vrcp.pop %v3715
        %v3731 = vmul.f32 %v3691, %v3730
        %v3733 = vsel %vm1183, %v3717, 0
        %v3736 = vsel %vm1183, %v3719, 0
        %3738 = vmatprep.subr.mxu0 0.0
        %3739 = vmatpush1.msra.mxu0 %v3250
        %3740 = vmatprep.subr.mxu0 0.0
        %3741 = vmatpush1.msra.mxu0 %v3255
        %3742 = vmatprep.subr.mxu0 0.0
        %3743 = vmatpush1.msra.mxu0 0.0
        %3744 = vmatprep.subr.mxu0 0.0
        %3745 = vmatpush1.msra.mxu0 0.0
        %3746 = vmatprep.subr.mxu0 0.0
        %3747 = vmatpush1.msra.mxu0 0.0
        %3748 = vmatprep.subr.mxu0 0.0
        %3749 = vmatpush1.msra.mxu0 0.0
        %3750 = vmatprep.subr.mxu0 0.0
        %3751 = vmatpush1.msra.mxu0 0.0
        %3752 = vmatprep.subr.mxu0 0.0
        %3753 = vmatpush1.msra.mxu0 0.0
        %3754 = vmatprep.subr.mxu0 0.0
        %3755 = vmatpush1.msra.mxu0 0.0
        %3756 = vmatprep.subr.mxu0 0.0
        %3757 = vmatpush1.msra.mxu0 0.0
        %3758 = vmatprep.subr.mxu0 0.0
        %3759 = vmatpush1.msra.mxu0 0.0
        %3760 = vmatprep.subr.mxu0 0.0
        %3761 = vmatpush1.msra.mxu0 0.0
        %3762 = vmatprep.subr.mxu0 0.0
        %3763 = vmatpush1.msra.mxu0 0.0
        %3764 = vmatprep.subr.mxu0 0.0
        %3765 = vmatpush1.msra.mxu0 0.0
        %3766 = vmatprep.subr.mxu0 0.0
        %3767 = vmatpush1.msra.mxu0 0.0
        %3768 = vmatprep.subr.mxu0 0.0
        %3769 = vmatpush1.msra.mxu0 0.0
        %3770 = vmatprep.subr.mxu0 0.0
        %3771 = vmatpush1.msra.mxu0 0.0
        %3772 = vmatprep.subr.mxu0 0.0
        %3773 = vmatpush1.msra.mxu0 0.0
        %3774 = vmatprep.subr.mxu0 0.0
        %3775 = vmatpush1.msra.mxu0 0.0
        %3776 = vmatprep.subr.mxu0 0.0
        %3777 = vmatpush1.msra.mxu0 0.0
        %3778 = vmatprep.subr.mxu0 0.0
        %3779 = vmatpush1.msra.mxu0 0.0
        %3780 = vmatprep.subr.mxu0 0.0
        %3781 = vmatpush1.msra.mxu0 0.0
        %3782 = vmatprep.subr.mxu0 0.0
        %3783 = vmatpush1.msra.mxu0 0.0
        %3784 = vmatprep.subr.mxu0 0.0
        %3785 = vmatpush1.msra.mxu0 0.0
        %3786 = vmatprep.subr.mxu0 0.0
        %3787 = vmatpush1.msra.mxu0 0.0
        %3788 = vmatprep.subr.mxu0 0.0
        %3789 = vmatpush1.msra.mxu0 0.0
        %3790 = vmatprep.subr.mxu0 0.0
        %3791 = vmatpush1.msra.mxu0 0.0
        %3792 = vmatprep.subr.mxu0 0.0
        %3793 = vmatpush1.msra.mxu0 0.0
        %3794 = vmatprep.subr.mxu0 0.0
        %3795 = vmatpush1.msra.mxu0 0.0
        %3796 = vmatprep.subr.mxu0 0.0
        %3797 = vmatpush1.msra.mxu0 0.0
        %3798 = vmatprep.subr.mxu0 0.0
        %3799 = vmatpush1.msra.mxu0 0.0
        %3800 = vmatprep.subr.mxu0 0.0
        %3801 = vmatpush1.msra.mxu0 0.0
        %3802 = vmatprep.mubr.f32.mxu0 0.0
        %3803 = vmatmul.mubr.f32.gmra.mrb[0].mxu0 %v3733
        %v3804 = vpop.f32.mrb[0].mxu0
        %v3805 = vadd.f32 0.0, %v3804
        %v3806 = vpop.f32.mrb[0].mxu0
        %3807 = vmatprep.mubr.f32.mxu0 0.0
        %3808 = vmatmul.mubr.f32.gmra.mrb[0].mxu0 %v3736
        %v3809 = vpop.f32.mrb[0].mxu0
        %v3810 = vadd.f32 0.0, %v3809
        %v3811 = vpop.f32.mrb[0].mxu0
        %3812 = vdwg.mxu0
        %v3814 = vsel %vm1183, %v3721, 0
        %v3817 = vsel %vm1183, %v3723, 0
        %3819 = vmatprep.subr.mxu0 0.0
        %3820 = vmatpush1.msra.mxu0 %v3260
        %3821 = vmatprep.subr.mxu0 0.0
        %3822 = vmatpush1.msra.mxu0 %v3265
        %3823 = vmatprep.subr.mxu0 0.0
        %3824 = vmatpush1.msra.mxu0 0.0
        %3825 = vmatprep.subr.mxu0 0.0
        %3826 = vmatpush1.msra.mxu0 0.0
        %3827 = vmatprep.subr.mxu0 0.0
        %3828 = vmatpush1.msra.mxu0 0.0
        %3829 = vmatprep.subr.mxu0 0.0
        %3830 = vmatpush1.msra.mxu0 0.0
        %3831 = vmatprep.subr.mxu0 0.0
        %3832 = vmatpush1.msra.mxu0 0.0
        %3833 = vmatprep.subr.mxu0 0.0
        %3834 = vmatpush1.msra.mxu0 0.0
        %3835 = vmatprep.subr.mxu0 0.0
        %3836 = vmatpush1.msra.mxu0 0.0
        %3837 = vmatprep.subr.mxu0 0.0
        %3838 = vmatpush1.msra.mxu0 0.0
        %3839 = vmatprep.subr.mxu0 0.0
        %3840 = vmatpush1.msra.mxu0 0.0
        %3841 = vmatprep.subr.mxu0 0.0
        %3842 = vmatpush1.msra.mxu0 0.0
        %3843 = vmatprep.subr.mxu0 0.0
        %3844 = vmatpush1.msra.mxu0 0.0
        %3845 = vmatprep.subr.mxu0 0.0
        %3846 = vmatpush1.msra.mxu0 0.0
        %3847 = vmatprep.subr.mxu0 0.0
        %3848 = vmatpush1.msra.mxu0 0.0
        %3849 = vmatprep.subr.mxu0 0.0
        %3850 = vmatpush1.msra.mxu0 0.0
        %3851 = vmatprep.subr.mxu0 0.0
        %3852 = vmatpush1.msra.mxu0 0.0
        %3853 = vmatprep.subr.mxu0 0.0
        %3854 = vmatpush1.msra.mxu0 0.0
        %3855 = vmatprep.subr.mxu0 0.0
        %3856 = vmatpush1.msra.mxu0 0.0
        %3857 = vmatprep.subr.mxu0 0.0
        %3858 = vmatpush1.msra.mxu0 0.0
        %3859 = vmatprep.subr.mxu0 0.0
        %3860 = vmatpush1.msra.mxu0 0.0
        %3861 = vmatprep.subr.mxu0 0.0
        %3862 = vmatpush1.msra.mxu0 0.0
        %3863 = vmatprep.subr.mxu0 0.0
        %3864 = vmatpush1.msra.mxu0 0.0
        %3865 = vmatprep.subr.mxu0 0.0
        %3866 = vmatpush1.msra.mxu0 0.0
        %3867 = vmatprep.subr.mxu0 0.0
        %3868 = vmatpush1.msra.mxu0 0.0
        %3869 = vmatprep.subr.mxu0 0.0
        %3870 = vmatpush1.msra.mxu0 0.0
        %3871 = vmatprep.subr.mxu0 0.0
        %3872 = vmatpush1.msra.mxu0 0.0
        %3873 = vmatprep.subr.mxu0 0.0
        %3874 = vmatpush1.msra.mxu0 0.0
        %3875 = vmatprep.subr.mxu0 0.0
        %3876 = vmatpush1.msra.mxu0 0.0
        %3877 = vmatprep.subr.mxu0 0.0
        %3878 = vmatpush1.msra.mxu0 0.0
        %3879 = vmatprep.subr.mxu0 0.0
        %3880 = vmatpush1.msra.mxu0 0.0
        %3881 = vmatprep.subr.mxu0 0.0
        %3882 = vmatpush1.msra.mxu0 0.0
        %3883 = vmatprep.mubr.f32.mxu0 0.0
        %3884 = vmatmul.mubr.f32.gmra.mrb[0].mxu0 %v3814
        %v3885 = vpop.f32.mrb[0].mxu0
        %v3886 = vadd.f32 0.0, %v3885
        %v3887 = vpop.f32.mrb[0].mxu0
        %3888 = vmatprep.mubr.f32.mxu0 0.0
        %3889 = vmatmul.mubr.f32.gmra.mrb[0].mxu0 %v3817
        %v3890 = vpop.f32.mrb[0].mxu0
        %v3891 = vadd.f32 0.0, %v3890
        %v3892 = vpop.f32.mrb[0].mxu0
        %3893 = vdwg.mxu0
        %v3895 = vsel %vm1183, %v3725, 0
        %v3898 = vsel %vm1183, %v3727, 0
        %3900 = vmatprep.subr.mxu0 0.0
        %3901 = vmatpush1.msra.mxu0 %v3270
        %3902 = vmatprep.subr.mxu0 0.0
        %3903 = vmatpush1.msra.mxu0 %v3275
        %3904 = vmatprep.subr.mxu0 0.0
        %3905 = vmatpush1.msra.mxu0 0.0
        %3906 = vmatprep.subr.mxu0 0.0
        %3907 = vmatpush1.msra.mxu0 0.0
        %3908 = vmatprep.subr.mxu0 0.0
        %3909 = vmatpush1.msra.mxu0 0.0
        %3910 = vmatprep.subr.mxu0 0.0
        %3911 = vmatpush1.msra.mxu0 0.0
        %3912 = vmatprep.subr.mxu0 0.0
        %3913 = vmatpush1.msra.mxu0 0.0
        %3914 = vmatprep.subr.mxu0 0.0
        %3915 = vmatpush1.msra.mxu0 0.0
        %3916 = vmatprep.subr.mxu0 0.0
        %3917 = vmatpush1.msra.mxu0 0.0
        %3918 = vmatprep.subr.mxu0 0.0
        %3919 = vmatpush1.msra.mxu0 0.0
        %3920 = vmatprep.subr.mxu0 0.0
        %3921 = vmatpush1.msra.mxu0 0.0
        %3922 = vmatprep.subr.mxu0 0.0
        %3923 = vmatpush1.msra.mxu0 0.0
        %3924 = vmatprep.subr.mxu0 0.0
        %3925 = vmatpush1.msra.mxu0 0.0
        %3926 = vmatprep.subr.mxu0 0.0
        %3927 = vmatpush1.msra.mxu0 0.0
        %3928 = vmatprep.subr.mxu0 0.0
        %3929 = vmatpush1.msra.mxu0 0.0
        %3930 = vmatprep.subr.mxu0 0.0
        %3931 = vmatpush1.msra.mxu0 0.0
        %3932 = vmatprep.subr.mxu0 0.0
        %3933 = vmatpush1.msra.mxu0 0.0
        %3934 = vmatprep.subr.mxu0 0.0
        %3935 = vmatpush1.msra.mxu0 0.0
        %3936 = vmatprep.subr.mxu0 0.0
        %3937 = vmatpush1.msra.mxu0 0.0
        %3938 = vmatprep.subr.mxu0 0.0
        %3939 = vmatpush1.msra.mxu0 0.0
        %3940 = vmatprep.subr.mxu0 0.0
        %3941 = vmatpush1.msra.mxu0 0.0
        %3942 = vmatprep.subr.mxu0 0.0
        %3943 = vmatpush1.msra.mxu0 0.0
        %3944 = vmatprep.subr.mxu0 0.0
        %3945 = vmatpush1.msra.mxu0 0.0
        %3946 = vmatprep.subr.mxu0 0.0
        %3947 = vmatpush1.msra.mxu0 0.0
        %3948 = vmatprep.subr.mxu0 0.0
        %3949 = vmatpush1.msra.mxu0 0.0
        %3950 = vmatprep.subr.mxu0 0.0
        %3951 = vmatpush1.msra.mxu0 0.0
        %3952 = vmatprep.subr.mxu0 0.0
        %3953 = vmatpush1.msra.mxu0 0.0
        %3954 = vmatprep.subr.mxu0 0.0
        %3955 = vmatpush1.msra.mxu0 0.0
        %3956 = vmatprep.subr.mxu0 0.0
        %3957 = vmatpush1.msra.mxu0 0.0
        %3958 = vmatprep.subr.mxu0 0.0
        %3959 = vmatpush1.msra.mxu0 0.0
        %3960 = vmatprep.subr.mxu0 0.0
        %3961 = vmatpush1.msra.mxu0 0.0
        %3962 = vmatprep.subr.mxu0 0.0
        %3963 = vmatpush1.msra.mxu0 0.0
        %3964 = vmatprep.mubr.f32.mxu0 0.0
        %3965 = vmatmul.mubr.f32.gmra.mrb[0].mxu0 %v3895
        %v3966 = vpop.f32.mrb[0].mxu0
        %v3967 = vadd.f32 0.0, %v3966
        %v3968 = vpop.f32.mrb[0].mxu0
        %3969 = vmatprep.mubr.f32.mxu0 0.0
        %3970 = vmatmul.mubr.f32.gmra.mrb[0].mxu0 %v3898
        %v3971 = vpop.f32.mrb[0].mxu0
        %v3972 = vadd.f32 0.0, %v3971
        %v3973 = vpop.f32.mrb[0].mxu0
        %3974 = vdwg.mxu0
        %v3976 = vsel %vm1183, %v3729, 0
        %v3979 = vsel %vm1183, %v3731, 0
        %3981 = vmatprep.subr.mxu0 0.0
        %3982 = vmatpush1.msra.mxu0 %v3280
        %3983 = vmatprep.subr.mxu0 0.0
        %3984 = vmatpush1.msra.mxu0 %v3285
        %3985 = vmatprep.subr.mxu0 0.0
        %3986 = vmatpush1.msra.mxu0 0.0
        %3987 = vmatprep.subr.mxu0 0.0
        %3988 = vmatpush1.msra.mxu0 0.0
        %3989 = vmatprep.subr.mxu0 0.0
        %3990 = vmatpush1.msra.mxu0 0.0
        %3991 = vmatprep.subr.mxu0 0.0
        %3992 = vmatpush1.msra.mxu0 0.0
        %3993 = vmatprep.subr.mxu0 0.0
        %3994 = vmatpush1.msra.mxu0 0.0
        %3995 = vmatprep.subr.mxu0 0.0
        %3996 = vmatpush1.msra.mxu0 0.0
        %3997 = vmatprep.subr.mxu0 0.0
        %3998 = vmatpush1.msra.mxu0 0.0
        %3999 = vmatprep.subr.mxu0 0.0
        %4000 = vmatpush1.msra.mxu0 0.0
        %4001 = vmatprep.subr.mxu0 0.0
        %4002 = vmatpush1.msra.mxu0 0.0
        %4003 = vmatprep.subr.mxu0 0.0
        %4004 = vmatpush1.msra.mxu0 0.0
        %4005 = vmatprep.subr.mxu0 0.0
        %4006 = vmatpush1.msra.mxu0 0.0
        %4007 = vmatprep.subr.mxu0 0.0
        %4008 = vmatpush1.msra.mxu0 0.0
        %4009 = vmatprep.subr.mxu0 0.0
        %4010 = vmatpush1.msra.mxu0 0.0
        %4011 = vmatprep.subr.mxu0 0.0
        %4012 = vmatpush1.msra.mxu0 0.0
        %4013 = vmatprep.subr.mxu0 0.0
        %4014 = vmatpush1.msra.mxu0 0.0
        %4015 = vmatprep.subr.mxu0 0.0
        %4016 = vmatpush1.msra.mxu0 0.0
        %4017 = vmatprep.subr.mxu0 0.0
        %4018 = vmatpush1.msra.mxu0 0.0
        %4019 = vmatprep.subr.mxu0 0.0
        %4020 = vmatpush1.msra.mxu0 0.0
        %4021 = vmatprep.subr.mxu0 0.0
        %4022 = vmatpush1.msra.mxu0 0.0
        %4023 = vmatprep.subr.mxu0 0.0
        %4024 = vmatpush1.msra.mxu0 0.0
        %4025 = vmatprep.subr.mxu0 0.0
        %4026 = vmatpush1.msra.mxu0 0.0
        %4027 = vmatprep.subr.mxu0 0.0
        %4028 = vmatpush1.msra.mxu0 0.0
        %4029 = vmatprep.subr.mxu0 0.0
        %4030 = vmatpush1.msra.mxu0 0.0
        %4031 = vmatprep.subr.mxu0 0.0
        %4032 = vmatpush1.msra.mxu0 0.0
        %4033 = vmatprep.subr.mxu0 0.0
        %4034 = vmatpush1.msra.mxu0 0.0
        %4035 = vmatprep.subr.mxu0 0.0
        %4036 = vmatpush1.msra.mxu0 0.0
        %4037 = vmatprep.subr.mxu0 0.0
        %4038 = vmatpush1.msra.mxu0 0.0
        %4039 = vmatprep.subr.mxu0 0.0
        %4040 = vmatpush1.msra.mxu0 0.0
        %4041 = vmatprep.subr.mxu0 0.0
        %4042 = vmatpush1.msra.mxu0 0.0
        %4043 = vmatprep.subr.mxu0 0.0
        %4044 = vmatpush1.msra.mxu0 0.0
        %4045 = vmatprep.mubr.f32.mxu0 0.0
        %4046 = vmatmul.mubr.f32.gmra.mrb[0].mxu0 %v3976
        %v4047 = vpop.f32.mrb[0].mxu0
        %v4048 = vadd.f32 0.0, %v4047
        %v4049 = vpop.f32.mrb[0].mxu0
        %4050 = vmatprep.mubr.f32.mxu0 0.0
        %4051 = vmatmul.mubr.f32.gmra.mrb[0].mxu0 %v3979
        %v4052 = vpop.f32.mrb[0].mxu0
        %v4053 = vadd.f32 0.0, %v4052
        %v4054 = vpop.f32.mrb[0].mxu0
        %4055 = vdwg.mxu0
        %v4057 = vsel %vm826, %v3805, 0
        %v4060 = vsel %vm826, %v3810, 0
        %v4063 = vsel %vm826, %v3886, 0
        %v4066 = vsel %vm826, %v3891, 0
        %v4069 = vsel %vm826, %v3967, 0
        %v4072 = vsel %vm826, %v3972, 0
        %v4075 = vsel %vm826, %v4048, 0
        %v4078 = vsel %vm826, %v4053, 0
        %4080 = vmatprep.subr.mxu0 0.0
        %4081 = vmatpush1.msra.mxu0 %v466
        %4082 = vmatprep.subr.mxu0 0.0
        %4083 = vmatpush1.msra.mxu0 0.0
        %4084 = vmatprep.subr.mxu0 0.0
        %4085 = vmatpush1.msra.mxu0 0.0
        %4086 = vmatprep.subr.mxu0 0.0
        %4087 = vmatpush1.msra.mxu0 0.0
        %4088 = vmatprep.subr.mxu0 0.0
        %4089 = vmatpush1.msra.mxu0 0.0
        %4090 = vmatprep.subr.mxu0 0.0
        %4091 = vmatpush1.msra.mxu0 0.0
        %4092 = vmatprep.subr.mxu0 0.0
        %4093 = vmatpush1.msra.mxu0 0.0
        %4094 = vmatprep.subr.mxu0 0.0
        %4095 = vmatpush1.msra.mxu0 0.0
        %4096 = vmatprep.subr.mxu0 0.0
        %4097 = vmatpush1.msra.mxu0 0.0
        %4098 = vmatprep.subr.mxu0 0.0
        %4099 = vmatpush1.msra.mxu0 0.0
        %4100 = vmatprep.subr.mxu0 0.0
        %4101 = vmatpush1.msra.mxu0 0.0
        %4102 = vmatprep.subr.mxu0 0.0
        %4103 = vmatpush1.msra.mxu0 0.0
        %4104 = vmatprep.subr.mxu0 0.0
        %4105 = vmatpush1.msra.mxu0 0.0
        %4106 = vmatprep.subr.mxu0 0.0
        %4107 = vmatpush1.msra.mxu0 0.0
        %4108 = vmatprep.subr.mxu0 0.0
        %4109 = vmatpush1.msra.mxu0 0.0
        %4110 = vmatprep.subr.mxu0 0.0
        %4111 = vmatpush1.msra.mxu0 0.0
        %4112 = vmatprep.subr.mxu0 0.0
        %4113 = vmatpush1.msra.mxu0 0.0
        %4114 = vmatprep.subr.mxu0 0.0
        %4115 = vmatpush1.msra.mxu0 0.0
        %4116 = vmatprep.subr.mxu0 0.0
        %4117 = vmatpush1.msra.mxu0 0.0
        %4118 = vmatprep.subr.mxu0 0.0
        %4119 = vmatpush1.msra.mxu0 0.0
        %4120 = vmatprep.subr.mxu0 0.0
        %4121 = vmatpush1.msra.mxu0 0.0
        %4122 = vmatprep.subr.mxu0 0.0
        %4123 = vmatpush1.msra.mxu0 0.0
        %4124 = vmatprep.subr.mxu0 0.0
        %4125 = vmatpush1.msra.mxu0 0.0
        %4126 = vmatprep.subr.mxu0 0.0
        %4127 = vmatpush1.msra.mxu0 0.0
        %4128 = vmatprep.subr.mxu0 0.0
        %4129 = vmatpush1.msra.mxu0 0.0
        %4130 = vmatprep.subr.mxu0 0.0
        %4131 = vmatpush1.msra.mxu0 0.0
        %4132 = vmatprep.subr.mxu0 0.0
        %4133 = vmatpush1.msra.mxu0 0.0
        %4134 = vmatprep.subr.mxu0 0.0
        %4135 = vmatpush1.msra.mxu0 0.0
        %4136 = vmatprep.subr.mxu0 0.0
        %4137 = vmatpush1.msra.mxu0 0.0
        %4138 = vmatprep.subr.mxu0 0.0
        %4139 = vmatpush1.msra.mxu0 0.0
        %4140 = vmatprep.subr.mxu0 0.0
        %4141 = vmatpush1.msra.mxu0 0.0
        %4142 = vmatprep.subr.mxu0 0.0
        %4143 = vmatpush1.msra.mxu0 0.0
        %4144 = vmatprep.mubr.f32.mxu0 0.0
        %4145 = vmatmul.mubr.f32.gmra.mrb[0].mxu0 %v4057
        %v4146 = vpop.f32.mrb[0].mxu0
        %v4147 = vadd.f32 0.0, %v4146
        %v4148 = vpop.f32.mrb[0].mxu0
        %4149 = vmatprep.mubr.f32.mxu0 0.0
        %4150 = vmatmul.mubr.f32.gmra.mrb[0].mxu0 %v4060
        %v4151 = vpop.f32.mrb[0].mxu0
        %v4152 = vadd.f32 0.0, %v4151
        %v4153 = vpop.f32.mrb[0].mxu0
        %4154 = vmatprep.mubr.f32.mxu0 0.0
        %4155 = vmatmul.mubr.f32.gmra.mrb[0].mxu0 %v4063
        %v4156 = vpop.f32.mrb[0].mxu0
        %v4157 = vadd.f32 0.0, %v4156
        %v4158 = vpop.f32.mrb[0].mxu0
        %4159 = vmatprep.mubr.f32.mxu0 0.0
        %4160 = vmatmul.mubr.f32.gmra.mrb[0].mxu0 %v4066
        %v4161 = vpop.f32.mrb[0].mxu0
        %v4162 = vadd.f32 0.0, %v4161
        %v4163 = vpop.f32.mrb[0].mxu0
        %4164 = vmatprep.mubr.f32.mxu0 0.0
        %4165 = vmatmul.mubr.f32.gmra.mrb[0].mxu0 %v4069
        %v4166 = vpop.f32.mrb[0].mxu0
        %v4167 = vadd.f32 0.0, %v4166
        %v4168 = vpop.f32.mrb[0].mxu0
        %4169 = vmatprep.mubr.f32.mxu0 0.0
        %4170 = vmatmul.mubr.f32.gmra.mrb[0].mxu0 %v4072
        %v4171 = vpop.f32.mrb[0].mxu0
        %v4172 = vadd.f32 0.0, %v4171
        %v4173 = vpop.f32.mrb[0].mxu0
        %4174 = vmatprep.mubr.f32.mxu0 0.0
        %4175 = vmatmul.mubr.f32.gmra.mrb[0].mxu0 %v4075
        %v4176 = vpop.f32.mrb[0].mxu0
        %v4177 = vadd.f32 0.0, %v4176
        %v4178 = vpop.f32.mrb[0].mxu0
        %4179 = vmatprep.mubr.f32.mxu0 0.0
        %4180 = vmatmul.mubr.f32.gmra.mrb[0].mxu0 %v4078
        %v4181 = vpop.f32.mrb[0].mxu0
        %v4182 = vadd.f32 0.0, %v4181
        %v4183 = vpop.f32.mrb[0].mxu0
        %4184 = vdwg.mxu0
        %v4185 = vadd.f32 %v2917, %v4147
        %v4186 = vadd.f32 %v2922, %v4152
        %v4187 = vadd.f32 %v2927, %v4157
        %v4188 = vadd.f32 %v2932, %v4162
        %v4189 = vadd.f32 %v2937, %v4167
        %v4190 = vadd.f32 %v2942, %v4172
        %v4191 = vadd.f32 %v2947, %v4177
        %v4192 = vadd.f32 %v2952, %v4182
        %v4194 = vlaneseq
        %v4195 = vshrl.u32 %v4194, 7
        %v4196 = vsub.s32 0, %v4195
        %v4197 = vrot.slane %v455, %v4196
        %4199 = vmatprep.subr.mxu0 0.0
        %4200 = vmatpush1.msra.mxu0 %v416
        %4201 = vmatprep.subr.mxu0 0.0
        %4202 = vmatpush1.msra.mxu0 %v417
        %4203 = vmatprep.subr.mxu0 0.0
        %4204 = vmatpush1.msra.mxu0 %v418
        %4205 = vmatprep.subr.mxu0 0.0
        %4206 = vmatpush1.msra.mxu0 %v419
        %4207 = vmatprep.subr.mxu0 0.0
        %4208 = vmatpush1.msra.mxu0 0.0
        %4209 = vmatprep.subr.mxu0 0.0
        %4210 = vmatpush1.msra.mxu0 0.0
        %4211 = vmatprep.subr.mxu0 0.0
        %4212 = vmatpush1.msra.mxu0 0.0
        %4213 = vmatprep.subr.mxu0 0.0
        %4214 = vmatpush1.msra.mxu0 0.0
        %4215 = vmatprep.subr.mxu0 0.0
        %4216 = vmatpush1.msra.mxu0 0.0
        %4217 = vmatprep.subr.mxu0 0.0
        %4218 = vmatpush1.msra.mxu0 0.0
        %4219 = vmatprep.subr.mxu0 0.0
        %4220 = vmatpush1.msra.mxu0 0.0
        %4221 = vmatprep.subr.mxu0 0.0
        %4222 = vmatpush1.msra.mxu0 0.0
        %4223 = vmatprep.subr.mxu0 0.0
        %4224 = vmatpush1.msra.mxu0 0.0
        %4225 = vmatprep.subr.mxu0 0.0
        %4226 = vmatpush1.msra.mxu0 0.0
        %4227 = vmatprep.subr.mxu0 0.0
        %4228 = vmatpush1.msra.mxu0 0.0
        %4229 = vmatprep.subr.mxu0 0.0
        %4230 = vmatpush1.msra.mxu0 0.0
        %4231 = vmatprep.subr.mxu0 0.0
        %4232 = vmatpush1.msra.mxu0 0.0
        %4233 = vmatprep.subr.mxu0 0.0
        %4234 = vmatpush1.msra.mxu0 0.0
        %4235 = vmatprep.subr.mxu0 0.0
        %4236 = vmatpush1.msra.mxu0 0.0
        %4237 = vmatprep.subr.mxu0 0.0
        %4238 = vmatpush1.msra.mxu0 0.0
        %4239 = vmatprep.subr.mxu0 0.0
        %4240 = vmatpush1.msra.mxu0 0.0
        %4241 = vmatprep.subr.mxu0 0.0
        %4242 = vmatpush1.msra.mxu0 0.0
        %4243 = vmatprep.subr.mxu0 0.0
        %4244 = vmatpush1.msra.mxu0 0.0
        %4245 = vmatprep.subr.mxu0 0.0
        %4246 = vmatpush1.msra.mxu0 0.0
        %4247 = vmatprep.subr.mxu0 0.0
        %4248 = vmatpush1.msra.mxu0 0.0
        %4249 = vmatprep.subr.mxu0 0.0
        %4250 = vmatpush1.msra.mxu0 0.0
        %4251 = vmatprep.subr.mxu0 0.0
        %4252 = vmatpush1.msra.mxu0 0.0
        %4253 = vmatprep.subr.mxu0 0.0
        %4254 = vmatpush1.msra.mxu0 0.0
        %4255 = vmatprep.subr.mxu0 0.0
        %4256 = vmatpush1.msra.mxu0 0.0
        %4257 = vmatprep.subr.mxu0 0.0
        %4258 = vmatpush1.msra.mxu0 0.0
        %4259 = vmatprep.subr.mxu0 0.0
        %4260 = vmatpush1.msra.mxu0 0.0
        %4261 = vmatprep.subr.mxu0 0.0
        %4262 = vmatpush1.msra.mxu0 0.0
        %4263 = vmatprep.mubr.f32.mxu0 0.0
        %4264 = vmatmul.mubr.f32.gmra.mrb[0].mxu0 %v476
        %v4265 = vpop.f32.mrb[0].mxu0
        %v4266 = vadd.f32 %v4197, %v4265
        %v4267 = vpop.f32.mrb[0].mxu0
        %4268 = vmatprep.mubr.f32.mxu0 0.0
        %4269 = vmatmul.mubr.f32.gmra.mrb[0].mxu0 %v479
        %v4270 = vpop.f32.mrb[0].mxu0
        %v4271 = vadd.f32 %v4197, %v4270
        %v4272 = vpop.f32.mrb[0].mxu0
        %4273 = vmatprep.mubr.f32.mxu0 0.0
        %4274 = vmatmul.mubr.f32.gmra.mrb[0].mxu0 %v482
        %v4275 = vpop.f32.mrb[0].mxu0
        %v4276 = vadd.f32 %v4197, %v4275
        %v4277 = vpop.f32.mrb[0].mxu0
        %4278 = vmatprep.mubr.f32.mxu0 0.0
        %4279 = vmatmul.mubr.f32.gmra.mrb[0].mxu0 %v485
        %v4280 = vpop.f32.mrb[0].mxu0
        %v4281 = vadd.f32 %v4197, %v4280
        %v4282 = vpop.f32.mrb[0].mxu0
        %4283 = vmatprep.mubr.f32.mxu0 0.0
        %4284 = vmatmul.mubr.f32.gmra.mrb[0].mxu0 %v488
        %v4285 = vpop.f32.mrb[0].mxu0
        %v4286 = vadd.f32 %v4197, %v4285
        %v4287 = vpop.f32.mrb[0].mxu0
        %4288 = vmatprep.mubr.f32.mxu0 0.0
        %4289 = vmatmul.mubr.f32.gmra.mrb[0].mxu0 %v491
        %v4290 = vpop.f32.mrb[0].mxu0
        %v4291 = vadd.f32 %v4197, %v4290
        %v4292 = vpop.f32.mrb[0].mxu0
        %4293 = vmatprep.mubr.f32.mxu0 0.0
        %4294 = vmatmul.mubr.f32.gmra.mrb[0].mxu0 %v494
        %v4295 = vpop.f32.mrb[0].mxu0
        %v4296 = vadd.f32 %v4197, %v4295
        %v4297 = vpop.f32.mrb[0].mxu0
        %4298 = vmatprep.mubr.f32.mxu0 0.0
        %4299 = vmatmul.mubr.f32.gmra.mrb[0].mxu0 %v497
        %v4300 = vpop.f32.mrb[0].mxu0
        %v4301 = vadd.f32 %v4197, %v4300
        %v4302 = vpop.f32.mrb[0].mxu0
        %4303 = vdwg.mxu0
        %v4305 = vlaneseq
        %v4306 = vshrl.u32 %v4305, 7
        %v4307 = vsub.s32 0, %v4306
        %v4308 = vrot.slane %v459, %v4307
        %4310 = vmatprep.subr.mxu0 0.0
        %4311 = vmatpush1.msra.mxu0 %v432
        %4312 = vmatprep.subr.mxu0 0.0
        %4313 = vmatpush1.msra.mxu0 %v433
        %4314 = vmatprep.subr.mxu0 0.0
        %4315 = vmatpush1.msra.mxu0 %v434
        %4316 = vmatprep.subr.mxu0 0.0
        %4317 = vmatpush1.msra.mxu0 %v435
        %4318 = vmatprep.subr.mxu0 0.0
        %4319 = vmatpush1.msra.mxu0 0.0
        %4320 = vmatprep.subr.mxu0 0.0
        %4321 = vmatpush1.msra.mxu0 0.0
        %4322 = vmatprep.subr.mxu0 0.0
        %4323 = vmatpush1.msra.mxu0 0.0
        %4324 = vmatprep.subr.mxu0 0.0
        %4325 = vmatpush1.msra.mxu0 0.0
        %4326 = vmatprep.subr.mxu0 0.0
        %4327 = vmatpush1.msra.mxu0 0.0
        %4328 = vmatprep.subr.mxu0 0.0
        %4329 = vmatpush1.msra.mxu0 0.0
        %4330 = vmatprep.subr.mxu0 0.0
        %4331 = vmatpush1.msra.mxu0 0.0
        %4332 = vmatprep.subr.mxu0 0.0
        %4333 = vmatpush1.msra.mxu0 0.0
        %4334 = vmatprep.subr.mxu0 0.0
        %4335 = vmatpush1.msra.mxu0 0.0
        %4336 = vmatprep.subr.mxu0 0.0
        %4337 = vmatpush1.msra.mxu0 0.0
        %4338 = vmatprep.subr.mxu0 0.0
        %4339 = vmatpush1.msra.mxu0 0.0
        %4340 = vmatprep.subr.mxu0 0.0
        %4341 = vmatpush1.msra.mxu0 0.0
        %4342 = vmatprep.subr.mxu0 0.0
        %4343 = vmatpush1.msra.mxu0 0.0
        %4344 = vmatprep.subr.mxu0 0.0
        %4345 = vmatpush1.msra.mxu0 0.0
        %4346 = vmatprep.subr.mxu0 0.0
        %4347 = vmatpush1.msra.mxu0 0.0
        %4348 = vmatprep.subr.mxu0 0.0
        %4349 = vmatpush1.msra.mxu0 0.0
        %4350 = vmatprep.subr.mxu0 0.0
        %4351 = vmatpush1.msra.mxu0 0.0
        %4352 = vmatprep.subr.mxu0 0.0
        %4353 = vmatpush1.msra.mxu0 0.0
        %4354 = vmatprep.subr.mxu0 0.0
        %4355 = vmatpush1.msra.mxu0 0.0
        %4356 = vmatprep.subr.mxu0 0.0
        %4357 = vmatpush1.msra.mxu0 0.0
        %4358 = vmatprep.subr.mxu0 0.0
        %4359 = vmatpush1.msra.mxu0 0.0
        %4360 = vmatprep.subr.mxu0 0.0
        %4361 = vmatpush1.msra.mxu0 0.0
        %4362 = vmatprep.subr.mxu0 0.0
        %4363 = vmatpush1.msra.mxu0 0.0
        %4364 = vmatprep.subr.mxu0 0.0
        %4365 = vmatpush1.msra.mxu0 0.0
        %4366 = vmatprep.subr.mxu0 0.0
        %4367 = vmatpush1.msra.mxu0 0.0
        %4368 = vmatprep.subr.mxu0 0.0
        %4369 = vmatpush1.msra.mxu0 0.0
        %4370 = vmatprep.subr.mxu0 0.0
        %4371 = vmatpush1.msra.mxu0 0.0
        %4372 = vmatprep.subr.mxu0 0.0
        %4373 = vmatpush1.msra.mxu0 0.0
        %4374 = vmatprep.mubr.f32.mxu0 0.0
        %4375 = vmatmul.mubr.f32.gmra.mrb[0].mxu0 %v476
        %v4376 = vpop.f32.mrb[0].mxu0
        %v4377 = vadd.f32 %v4308, %v4376
        %v4378 = vpop.f32.mrb[0].mxu0
        %4379 = vmatprep.mubr.f32.mxu0 0.0
        %4380 = vmatmul.mubr.f32.gmra.mrb[0].mxu0 %v479
        %v4381 = vpop.f32.mrb[0].mxu0
        %v4382 = vadd.f32 %v4308, %v4381
        %v4383 = vpop.f32.mrb[0].mxu0
        %4384 = vmatprep.mubr.f32.mxu0 0.0
        %4385 = vmatmul.mubr.f32.gmra.mrb[0].mxu0 %v482
        %v4386 = vpop.f32.mrb[0].mxu0
        %v4387 = vadd.f32 %v4308, %v4386
        %v4388 = vpop.f32.mrb[0].mxu0
        %4389 = vmatprep.mubr.f32.mxu0 0.0
        %4390 = vmatmul.mubr.f32.gmra.mrb[0].mxu0 %v485
        %v4391 = vpop.f32.mrb[0].mxu0
        %v4392 = vadd.f32 %v4308, %v4391
        %v4393 = vpop.f32.mrb[0].mxu0
        %4394 = vmatprep.mubr.f32.mxu0 0.0
        %4395 = vmatmul.mubr.f32.gmra.mrb[0].mxu0 %v488
        %v4396 = vpop.f32.mrb[0].mxu0
        %v4397 = vadd.f32 %v4308, %v4396
        %v4398 = vpop.f32.mrb[0].mxu0
        %4399 = vmatprep.mubr.f32.mxu0 0.0
        %4400 = vmatmul.mubr.f32.gmra.mrb[0].mxu0 %v491
        %v4401 = vpop.f32.mrb[0].mxu0
        %v4402 = vadd.f32 %v4308, %v4401
        %v4403 = vpop.f32.mrb[0].mxu0
        %4404 = vmatprep.mubr.f32.mxu0 0.0
        %4405 = vmatmul.mubr.f32.gmra.mrb[0].mxu0 %v494
        %v4406 = vpop.f32.mrb[0].mxu0
        %v4407 = vadd.f32 %v4308, %v4406
        %v4408 = vpop.f32.mrb[0].mxu0
        %4409 = vmatprep.mubr.f32.mxu0 0.0
        %4410 = vmatmul.mubr.f32.gmra.mrb[0].mxu0 %v497
        %v4411 = vpop.f32.mrb[0].mxu0
        %v4412 = vadd.f32 %v4308, %v4411
        %v4413 = vpop.f32.mrb[0].mxu0
        %4414 = vdwg.mxu0
        %v4416 = vlaneseq
        %v4417 = vshrl.u32 %v4416, 7
        %v4418 = vsub.s32 0, %v4417
        %v4419 = vrot.slane %v463, %v4418
        %4421 = vmatprep.subr.mxu0 0.0
        %4422 = vmatpush1.msra.mxu0 %v448
        %4423 = vmatprep.subr.mxu0 0.0
        %4424 = vmatpush1.msra.mxu0 %v449
        %4425 = vmatprep.subr.mxu0 0.0
        %4426 = vmatpush1.msra.mxu0 %v450
        %4427 = vmatprep.subr.mxu0 0.0
        %4428 = vmatpush1.msra.mxu0 %v451
        %4429 = vmatprep.subr.mxu0 0.0
        %4430 = vmatpush1.msra.mxu0 0.0
        %4431 = vmatprep.subr.mxu0 0.0
        %4432 = vmatpush1.msra.mxu0 0.0
        %4433 = vmatprep.subr.mxu0 0.0
        %4434 = vmatpush1.msra.mxu0 0.0
        %4435 = vmatprep.subr.mxu0 0.0
        %4436 = vmatpush1.msra.mxu0 0.0
        %4437 = vmatprep.subr.mxu0 0.0
        %4438 = vmatpush1.msra.mxu0 0.0
        %4439 = vmatprep.subr.mxu0 0.0
        %4440 = vmatpush1.msra.mxu0 0.0
        %4441 = vmatprep.subr.mxu0 0.0
        %4442 = vmatpush1.msra.mxu0 0.0
        %4443 = vmatprep.subr.mxu0 0.0
        %4444 = vmatpush1.msra.mxu0 0.0
        %4445 = vmatprep.subr.mxu0 0.0
        %4446 = vmatpush1.msra.mxu0 0.0
        %4447 = vmatprep.subr.mxu0 0.0
        %4448 = vmatpush1.msra.mxu0 0.0
        %4449 = vmatprep.subr.mxu0 0.0
        %4450 = vmatpush1.msra.mxu0 0.0
        %4451 = vmatprep.subr.mxu0 0.0
        %4452 = vmatpush1.msra.mxu0 0.0
        %4453 = vmatprep.subr.mxu0 0.0
        %4454 = vmatpush1.msra.mxu0 0.0
        %4455 = vmatprep.subr.mxu0 0.0
        %4456 = vmatpush1.msra.mxu0 0.0
        %4457 = vmatprep.subr.mxu0 0.0
        %4458 = vmatpush1.msra.mxu0 0.0
        %4459 = vmatprep.subr.mxu0 0.0
        %4460 = vmatpush1.msra.mxu0 0.0
        %4461 = vmatprep.subr.mxu0 0.0
        %4462 = vmatpush1.msra.mxu0 0.0
        %4463 = vmatprep.subr.mxu0 0.0
        %4464 = vmatpush1.msra.mxu0 0.0
        %4465 = vmatprep.subr.mxu0 0.0
        %4466 = vmatpush1.msra.mxu0 0.0
        %4467 = vmatprep.subr.mxu0 0.0
        %4468 = vmatpush1.msra.mxu0 0.0
        %4469 = vmatprep.subr.mxu0 0.0
        %4470 = vmatpush1.msra.mxu0 0.0
        %4471 = vmatprep.subr.mxu0 0.0
        %4472 = vmatpush1.msra.mxu0 0.0
        %4473 = vmatprep.subr.mxu0 0.0
        %4474 = vmatpush1.msra.mxu0 0.0
        %4475 = vmatprep.subr.mxu0 0.0
        %4476 = vmatpush1.msra.mxu0 0.0
        %4477 = vmatprep.subr.mxu0 0.0
        %4478 = vmatpush1.msra.mxu0 0.0
        %4479 = vmatprep.subr.mxu0 0.0
        %4480 = vmatpush1.msra.mxu0 0.0
        %4481 = vmatprep.subr.mxu0 0.0
        %4482 = vmatpush1.msra.mxu0 0.0
        %4483 = vmatprep.subr.mxu0 0.0
        %4484 = vmatpush1.msra.mxu0 0.0
        %4485 = vmatprep.mubr.f32.mxu0 0.0
        %4486 = vmatmul.mubr.f32.gmra.mrb[0].mxu0 %v476
        %v4487 = vpop.f32.mrb[0].mxu0
        %v4488 = vadd.f32 %v4419, %v4487
        %v4489 = vpop.f32.mrb[0].mxu0
        %4490 = vmatprep.mubr.f32.mxu0 0.0
        %4491 = vmatmul.mubr.f32.gmra.mrb[0].mxu0 %v479
        %v4492 = vpop.f32.mrb[0].mxu0
        %v4493 = vadd.f32 %v4419, %v4492
        %v4494 = vpop.f32.mrb[0].mxu0
        %4495 = vmatprep.mubr.f32.mxu0 0.0
        %4496 = vmatmul.mubr.f32.gmra.mrb[0].mxu0 %v482
        %v4497 = vpop.f32.mrb[0].mxu0
        %v4498 = vadd.f32 %v4419, %v4497
        %v4499 = vpop.f32.mrb[0].mxu0
        %4500 = vmatprep.mubr.f32.mxu0 0.0
        %4501 = vmatmul.mubr.f32.gmra.mrb[0].mxu0 %v485
        %v4502 = vpop.f32.mrb[0].mxu0
        %v4503 = vadd.f32 %v4419, %v4502
        %v4504 = vpop.f32.mrb[0].mxu0
        %4505 = vmatprep.mubr.f32.mxu0 0.0
        %4506 = vmatmul.mubr.f32.gmra.mrb[0].mxu0 %v488
        %v4507 = vpop.f32.mrb[0].mxu0
        %v4508 = vadd.f32 %v4419, %v4507
        %v4509 = vpop.f32.mrb[0].mxu0
        %4510 = vmatprep.mubr.f32.mxu0 0.0
        %4511 = vmatmul.mubr.f32.gmra.mrb[0].mxu0 %v491
        %v4512 = vpop.f32.mrb[0].mxu0
        %v4513 = vadd.f32 %v4419, %v4512
        %v4514 = vpop.f32.mrb[0].mxu0
        %4515 = vmatprep.mubr.f32.mxu0 0.0
        %4516 = vmatmul.mubr.f32.gmra.mrb[0].mxu0 %v494
        %v4517 = vpop.f32.mrb[0].mxu0
        %v4518 = vadd.f32 %v4419, %v4517
        %v4519 = vpop.f32.mrb[0].mxu0
        %4520 = vmatprep.mubr.f32.mxu0 0.0
        %4521 = vmatmul.mubr.f32.gmra.mrb[0].mxu0 %v497
        %v4522 = vpop.f32.mrb[0].mxu0
        %v4523 = vadd.f32 %v4419, %v4522
        %v4524 = vpop.f32.mrb[0].mxu0
        %4525 = vdwg.mxu0
        %v4527 = vsel %vm826, %v4266, 0
        %v4530 = vsel %vm826, %v4271, 0
        %v4533 = vsel %vm826, %v4377, 0
        %v4536 = vsel %vm826, %v4382, 0
        %4538 = vmatprep.subr.mxu0 0.0
        %4539 = vmatpush1.xpose.msra.mxu0 %v4533
        %4540 = vmatprep.subr.mxu0 0.0
        %4541 = vmatpush1.xpose.msra.mxu0 %v4536
        %4542 = vmatprep.subr.mxu0 0.0
        %4543 = vmatpush1.xpose.msra.mxu0 0.0
        %4544 = vmatprep.subr.mxu0 0.0
        %4545 = vmatpush1.xpose.msra.mxu0 0.0
        %4546 = vmatprep.subr.mxu0 0.0
        %4547 = vmatpush1.xpose.msra.mxu0 0.0
        %4548 = vmatprep.subr.mxu0 0.0
        %4549 = vmatpush1.xpose.msra.mxu0 0.0
        %4550 = vmatprep.subr.mxu0 0.0
        %4551 = vmatpush1.xpose.msra.mxu0 0.0
        %4552 = vmatprep.subr.mxu0 0.0
        %4553 = vmatpush1.xpose.msra.mxu0 0.0
        %4554 = vmatprep.subr.mxu0 0.0
        %4555 = vmatpush1.xpose.msra.mxu0 0.0
        %4556 = vmatprep.subr.mxu0 0.0
        %4557 = vmatpush1.xpose.msra.mxu0 0.0
        %4558 = vmatprep.subr.mxu0 0.0
        %4559 = vmatpush1.xpose.msra.mxu0 0.0
        %4560 = vmatprep.subr.mxu0 0.0
        %4561 = vmatpush1.xpose.msra.mxu0 0.0
        %4562 = vmatprep.subr.mxu0 0.0
        %4563 = vmatpush1.xpose.msra.mxu0 0.0
        %4564 = vmatprep.subr.mxu0 0.0
        %4565 = vmatpush1.xpose.msra.mxu0 0.0
        %4566 = vmatprep.subr.mxu0 0.0
        %4567 = vmatpush1.xpose.msra.mxu0 0.0
        %4568 = vmatprep.subr.mxu0 0.0
        %4569 = vmatpush1.xpose.msra.mxu0 0.0
        %4570 = vmatprep.subr.mxu0 0.0
        %4571 = vmatpush1.xpose.msra.mxu0 0.0
        %4572 = vmatprep.subr.mxu0 0.0
        %4573 = vmatpush1.xpose.msra.mxu0 0.0
        %4574 = vmatprep.subr.mxu0 0.0
        %4575 = vmatpush1.xpose.msra.mxu0 0.0
        %4576 = vmatprep.subr.mxu0 0.0
        %4577 = vmatpush1.xpose.msra.mxu0 0.0
        %4578 = vmatprep.subr.mxu0 0.0
        %4579 = vmatpush1.xpose.msra.mxu0 0.0
        %4580 = vmatprep.subr.mxu0 0.0
        %4581 = vmatpush1.xpose.msra.mxu0 0.0
        %4582 = vmatprep.subr.mxu0 0.0
        %4583 = vmatpush1.xpose.msra.mxu0 0.0
        %4584 = vmatprep.subr.mxu0 0.0
        %4585 = vmatpush1.xpose.msra.mxu0 0.0
        %4586 = vmatprep.subr.mxu0 0.0
        %4587 = vmatpush1.xpose.msra.mxu0 0.0
        %4588 = vmatprep.subr.mxu0 0.0
        %4589 = vmatpush1.xpose.msra.mxu0 0.0
        %4590 = vmatprep.subr.mxu0 0.0
        %4591 = vmatpush1.xpose.msra.mxu0 0.0
        %4592 = vmatprep.subr.mxu0 0.0
        %4593 = vmatpush1.xpose.msra.mxu0 0.0
        %4594 = vmatprep.subr.mxu0 0.0
        %4595 = vmatpush1.xpose.msra.mxu0 0.0
        %4596 = vmatprep.subr.mxu0 0.0
        %4597 = vmatpush1.xpose.msra.mxu0 0.0
        %4598 = vmatprep.subr.mxu0 0.0
        %4599 = vmatpush1.xpose.msra.mxu0 0.0
        %4600 = vmatprep.subr.mxu0 0.0
        %4601 = vmatpush1.xpose.msra.mxu0 0.0
        %4602 = vmatprep.mubr.f32.mxu0 0.0
        %4603 = vmatmul.mubr.f32.gmra.mrb[0].mxu0 %v4527
        %v4604 = vpop.f32.mrb[0].mxu0
        %v4605 = vadd.f32 0.0, %v4604
        %v4606 = vpop.f32.mrb[0].mxu0
        %4607 = vmatprep.mubr.f32.mxu0 0.0
        %4608 = vmatmul.mubr.f32.gmra.mrb[0].mxu0 %v4530
        %v4609 = vpop.f32.mrb[0].mxu0
        %v4610 = vadd.f32 0.0, %v4609
        %v4611 = vpop.f32.mrb[0].mxu0
        %4612 = vdwg.mxu0
        %v4614 = vsel %vm826, %v4276, 0
        %v4617 = vsel %vm826, %v4281, 0
        %v4620 = vsel %vm826, %v4387, 0
        %v4623 = vsel %vm826, %v4392, 0
        %4625 = vmatprep.subr.mxu0 0.0
        %4626 = vmatpush1.xpose.msra.mxu0 %v4620
        %4627 = vmatprep.subr.mxu0 0.0
        %4628 = vmatpush1.xpose.msra.mxu0 %v4623
        %4629 = vmatprep.subr.mxu0 0.0
        %4630 = vmatpush1.xpose.msra.mxu0 0.0
        %4631 = vmatprep.subr.mxu0 0.0
        %4632 = vmatpush1.xpose.msra.mxu0 0.0
        %4633 = vmatprep.subr.mxu0 0.0
        %4634 = vmatpush1.xpose.msra.mxu0 0.0
        %4635 = vmatprep.subr.mxu0 0.0
        %4636 = vmatpush1.xpose.msra.mxu0 0.0
        %4637 = vmatprep.subr.mxu0 0.0
        %4638 = vmatpush1.xpose.msra.mxu0 0.0
        %4639 = vmatprep.subr.mxu0 0.0
        %4640 = vmatpush1.xpose.msra.mxu0 0.0
        %4641 = vmatprep.subr.mxu0 0.0
        %4642 = vmatpush1.xpose.msra.mxu0 0.0
        %4643 = vmatprep.subr.mxu0 0.0
        %4644 = vmatpush1.xpose.msra.mxu0 0.0
        %4645 = vmatprep.subr.mxu0 0.0
        %4646 = vmatpush1.xpose.msra.mxu0 0.0
        %4647 = vmatprep.subr.mxu0 0.0
        %4648 = vmatpush1.xpose.msra.mxu0 0.0
        %4649 = vmatprep.subr.mxu0 0.0
        %4650 = vmatpush1.xpose.msra.mxu0 0.0
        %4651 = vmatprep.subr.mxu0 0.0
        %4652 = vmatpush1.xpose.msra.mxu0 0.0
        %4653 = vmatprep.subr.mxu0 0.0
        %4654 = vmatpush1.xpose.msra.mxu0 0.0
        %4655 = vmatprep.subr.mxu0 0.0
        %4656 = vmatpush1.xpose.msra.mxu0 0.0
        %4657 = vmatprep.subr.mxu0 0.0
        %4658 = vmatpush1.xpose.msra.mxu0 0.0
        %4659 = vmatprep.subr.mxu0 0.0
        %4660 = vmatpush1.xpose.msra.mxu0 0.0
        %4661 = vmatprep.subr.mxu0 0.0
        %4662 = vmatpush1.xpose.msra.mxu0 0.0
        %4663 = vmatprep.subr.mxu0 0.0
        %4664 = vmatpush1.xpose.msra.mxu0 0.0
        %4665 = vmatprep.subr.mxu0 0.0
        %4666 = vmatpush1.xpose.msra.mxu0 0.0
        %4667 = vmatprep.subr.mxu0 0.0
        %4668 = vmatpush1.xpose.msra.mxu0 0.0
        %4669 = vmatprep.subr.mxu0 0.0
        %4670 = vmatpush1.xpose.msra.mxu0 0.0
        %4671 = vmatprep.subr.mxu0 0.0
        %4672 = vmatpush1.xpose.msra.mxu0 0.0
        %4673 = vmatprep.subr.mxu0 0.0
        %4674 = vmatpush1.xpose.msra.mxu0 0.0
        %4675 = vmatprep.subr.mxu0 0.0
        %4676 = vmatpush1.xpose.msra.mxu0 0.0
        %4677 = vmatprep.subr.mxu0 0.0
        %4678 = vmatpush1.xpose.msra.mxu0 0.0
        %4679 = vmatprep.subr.mxu0 0.0
        %4680 = vmatpush1.xpose.msra.mxu0 0.0
        %4681 = vmatprep.subr.mxu0 0.0
        %4682 = vmatpush1.xpose.msra.mxu0 0.0
        %4683 = vmatprep.subr.mxu0 0.0
        %4684 = vmatpush1.xpose.msra.mxu0 0.0
        %4685 = vmatprep.subr.mxu0 0.0
        %4686 = vmatpush1.xpose.msra.mxu0 0.0
        %4687 = vmatprep.subr.mxu0 0.0
        %4688 = vmatpush1.xpose.msra.mxu0 0.0
        %4689 = vmatprep.mubr.f32.mxu0 0.0
        %4690 = vmatmul.mubr.f32.gmra.mrb[0].mxu0 %v4614
        %v4691 = vpop.f32.mrb[0].mxu0
        %v4692 = vadd.f32 0.0, %v4691
        %v4693 = vpop.f32.mrb[0].mxu0
        %4694 = vmatprep.mubr.f32.mxu0 0.0
        %4695 = vmatmul.mubr.f32.gmra.mrb[0].mxu0 %v4617
        %v4696 = vpop.f32.mrb[0].mxu0
        %v4697 = vadd.f32 0.0, %v4696
        %v4698 = vpop.f32.mrb[0].mxu0
        %4699 = vdwg.mxu0
        %v4701 = vsel %vm826, %v4286, 0
        %v4704 = vsel %vm826, %v4291, 0
        %v4707 = vsel %vm826, %v4397, 0
        %v4710 = vsel %vm826, %v4402, 0
        %4712 = vmatprep.subr.mxu0 0.0
        %4713 = vmatpush1.xpose.msra.mxu0 %v4707
        %4714 = vmatprep.subr.mxu0 0.0
        %4715 = vmatpush1.xpose.msra.mxu0 %v4710
        %4716 = vmatprep.subr.mxu0 0.0
        %4717 = vmatpush1.xpose.msra.mxu0 0.0
        %4718 = vmatprep.subr.mxu0 0.0
        %4719 = vmatpush1.xpose.msra.mxu0 0.0
        %4720 = vmatprep.subr.mxu0 0.0
        %4721 = vmatpush1.xpose.msra.mxu0 0.0
        %4722 = vmatprep.subr.mxu0 0.0
        %4723 = vmatpush1.xpose.msra.mxu0 0.0
        %4724 = vmatprep.subr.mxu0 0.0
        %4725 = vmatpush1.xpose.msra.mxu0 0.0
        %4726 = vmatprep.subr.mxu0 0.0
        %4727 = vmatpush1.xpose.msra.mxu0 0.0
        %4728 = vmatprep.subr.mxu0 0.0
        %4729 = vmatpush1.xpose.msra.mxu0 0.0
        %4730 = vmatprep.subr.mxu0 0.0
        %4731 = vmatpush1.xpose.msra.mxu0 0.0
        %4732 = vmatprep.subr.mxu0 0.0
        %4733 = vmatpush1.xpose.msra.mxu0 0.0
        %4734 = vmatprep.subr.mxu0 0.0
        %4735 = vmatpush1.xpose.msra.mxu0 0.0
        %4736 = vmatprep.subr.mxu0 0.0
        %4737 = vmatpush1.xpose.msra.mxu0 0.0
        %4738 = vmatprep.subr.mxu0 0.0
        %4739 = vmatpush1.xpose.msra.mxu0 0.0
        %4740 = vmatprep.subr.mxu0 0.0
        %4741 = vmatpush1.xpose.msra.mxu0 0.0
        %4742 = vmatprep.subr.mxu0 0.0
        %4743 = vmatpush1.xpose.msra.mxu0 0.0
        %4744 = vmatprep.subr.mxu0 0.0
        %4745 = vmatpush1.xpose.msra.mxu0 0.0
        %4746 = vmatprep.subr.mxu0 0.0
        %4747 = vmatpush1.xpose.msra.mxu0 0.0
        %4748 = vmatprep.subr.mxu0 0.0
        %4749 = vmatpush1.xpose.msra.mxu0 0.0
        %4750 = vmatprep.subr.mxu0 0.0
        %4751 = vmatpush1.xpose.msra.mxu0 0.0
        %4752 = vmatprep.subr.mxu0 0.0
        %4753 = vmatpush1.xpose.msra.mxu0 0.0
        %4754 = vmatprep.subr.mxu0 0.0
        %4755 = vmatpush1.xpose.msra.mxu0 0.0
        %4756 = vmatprep.subr.mxu0 0.0
        %4757 = vmatpush1.xpose.msra.mxu0 0.0
        %4758 = vmatprep.subr.mxu0 0.0
        %4759 = vmatpush1.xpose.msra.mxu0 0.0
        %4760 = vmatprep.subr.mxu0 0.0
        %4761 = vmatpush1.xpose.msra.mxu0 0.0
        %4762 = vmatprep.subr.mxu0 0.0
        %4763 = vmatpush1.xpose.msra.mxu0 0.0
        %4764 = vmatprep.subr.mxu0 0.0
        %4765 = vmatpush1.xpose.msra.mxu0 0.0
        %4766 = vmatprep.subr.mxu0 0.0
        %4767 = vmatpush1.xpose.msra.mxu0 0.0
        %4768 = vmatprep.subr.mxu0 0.0
        %4769 = vmatpush1.xpose.msra.mxu0 0.0
        %4770 = vmatprep.subr.mxu0 0.0
        %4771 = vmatpush1.xpose.msra.mxu0 0.0
        %4772 = vmatprep.subr.mxu0 0.0
        %4773 = vmatpush1.xpose.msra.mxu0 0.0
        %4774 = vmatprep.subr.mxu0 0.0
        %4775 = vmatpush1.xpose.msra.mxu0 0.0
        %4776 = vmatprep.mubr.f32.mxu0 0.0
        %4777 = vmatmul.mubr.f32.gmra.mrb[0].mxu0 %v4701
        %v4778 = vpop.f32.mrb[0].mxu0
        %v4779 = vadd.f32 0.0, %v4778
        %v4780 = vpop.f32.mrb[0].mxu0
        %4781 = vmatprep.mubr.f32.mxu0 0.0
        %4782 = vmatmul.mubr.f32.gmra.mrb[0].mxu0 %v4704
        %v4783 = vpop.f32.mrb[0].mxu0
        %v4784 = vadd.f32 0.0, %v4783
        %v4785 = vpop.f32.mrb[0].mxu0
        %4786 = vdwg.mxu0
        %v4788 = vsel %vm826, %v4296, 0
        %v4791 = vsel %vm826, %v4301, 0
        %v4794 = vsel %vm826, %v4407, 0
        %v4797 = vsel %vm826, %v4412, 0
        %4799 = vmatprep.subr.mxu0 0.0
        %4800 = vmatpush1.xpose.msra.mxu0 %v4794
        %4801 = vmatprep.subr.mxu0 0.0
        %4802 = vmatpush1.xpose.msra.mxu0 %v4797
        %4803 = vmatprep.subr.mxu0 0.0
        %4804 = vmatpush1.xpose.msra.mxu0 0.0
        %4805 = vmatprep.subr.mxu0 0.0
        %4806 = vmatpush1.xpose.msra.mxu0 0.0
        %4807 = vmatprep.subr.mxu0 0.0
        %4808 = vmatpush1.xpose.msra.mxu0 0.0
        %4809 = vmatprep.subr.mxu0 0.0
        %4810 = vmatpush1.xpose.msra.mxu0 0.0
        %4811 = vmatprep.subr.mxu0 0.0
        %4812 = vmatpush1.xpose.msra.mxu0 0.0
        %4813 = vmatprep.subr.mxu0 0.0
        %4814 = vmatpush1.xpose.msra.mxu0 0.0
        %4815 = vmatprep.subr.mxu0 0.0
        %4816 = vmatpush1.xpose.msra.mxu0 0.0
        %4817 = vmatprep.subr.mxu0 0.0
        %4818 = vmatpush1.xpose.msra.mxu0 0.0
        %4819 = vmatprep.subr.mxu0 0.0
        %4820 = vmatpush1.xpose.msra.mxu0 0.0
        %4821 = vmatprep.subr.mxu0 0.0
        %4822 = vmatpush1.xpose.msra.mxu0 0.0
        %4823 = vmatprep.subr.mxu0 0.0
        %4824 = vmatpush1.xpose.msra.mxu0 0.0
        %4825 = vmatprep.subr.mxu0 0.0
        %4826 = vmatpush1.xpose.msra.mxu0 0.0
        %4827 = vmatprep.subr.mxu0 0.0
        %4828 = vmatpush1.xpose.msra.mxu0 0.0
        %4829 = vmatprep.subr.mxu0 0.0
        %4830 = vmatpush1.xpose.msra.mxu0 0.0
        %4831 = vmatprep.subr.mxu0 0.0
        %4832 = vmatpush1.xpose.msra.mxu0 0.0
        %4833 = vmatprep.subr.mxu0 0.0
        %4834 = vmatpush1.xpose.msra.mxu0 0.0
        %4835 = vmatprep.subr.mxu0 0.0
        %4836 = vmatpush1.xpose.msra.mxu0 0.0
        %4837 = vmatprep.subr.mxu0 0.0
        %4838 = vmatpush1.xpose.msra.mxu0 0.0
        %4839 = vmatprep.subr.mxu0 0.0
        %4840 = vmatpush1.xpose.msra.mxu0 0.0
        %4841 = vmatprep.subr.mxu0 0.0
        %4842 = vmatpush1.xpose.msra.mxu0 0.0
        %4843 = vmatprep.subr.mxu0 0.0
        %4844 = vmatpush1.xpose.msra.mxu0 0.0
        %4845 = vmatprep.subr.mxu0 0.0
        %4846 = vmatpush1.xpose.msra.mxu0 0.0
        %4847 = vmatprep.subr.mxu0 0.0
        %4848 = vmatpush1.xpose.msra.mxu0 0.0
        %4849 = vmatprep.subr.mxu0 0.0
        %4850 = vmatpush1.xpose.msra.mxu0 0.0
        %4851 = vmatprep.subr.mxu0 0.0
        %4852 = vmatpush1.xpose.msra.mxu0 0.0
        %4853 = vmatprep.subr.mxu0 0.0
        %4854 = vmatpush1.xpose.msra.mxu0 0.0
        %4855 = vmatprep.subr.mxu0 0.0
        %4856 = vmatpush1.xpose.msra.mxu0 0.0
        %4857 = vmatprep.subr.mxu0 0.0
        %4858 = vmatpush1.xpose.msra.mxu0 0.0
        %4859 = vmatprep.subr.mxu0 0.0
        %4860 = vmatpush1.xpose.msra.mxu0 0.0
        %4861 = vmatprep.subr.mxu0 0.0
        %4862 = vmatpush1.xpose.msra.mxu0 0.0
        %4863 = vmatprep.mubr.f32.mxu0 0.0
        %4864 = vmatmul.mubr.f32.gmra.mrb[0].mxu0 %v4788
        %v4865 = vpop.f32.mrb[0].mxu0
        %v4866 = vadd.f32 0.0, %v4865
        %v4867 = vpop.f32.mrb[0].mxu0
        %4868 = vmatprep.mubr.f32.mxu0 0.0
        %4869 = vmatmul.mubr.f32.gmra.mrb[0].mxu0 %v4791
        %v4870 = vpop.f32.mrb[0].mxu0
        %v4871 = vadd.f32 0.0, %v4870
        %v4872 = vpop.f32.mrb[0].mxu0
        %4873 = vdwg.mxu0
        %v4874 = vadd.f32 %v4605, %v378
        %v4875 = vadd.f32 %v4610, %v379
        %v4876 = vadd.f32 %v4692, %v386
        %v4877 = vadd.f32 %v4697, %v387
        %v4878 = vadd.f32 %v4779, %v394
        %v4879 = vadd.f32 %v4784, %v395
        %v4880 = vadd.f32 %v4866, %v402
        %v4881 = vadd.f32 %v4871, %v403
        %v4882 = vsel %vm1183, %v4874, -inf
        %4883 = vmax.xlane.f32.xlu0 %v4882
        %v4884 = vpop.xlane.xlu0 %4883
        %v4885 = vsel %vm1183, %v4875, -inf
        %4886 = vmax.xlane.f32.xlu0 %v4885
        %v4887 = vpop.xlane.xlu0 %4886
        %v4888 = vsel %vm1183, %v4876, -inf
        %4889 = vmax.xlane.f32.xlu0 %v4888
        %v4890 = vpop.xlane.xlu0 %4889
        %v4891 = vsel %vm1183, %v4877, -inf
        %4892 = vmax.xlane.f32.xlu0 %v4891
        %v4893 = vpop.xlane.xlu0 %4892
        %v4894 = vsel %vm1183, %v4878, -inf
        %4895 = vmax.xlane.f32.xlu0 %v4894
        %v4896 = vpop.xlane.xlu0 %4895
        %v4897 = vsel %vm1183, %v4879, -inf
        %4898 = vmax.xlane.f32.xlu0 %v4897
        %v4899 = vpop.xlane.xlu0 %4898
        %v4900 = vsel %vm1183, %v4880, -inf
        %4901 = vmax.xlane.f32.xlu0 %v4900
        %v4902 = vpop.xlane.xlu0 %4901
        %v4903 = vsel %vm1183, %v4881, -inf
        %4904 = vmax.xlane.f32.xlu0 %v4903
        %v4905 = vpop.xlane.xlu0 %4904
        %v4906 = vsub.f32 %v4874, %v4884
        %v4907 = vsub.f32 %v4875, %v4887
        %v4908 = vsub.f32 %v4876, %v4890
        %v4909 = vsub.f32 %v4877, %v4893
        %v4910 = vsub.f32 %v4878, %v4896
        %v4911 = vsub.f32 %v4879, %v4899
        %v4912 = vsub.f32 %v4880, %v4902
        %v4913 = vsub.f32 %v4881, %v4905
        %v4914 = vmul.f32 %v4906, 1.442695
        %v4915 = vpow.pop %v4914
        %v4916 = vmul.f32 %v4907, 1.442695
        %v4917 = vpow.pop %v4916
        %v4918 = vmul.f32 %v4908, 1.442695
        %v4919 = vpow.pop %v4918
        %v4920 = vmul.f32 %v4909, 1.442695
        %v4921 = vpow.pop %v4920
        %v4922 = vmul.f32 %v4910, 1.442695
        %v4923 = vpow.pop %v4922
        %v4924 = vmul.f32 %v4911, 1.442695
        %v4925 = vpow.pop %v4924
        %v4926 = vmul.f32 %v4912, 1.442695
        %v4927 = vpow.pop %v4926
        %v4928 = vmul.f32 %v4913, 1.442695
        %v4929 = vpow.pop %v4928
        %v4930 = vsel %vm1183, %v4915, 0.0
        %4931 = vadd.xlane.f32.xlu0 %v4930
        %v4932 = vpop.xlane.xlu0 %4931
        %v4933 = vsel %vm1183, %v4917, 0.0
        %4934 = vadd.xlane.f32.xlu0 %v4933
        %v4935 = vpop.xlane.xlu0 %4934
        %v4936 = vsel %vm1183, %v4919, 0.0
        %4937 = vadd.xlane.f32.xlu0 %v4936
        %v4938 = vpop.xlane.xlu0 %4937
        %v4939 = vsel %vm1183, %v4921, 0.0
        %4940 = vadd.xlane.f32.xlu0 %v4939
        %v4941 = vpop.xlane.xlu0 %4940
        %v4942 = vsel %vm1183, %v4923, 0.0
        %4943 = vadd.xlane.f32.xlu0 %v4942
        %v4944 = vpop.xlane.xlu0 %4943
        %v4945 = vsel %vm1183, %v4925, 0.0
        %4946 = vadd.xlane.f32.xlu0 %v4945
        %v4947 = vpop.xlane.xlu0 %4946
        %v4948 = vsel %vm1183, %v4927, 0.0
        %4949 = vadd.xlane.f32.xlu0 %v4948
        %v4950 = vpop.xlane.xlu0 %4949
        %v4951 = vsel %vm1183, %v4929, 0.0
        %4952 = vadd.xlane.f32.xlu0 %v4951
        %v4953 = vpop.xlane.xlu0 %4952
        %v4954 = vrcp.pop %v4932
        %v4955 = vmul.f32 %v4915, %v4954
        %v4956 = vrcp.pop %v4935
        %v4957 = vmul.f32 %v4917, %v4956
        %v4958 = vrcp.pop %v4938
        %v4959 = vmul.f32 %v4919, %v4958
        %v4960 = vrcp.pop %v4941
        %v4961 = vmul.f32 %v4921, %v4960
        %v4962 = vrcp.pop %v4944
        %v4963 = vmul.f32 %v4923, %v4962
        %v4964 = vrcp.pop %v4947
        %v4965 = vmul.f32 %v4925, %v4964
        %v4966 = vrcp.pop %v4950
        %v4967 = vmul.f32 %v4927, %v4966
        %v4968 = vrcp.pop %v4953
        %v4969 = vmul.f32 %v4929, %v4968
        %v4971 = vsel %vm1183, %v4955, 0
        %v4974 = vsel %vm1183, %v4957, 0
        %4976 = vmatprep.subr.mxu0 0.0
        %4977 = vmatpush1.msra.mxu0 %v4488
        %4978 = vmatprep.subr.mxu0 0.0
        %4979 = vmatpush1.msra.mxu0 %v4493
        %4980 = vmatprep.subr.mxu0 0.0
        %4981 = vmatpush1.msra.mxu0 0.0
        %4982 = vmatprep.subr.mxu0 0.0
        %4983 = vmatpush1.msra.mxu0 0.0
        %4984 = vmatprep.subr.mxu0 0.0
        %4985 = vmatpush1.msra.mxu0 0.0
        %4986 = vmatprep.subr.mxu0 0.0
        %4987 = vmatpush1.msra.mxu0 0.0
        %4988 = vmatprep.subr.mxu0 0.0
        %4989 = vmatpush1.msra.mxu0 0.0
        %4990 = vmatprep.subr.mxu0 0.0
        %4991 = vmatpush1.msra.mxu0 0.0
        %4992 = vmatprep.subr.mxu0 0.0
        %4993 = vmatpush1.msra.mxu0 0.0
        %4994 = vmatprep.subr.mxu0 0.0
        %4995 = vmatpush1.msra.mxu0 0.0
        %4996 = vmatprep.subr.mxu0 0.0
        %4997 = vmatpush1.msra.mxu0 0.0
        %4998 = vmatprep.subr.mxu0 0.0
        %4999 = vmatpush1.msra.mxu0 0.0
        %5000 = vmatprep.subr.mxu0 0.0
        %5001 = vmatpush1.msra.mxu0 0.0
        %5002 = vmatprep.subr.mxu0 0.0
        %5003 = vmatpush1.msra.mxu0 0.0
        %5004 = vmatprep.subr.mxu0 0.0
        %5005 = vmatpush1.msra.mxu0 0.0
        %5006 = vmatprep.subr.mxu0 0.0
        %5007 = vmatpush1.msra.mxu0 0.0
        %5008 = vmatprep.subr.mxu0 0.0
        %5009 = vmatpush1.msra.mxu0 0.0
        %5010 = vmatprep.subr.mxu0 0.0
        %5011 = vmatpush1.msra.mxu0 0.0
        %5012 = vmatprep.subr.mxu0 0.0
        %5013 = vmatpush1.msra.mxu0 0.0
        %5014 = vmatprep.subr.mxu0 0.0
        %5015 = vmatpush1.msra.mxu0 0.0
        %5016 = vmatprep.subr.mxu0 0.0
        %5017 = vmatpush1.msra.mxu0 0.0
        %5018 = vmatprep.subr.mxu0 0.0
        %5019 = vmatpush1.msra.mxu0 0.0
        %5020 = vmatprep.subr.mxu0 0.0
        %5021 = vmatpush1.msra.mxu0 0.0
        %5022 = vmatprep.subr.mxu0 0.0
        %5023 = vmatpush1.msra.mxu0 0.0
        %5024 = vmatprep.subr.mxu0 0.0
        %5025 = vmatpush1.msra.mxu0 0.0
        %5026 = vmatprep.subr.mxu0 0.0
        %5027 = vmatpush1.msra.mxu0 0.0
        %5028 = vmatprep.subr.mxu0 0.0
        %5029 = vmatpush1.msra.mxu0 0.0
        %5030 = vmatprep.subr.mxu0 0.0
        %5031 = vmatpush1.msra.mxu0 0.0
        %5032 = vmatprep.subr.mxu0 0.0
        %5033 = vmatpush1.msra.mxu0 0.0
        %5034 = vmatprep.subr.mxu0 0.0
        %5035 = vmatpush1.msra.mxu0 0.0
        %5036 = vmatprep.subr.mxu0 0.0
        %5037 = vmatpush1.msra.mxu0 0.0
        %5038 = vmatprep.subr.mxu0 0.0
        %5039 = vmatpush1.msra.mxu0 0.0
        %5040 = vmatprep.mubr.f32.mxu0 0.0
        %5041 = vmatmul.mubr.f32.gmra.mrb[0].mxu0 %v4971
        %v5042 = vpop.f32.mrb[0].mxu0
        %v5043 = vadd.f32 0.0, %v5042
        %v5044 = vpop.f32.mrb[0].mxu0
        %5045 = vmatprep.mubr.f32.mxu0 0.0
        %5046 = vmatmul.mubr.f32.gmra.mrb[0].mxu0 %v4974
        %v5047 = vpop.f32.mrb[0].mxu0
        %v5048 = vadd.f32 0.0, %v5047
        %v5049 = vpop.f32.mrb[0].mxu0
        %5050 = vdwg.mxu0
        %v5052 = vsel %vm1183, %v4959, 0
        %v5055 = vsel %vm1183, %v4961, 0
        %5057 = vmatprep.subr.mxu0 0.0
        %5058 = vmatpush1.msra.mxu0 %v4498
        %5059 = vmatprep.subr.mxu0 0.0
        %5060 = vmatpush1.msra.mxu0 %v4503
        %5061 = vmatprep.subr.mxu0 0.0
        %5062 = vmatpush1.msra.mxu0 0.0
        %5063 = vmatprep.subr.mxu0 0.0
        %5064 = vmatpush1.msra.mxu0 0.0
        %5065 = vmatprep.subr.mxu0 0.0
        %5066 = vmatpush1.msra.mxu0 0.0
        %5067 = vmatprep.subr.mxu0 0.0
        %5068 = vmatpush1.msra.mxu0 0.0
        %5069 = vmatprep.subr.mxu0 0.0
        %5070 = vmatpush1.msra.mxu0 0.0
        %5071 = vmatprep.subr.mxu0 0.0
        %5072 = vmatpush1.msra.mxu0 0.0
        %5073 = vmatprep.subr.mxu0 0.0
        %5074 = vmatpush1.msra.mxu0 0.0
        %5075 = vmatprep.subr.mxu0 0.0
        %5076 = vmatpush1.msra.mxu0 0.0
        %5077 = vmatprep.subr.mxu0 0.0
        %5078 = vmatpush1.msra.mxu0 0.0
        %5079 = vmatprep.subr.mxu0 0.0
        %5080 = vmatpush1.msra.mxu0 0.0
        %5081 = vmatprep.subr.mxu0 0.0
        %5082 = vmatpush1.msra.mxu0 0.0
        %5083 = vmatprep.subr.mxu0 0.0
        %5084 = vmatpush1.msra.mxu0 0.0
        %5085 = vmatprep.subr.mxu0 0.0
        %5086 = vmatpush1.msra.mxu0 0.0
        %5087 = vmatprep.subr.mxu0 0.0
        %5088 = vmatpush1.msra.mxu0 0.0
        %5089 = vmatprep.subr.mxu0 0.0
        %5090 = vmatpush1.msra.mxu0 0.0
        %5091 = vmatprep.subr.mxu0 0.0
        %5092 = vmatpush1.msra.mxu0 0.0
        %5093 = vmatprep.subr.mxu0 0.0
        %5094 = vmatpush1.msra.mxu0 0.0
        %5095 = vmatprep.subr.mxu0 0.0
        %5096 = vmatpush1.msra.mxu0 0.0
        %5097 = vmatprep.subr.mxu0 0.0
        %5098 = vmatpush1.msra.mxu0 0.0
        %5099 = vmatprep.subr.mxu0 0.0
        %5100 = vmatpush1.msra.mxu0 0.0
        %5101 = vmatprep.subr.mxu0 0.0
        %5102 = vmatpush1.msra.mxu0 0.0
        %5103 = vmatprep.subr.mxu0 0.0
        %5104 = vmatpush1.msra.mxu0 0.0
        %5105 = vmatprep.subr.mxu0 0.0
        %5106 = vmatpush1.msra.mxu0 0.0
        %5107 = vmatprep.subr.mxu0 0.0
        %5108 = vmatpush1.msra.mxu0 0.0
        %5109 = vmatprep.subr.mxu0 0.0
        %5110 = vmatpush1.msra.mxu0 0.0
        %5111 = vmatprep.subr.mxu0 0.0
        %5112 = vmatpush1.msra.mxu0 0.0
        %5113 = vmatprep.subr.mxu0 0.0
        %5114 = vmatpush1.msra.mxu0 0.0
        %5115 = vmatprep.subr.mxu0 0.0
        %5116 = vmatpush1.msra.mxu0 0.0
        %5117 = vmatprep.subr.mxu0 0.0
        %5118 = vmatpush1.msra.mxu0 0.0
        %5119 = vmatprep.subr.mxu0 0.0
        %5120 = vmatpush1.msra.mxu0 0.0
        %5121 = vmatprep.mubr.f32.mxu0 0.0
        %5122 = vmatmul.mubr.f32.gmra.mrb[0].mxu0 %v5052
        %v5123 = vpop.f32.mrb[0].mxu0
        %v5124 = vadd.f32 0.0, %v5123
        %v5125 = vpop.f32.mrb[0].mxu0
        %5126 = vmatprep.mubr.f32.mxu0 0.0
        %5127 = vmatmul.mubr.f32.gmra.mrb[0].mxu0 %v5055
        %v5128 = vpop.f32.mrb[0].mxu0
        %v5129 = vadd.f32 0.0, %v5128
        %v5130 = vpop.f32.mrb[0].mxu0
        %5131 = vdwg.mxu0
        %v5133 = vsel %vm1183, %v4963, 0
        %v5136 = vsel %vm1183, %v4965, 0
        %5138 = vmatprep.subr.mxu0 0.0
        %5139 = vmatpush1.msra.mxu0 %v4508
        %5140 = vmatprep.subr.mxu0 0.0
        %5141 = vmatpush1.msra.mxu0 %v4513
        %5142 = vmatprep.subr.mxu0 0.0
        %5143 = vmatpush1.msra.mxu0 0.0
        %5144 = vmatprep.subr.mxu0 0.0
        %5145 = vmatpush1.msra.mxu0 0.0
        %5146 = vmatprep.subr.mxu0 0.0
        %5147 = vmatpush1.msra.mxu0 0.0
        %5148 = vmatprep.subr.mxu0 0.0
        %5149 = vmatpush1.msra.mxu0 0.0
        %5150 = vmatprep.subr.mxu0 0.0
        %5151 = vmatpush1.msra.mxu0 0.0
        %5152 = vmatprep.subr.mxu0 0.0
        %5153 = vmatpush1.msra.mxu0 0.0
        %5154 = vmatprep.subr.mxu0 0.0
        %5155 = vmatpush1.msra.mxu0 0.0
        %5156 = vmatprep.subr.mxu0 0.0
        %5157 = vmatpush1.msra.mxu0 0.0
        %5158 = vmatprep.subr.mxu0 0.0
        %5159 = vmatpush1.msra.mxu0 0.0
        %5160 = vmatprep.subr.mxu0 0.0
        %5161 = vmatpush1.msra.mxu0 0.0
        %5162 = vmatprep.subr.mxu0 0.0
        %5163 = vmatpush1.msra.mxu0 0.0
        %5164 = vmatprep.subr.mxu0 0.0
        %5165 = vmatpush1.msra.mxu0 0.0
        %5166 = vmatprep.subr.mxu0 0.0
        %5167 = vmatpush1.msra.mxu0 0.0
        %5168 = vmatprep.subr.mxu0 0.0
        %5169 = vmatpush1.msra.mxu0 0.0
        %5170 = vmatprep.subr.mxu0 0.0
        %5171 = vmatpush1.msra.mxu0 0.0
        %5172 = vmatprep.subr.mxu0 0.0
        %5173 = vmatpush1.msra.mxu0 0.0
        %5174 = vmatprep.subr.mxu0 0.0
        %5175 = vmatpush1.msra.mxu0 0.0
        %5176 = vmatprep.subr.mxu0 0.0
        %5177 = vmatpush1.msra.mxu0 0.0
        %5178 = vmatprep.subr.mxu0 0.0
        %5179 = vmatpush1.msra.mxu0 0.0
        %5180 = vmatprep.subr.mxu0 0.0
        %5181 = vmatpush1.msra.mxu0 0.0
        %5182 = vmatprep.subr.mxu0 0.0
        %5183 = vmatpush1.msra.mxu0 0.0
        %5184 = vmatprep.subr.mxu0 0.0
        %5185 = vmatpush1.msra.mxu0 0.0
        %5186 = vmatprep.subr.mxu0 0.0
        %5187 = vmatpush1.msra.mxu0 0.0
        %5188 = vmatprep.subr.mxu0 0.0
        %5189 = vmatpush1.msra.mxu0 0.0
        %5190 = vmatprep.subr.mxu0 0.0
        %5191 = vmatpush1.msra.mxu0 0.0
        %5192 = vmatprep.subr.mxu0 0.0
        %5193 = vmatpush1.msra.mxu0 0.0
        %5194 = vmatprep.subr.mxu0 0.0
        %5195 = vmatpush1.msra.mxu0 0.0
        %5196 = vmatprep.subr.mxu0 0.0
        %5197 = vmatpush1.msra.mxu0 0.0
        %5198 = vmatprep.subr.mxu0 0.0
        %5199 = vmatpush1.msra.mxu0 0.0
        %5200 = vmatprep.subr.mxu0 0.0
        %5201 = vmatpush1.msra.mxu0 0.0
        %5202 = vmatprep.mubr.f32.mxu0 0.0
        %5203 = vmatmul.mubr.f32.gmra.mrb[0].mxu0 %v5133
        %v5204 = vpop.f32.mrb[0].mxu0
        %v5205 = vadd.f32 0.0, %v5204
        %v5206 = vpop.f32.mrb[0].mxu0
        %5207 = vmatprep.mubr.f32.mxu0 0.0
        %5208 = vmatmul.mubr.f32.gmra.mrb[0].mxu0 %v5136
        %v5209 = vpop.f32.mrb[0].mxu0
        %v5210 = vadd.f32 0.0, %v5209
        %v5211 = vpop.f32.mrb[0].mxu0
        %5212 = vdwg.mxu0
        %v5214 = vsel %vm1183, %v4967, 0
        %v5217 = vsel %vm1183, %v4969, 0
        %5219 = vmatprep.subr.mxu0 0.0
        %5220 = vmatpush1.msra.mxu0 %v4518
        %5221 = vmatprep.subr.mxu0 0.0
        %5222 = vmatpush1.msra.mxu0 %v4523
        %5223 = vmatprep.subr.mxu0 0.0
        %5224 = vmatpush1.msra.mxu0 0.0
        %5225 = vmatprep.subr.mxu0 0.0
        %5226 = vmatpush1.msra.mxu0 0.0
        %5227 = vmatprep.subr.mxu0 0.0
        %5228 = vmatpush1.msra.mxu0 0.0
        %5229 = vmatprep.subr.mxu0 0.0
        %5230 = vmatpush1.msra.mxu0 0.0
        %5231 = vmatprep.subr.mxu0 0.0
        %5232 = vmatpush1.msra.mxu0 0.0
        %5233 = vmatprep.subr.mxu0 0.0
        %5234 = vmatpush1.msra.mxu0 0.0
        %5235 = vmatprep.subr.mxu0 0.0
        %5236 = vmatpush1.msra.mxu0 0.0
        %5237 = vmatprep.subr.mxu0 0.0
        %5238 = vmatpush1.msra.mxu0 0.0
        %5239 = vmatprep.subr.mxu0 0.0
        %5240 = vmatpush1.msra.mxu0 0.0
        %5241 = vmatprep.subr.mxu0 0.0
        %5242 = vmatpush1.msra.mxu0 0.0
        %5243 = vmatprep.subr.mxu0 0.0
        %5244 = vmatpush1.msra.mxu0 0.0
        %5245 = vmatprep.subr.mxu0 0.0
        %5246 = vmatpush1.msra.mxu0 0.0
        %5247 = vmatprep.subr.mxu0 0.0
        %5248 = vmatpush1.msra.mxu0 0.0
        %5249 = vmatprep.subr.mxu0 0.0
        %5250 = vmatpush1.msra.mxu0 0.0
        %5251 = vmatprep.subr.mxu0 0.0
        %5252 = vmatpush1.msra.mxu0 0.0
        %5253 = vmatprep.subr.mxu0 0.0
        %5254 = vmatpush1.msra.mxu0 0.0
        %5255 = vmatprep.subr.mxu0 0.0
        %5256 = vmatpush1.msra.mxu0 0.0
        %5257 = vmatprep.subr.mxu0 0.0
        %5258 = vmatpush1.msra.mxu0 0.0
        %5259 = vmatprep.subr.mxu0 0.0
        %5260 = vmatpush1.msra.mxu0 0.0
        %5261 = vmatprep.subr.mxu0 0.0
        %5262 = vmatpush1.msra.mxu0 0.0
        %5263 = vmatprep.subr.mxu0 0.0
        %5264 = vmatpush1.msra.mxu0 0.0
        %5265 = vmatprep.subr.mxu0 0.0
        %5266 = vmatpush1.msra.mxu0 0.0
        %5267 = vmatprep.subr.mxu0 0.0
        %5268 = vmatpush1.msra.mxu0 0.0
        %5269 = vmatprep.subr.mxu0 0.0
        %5270 = vmatpush1.msra.mxu0 0.0
        %5271 = vmatprep.subr.mxu0 0.0
        %5272 = vmatpush1.msra.mxu0 0.0
        %5273 = vmatprep.subr.mxu0 0.0
        %5274 = vmatpush1.msra.mxu0 0.0
        %5275 = vmatprep.subr.mxu0 0.0
        %5276 = vmatpush1.msra.mxu0 0.0
        %5277 = vmatprep.subr.mxu0 0.0
        %5278 = vmatpush1.msra.mxu0 0.0
        %5279 = vmatprep.subr.mxu0 0.0
        %5280 = vmatpush1.msra.mxu0 0.0
        %5281 = vmatprep.subr.mxu0 0.0
        %5282 = vmatpush1.msra.mxu0 0.0
        %5283 = vmatprep.mubr.f32.mxu0 0.0
        %5284 = vmatmul.mubr.f32.gmra.mrb[0].mxu0 %v5214
        %v5285 = vpop.f32.mrb[0].mxu0
        %v5286 = vadd.f32 0.0, %v5285
        %v5287 = vpop.f32.mrb[0].mxu0
        %5288 = vmatprep.mubr.f32.mxu0 0.0
        %5289 = vmatmul.mubr.f32.gmra.mrb[0].mxu0 %v5217
        %v5290 = vpop.f32.mrb[0].mxu0
        %v5291 = vadd.f32 0.0, %v5290
        %v5292 = vpop.f32.mrb[0].mxu0
        %5293 = vdwg.mxu0
        %v5295 = vsel %vm826, %v5043, 0
        %v5298 = vsel %vm826, %v5048, 0
        %v5301 = vsel %vm826, %v5124, 0
        %v5304 = vsel %vm826, %v5129, 0
        %v5307 = vsel %vm826, %v5205, 0
        %v5310 = vsel %vm826, %v5210, 0
        %v5313 = vsel %vm826, %v5286, 0
        %v5316 = vsel %vm826, %v5291, 0
        %5318 = vmatprep.subr.mxu0 0.0
        %5319 = vmatpush1.msra.mxu0 %v467
        %5320 = vmatprep.subr.mxu0 0.0
        %5321 = vmatpush1.msra.mxu0 0.0
        %5322 = vmatprep.subr.mxu0 0.0
        %5323 = vmatpush1.msra.mxu0 0.0
        %5324 = vmatprep.subr.mxu0 0.0
        %5325 = vmatpush1.msra.mxu0 0.0
        %5326 = vmatprep.subr.mxu0 0.0
        %5327 = vmatpush1.msra.mxu0 0.0
        %5328 = vmatprep.subr.mxu0 0.0
        %5329 = vmatpush1.msra.mxu0 0.0
        %5330 = vmatprep.subr.mxu0 0.0
        %5331 = vmatpush1.msra.mxu0 0.0
        %5332 = vmatprep.subr.mxu0 0.0
        %5333 = vmatpush1.msra.mxu0 0.0
        %5334 = vmatprep.subr.mxu0 0.0
        %5335 = vmatpush1.msra.mxu0 0.0
        %5336 = vmatprep.subr.mxu0 0.0
        %5337 = vmatpush1.msra.mxu0 0.0
        %5338 = vmatprep.subr.mxu0 0.0
        %5339 = vmatpush1.msra.mxu0 0.0
        %5340 = vmatprep.subr.mxu0 0.0
        %5341 = vmatpush1.msra.mxu0 0.0
        %5342 = vmatprep.subr.mxu0 0.0
        %5343 = vmatpush1.msra.mxu0 0.0
        %5344 = vmatprep.subr.mxu0 0.0
        %5345 = vmatpush1.msra.mxu0 0.0
        %5346 = vmatprep.subr.mxu0 0.0
        %5347 = vmatpush1.msra.mxu0 0.0
        %5348 = vmatprep.subr.mxu0 0.0
        %5349 = vmatpush1.msra.mxu0 0.0
        %5350 = vmatprep.subr.mxu0 0.0
        %5351 = vmatpush1.msra.mxu0 0.0
        %5352 = vmatprep.subr.mxu0 0.0
        %5353 = vmatpush1.msra.mxu0 0.0
        %5354 = vmatprep.subr.mxu0 0.0
        %5355 = vmatpush1.msra.mxu0 0.0
        %5356 = vmatprep.subr.mxu0 0.0
        %5357 = vmatpush1.msra.mxu0 0.0
        %5358 = vmatprep.subr.mxu0 0.0
        %5359 = vmatpush1.msra.mxu0 0.0
        %5360 = vmatprep.subr.mxu0 0.0
        %5361 = vmatpush1.msra.mxu0 0.0
        %5362 = vmatprep.subr.mxu0 0.0
        %5363 = vmatpush1.msra.mxu0 0.0
        %5364 = vmatprep.subr.mxu0 0.0
        %5365 = vmatpush1.msra.mxu0 0.0
        %5366 = vmatprep.subr.mxu0 0.0
        %5367 = vmatpush1.msra.mxu0 0.0
        %5368 = vmatprep.subr.mxu0 0.0
        %5369 = vmatpush1.msra.mxu0 0.0
        %5370 = vmatprep.subr.mxu0 0.0
        %5371 = vmatpush1.msra.mxu0 0.0
        %5372 = vmatprep.subr.mxu0 0.0
        %5373 = vmatpush1.msra.mxu0 0.0
        %5374 = vmatprep.subr.mxu0 0.0
        %5375 = vmatpush1.msra.mxu0 0.0
        %5376 = vmatprep.subr.mxu0 0.0
        %5377 = vmatpush1.msra.mxu0 0.0
        %5378 = vmatprep.subr.mxu0 0.0
        %5379 = vmatpush1.msra.mxu0 0.0
        %5380 = vmatprep.subr.mxu0 0.0
        %5381 = vmatpush1.msra.mxu0 0.0
        %5382 = vmatprep.mubr.f32.mxu0 0.0
        %5383 = vmatmul.mubr.f32.gmra.mrb[0].mxu0 %v5295
        %v5384 = vpop.f32.mrb[0].mxu0
        %v5385 = vadd.f32 0.0, %v5384
        %v5386 = vpop.f32.mrb[0].mxu0
        %5387 = vmatprep.mubr.f32.mxu0 0.0
        %5388 = vmatmul.mubr.f32.gmra.mrb[0].mxu0 %v5298
        %v5389 = vpop.f32.mrb[0].mxu0
        %v5390 = vadd.f32 0.0, %v5389
        %v5391 = vpop.f32.mrb[0].mxu0
        %5392 = vmatprep.mubr.f32.mxu0 0.0
        %5393 = vmatmul.mubr.f32.gmra.mrb[0].mxu0 %v5301
        %v5394 = vpop.f32.mrb[0].mxu0
        %v5395 = vadd.f32 0.0, %v5394
        %v5396 = vpop.f32.mrb[0].mxu0
        %5397 = vmatprep.mubr.f32.mxu0 0.0
        %5398 = vmatmul.mubr.f32.gmra.mrb[0].mxu0 %v5304
        %v5399 = vpop.f32.mrb[0].mxu0
        %v5400 = vadd.f32 0.0, %v5399
        %v5401 = vpop.f32.mrb[0].mxu0
        %5402 = vmatprep.mubr.f32.mxu0 0.0
        %5403 = vmatmul.mubr.f32.gmra.mrb[0].mxu0 %v5307
        %v5404 = vpop.f32.mrb[0].mxu0
        %v5405 = vadd.f32 0.0, %v5404
        %v5406 = vpop.f32.mrb[0].mxu0
        %5407 = vmatprep.mubr.f32.mxu0 0.0
        %5408 = vmatmul.mubr.f32.gmra.mrb[0].mxu0 %v5310
        %v5409 = vpop.f32.mrb[0].mxu0
        %v5410 = vadd.f32 0.0, %v5409
        %v5411 = vpop.f32.mrb[0].mxu0
        %5412 = vmatprep.mubr.f32.mxu0 0.0
        %5413 = vmatmul.mubr.f32.gmra.mrb[0].mxu0 %v5313
        %v5414 = vpop.f32.mrb[0].mxu0
        %v5415 = vadd.f32 0.0, %v5414
        %v5416 = vpop.f32.mrb[0].mxu0
        %5417 = vmatprep.mubr.f32.mxu0 0.0
        %5418 = vmatmul.mubr.f32.gmra.mrb[0].mxu0 %v5316
        %v5419 = vpop.f32.mrb[0].mxu0
        %v5420 = vadd.f32 0.0, %v5419
        %v5421 = vpop.f32.mrb[0].mxu0
        %5422 = vdwg.mxu0
        %v5423 = vadd.f32 %v4185, %v5385
        %v5424 = vadd.f32 %v4186, %v5390
        %v5425 = vadd.f32 %v4187, %v5395
        %v5426 = vadd.f32 %v4188, %v5400
        %v5427 = vadd.f32 %v4189, %v5405
        %v5428 = vadd.f32 %v4190, %v5410
        %v5429 = vadd.f32 %v4191, %v5415
        %v5430 = vadd.f32 %v4192, %v5420
        %v5431 = vld [vmem:[%s9] sm:$0x1]
        %v5433 = vlaneseq
        %v5434 = vshrl.u32 %v5433, 7
        %v5435 = vsub.s32 0, %v5434
        %v5436 = vrot.slane %v5431, %v5435
        %v5438 = vadd.f32 %v5423, %v5436
        %v5439 = vadd.f32 %v5424, %v5436
        %v5440 = vadd.f32 %v5425, %v5436
        %v5441 = vadd.f32 %v5426, %v5436
        %v5442 = vadd.f32 %v5427, %v5436
        %v5443 = vadd.f32 %v5428, %v5436
        %v5444 = vadd.f32 %v5429, %v5436
        %v5445 = vadd.f32 %v5430, %v5436
        %5446 = vst.msk [vmem:[%s355] sm:$0xff] %vm474, %v5438
        %5447 = vst.msk [vmem:[%s355 + $0x8] sm:$0xff] %vm474, %v5439
        %5448 = vst.msk [vmem:[%s355 + $0x10] sm:$0xff] %vm474, %v5440
        %5449 = vst.msk [vmem:[%s355 + $0x18] sm:$0xff] %vm474, %v5441
        %5450 = vst.msk [vmem:[%s355 + $0x20] sm:$0xff] %vm474, %v5442
        %5451 = vst.msk [vmem:[%s355 + $0x28] sm:$0xff] %vm474, %v5443
        %5452 = vst.msk [vmem:[%s355 + $0x30] sm:$0xff] %vm474, %v5444
        %5453 = vst.msk [vmem:[%s355 + $0x38] sm:$0xff] %vm474, %v5445
        %s5454 = sand.u32 %s247, 1
        %s5455 = scalar_lea.sflag [#allocation3], %s5454
        %s5456 = sand.u32 %s247, 1
        %s5457 = smul.addr %s5456, 64
        %s5458 = scalar_lea.vmem [#allocation2], %s5457
        // Predicated region
        $region61: #{tpu_custom_call.1} parent=59 // pred_check
          %p5459 = pneg %p257
        $region62: #{tpu_custom_call.1} parent=59 // pred_check_branch
          %5461 = sbr.rel (%p5459) target = $region64
        $region63: #{tpu_custom_call.1} parent=59 // pred_region
          %s5462 = smul.u32 4, %s24
          %s5464 = ssub.s32 1024, 1024
          %5465 = vsyncadd %s5455, %s5464
          %s5466 = smul.addr %s5462, 2
          %s5467 = smul.addr %s5466, 128
          %s5468 = scalar_lea.hbm %s10, %s5467
          %s5469 = sshll.u32 %s5458, 4
          %s5470 = int_to_ptr.vmem [resolvable:$true] %s5469
          %5475 = dma.vmem_to_hbm [thread:$0]  %s5470, 1024, %s5468, %s5455, 128, 128, 8
        $region64: #{tpu_custom_call.1} parent=59 // pred_fallthru
          _
      $region60: #{tpu_custom_call.1} parent=5 // pred_fallthru
        _
      %p5476 = scmp.le.s32.totalorder 2, %s19
      // Predicated region
      $region65: #{tpu_custom_call.1} parent=5 // pred_check
        %p5477 = pneg %p5476
      $region66: #{tpu_custom_call.1} parent=5 // pred_check_branch
        %5479 = sbr.rel (%p5477) target = $region68
      $region67: #{tpu_custom_call.1} parent=5 // pred_region
        %s5480 = ssub.s32 %s19, 2
        // Predicated region
        $region69: #{tpu_custom_call.1} parent=67 // pred_check
          %p5481 = pneg %p263
        $region70: #{tpu_custom_call.1} parent=67 // pred_check_branch
          %5483 = sbr.rel (%p5481) target = $region72
        $region71: #{tpu_custom_call.1} parent=67 // pred_region
          %s5484 = sand.u32 %s248, 1
          %s5485 = scalar_lea.sflag [#allocation3], %s5484
          %s5486 = sand.u32 %s248, 1
          %s5487 = smul.addr %s5486, 64
          %s5488 = scalar_lea.vmem [#allocation2], %s5487
          %5489 = dma.done %s5485, 1024
        $region72: #{tpu_custom_call.1} parent=67 // pred_fallthru
          _
      $region68: #{tpu_custom_call.1} parent=5 // pred_fallthru
        _
    $region6: #{tpu_custom_call.1} parent=1 // loop_footer
      %s23 = sadd.s32 1, %s19
    $region7: #{tpu_custom_call.1} parent=1 // loop_footer_branch
      %18 = sbr.rel target = $region3
    $region8: #{tpu_custom_call.1} parent=1 // loop_exit
      _
    %5490 = vsyncpa [#allocation3], 1
    %s5491 = scalar_lea.sflag [#allocation3], 1
    %5492 = vsyncpa %s5491, 1

</llo_original>
